<compile_context>
chip_gen: v7x
topology: tpu7x:2x2x1
jax: 0.10.0
libtpu: 0.0.40
codegen_flags: <defaults>
</compile_context>

<pallas_src>
import math
from functools import partial

import jax
import jax.numpy as jnp
from jax.experimental import pallas as pl
from jax.experimental.pallas import tpu as pltpu


# ----------------------------- helpers -------------------------------------

def _layer_norm(x, eps=1e-6):
    mu = jnp.mean(x, axis=-1, keepdims=True)
    var = jnp.mean((x - mu) ** 2, axis=-1, keepdims=True)
    return (x - mu) * jax.lax.rsqrt(var + eps)


def _gelu_tanh(x):
    c0 = math.sqrt(2.0 / math.pi)
    return 0.5 * x * (1.0 + jnp.tanh(c0 * (x + 0.044715 * x * x * x)))


def _silu(x):
    return x * jax.nn.sigmoid(x)


# ----------------------------- Pallas kernel --------------------------------

def make_dit_block_kernel(hidden_size, num_heads):
    D = hidden_size
    H = num_heads
    Dh = D // H
    attn_scale = Dh ** -0.5
    f32, bf16 = jnp.float32, jnp.bfloat16

    def kernel(x_ref, ada_ref,
               w_qkv_ref, b_qkv_ref,
               w_proj_ref, b_proj_ref,
               w_fc1_ref, b_fc1_ref,
               w_fc2_ref, b_fc2_ref,
               o_ref):
        x = x_ref[0].astype(f32)            # (T, D)  residual path stays f32
        T = x.shape[0]
        ada = ada_ref[0].astype(f32)        # (6, D)  sublane slices are cheap
        shift_msa, scale_msa, gate_msa = ada[0:1], ada[1:2], ada[2:3]
        shift_mlp, scale_mlp, gate_mlp = ada[3:4], ada[4:5], ada[5:6]

        # ---------------- attention branch ----------------
        xm = _layer_norm(x) * (1.0 + scale_msa) + shift_msa     # f32 (T, D)
        xm_bf = xm.astype(bf16)                                 # MXU input

        attn = jnp.zeros((T, D), f32)
        for h in range(H):   # static unroll; head-major weight refs -> no lane slicing
            q = jnp.dot(xm_bf, w_qkv_ref[0, h],
                        preferred_element_type=f32) + b_qkv_ref[0, h]   # (T, Dh)
            k = jnp.dot(xm_bf, w_qkv_ref[1, h],
                        preferred_element_type=f32) + b_qkv_ref[1, h]   # (T, Dh)
            v = jnp.dot(xm_bf, w_qkv_ref[2, h],
                        preferred_element_type=f32) + b_qkv_ref[2, h]   # (T, Dh)
            q = q * attn_scale

            # QK^T: contract the Dh axis of both operands (no explicit k.T).
            s = jax.lax.dot_general(
                q.astype(bf16), k.astype(bf16),
                dimension_numbers=(((1,), (1,)), ((), ())),
                preferred_element_type=f32)                             # (T, T)
            s = s - jnp.max(s, axis=-1, keepdims=True)                  # XLU reduce
            p = jnp.exp(s)                                              # EUP
            p = p * pl.reciprocal(jnp.sum(p, axis=-1, keepdims=True), approx=True)

            o_h = jnp.dot(p.astype(bf16), v.astype(bf16),
                          preferred_element_type=f32)                   # (T, Dh)
            # Output projection accumulated per head (replaces concat + matmul).
            attn = attn + jnp.dot(o_h.astype(bf16), w_proj_ref[h],
                                  preferred_element_type=f32)           # (T, D)
        attn = attn + b_proj_ref[...]

        x1 = x + gate_msa * attn

        # ---------------- MLP branch ----------------
        xm2 = _layer_norm(x1) * (1.0 + scale_mlp) + shift_mlp
        hdn = jnp.dot(xm2.astype(bf16), w_fc1_ref[...],
                      preferred_element_type=f32) + b_fc1_ref[...]      # (T, 4D)
        hdn = _gelu_tanh(hdn)                                           # f32 VPU/EUP
        mlp = jnp.dot(hdn.astype(bf16), w_fc2_ref[...],
                      preferred_element_type=f32) + b_fc2_ref[...]      # (T, D)

        o_ref[0] = (x1 + gate_mlp * mlp).astype(o_ref.dtype)            # lane-dense store

    return kernel


# ----------------------------- wrapper ---------------------------------------

@partial(jax.jit, static_argnames=("num_heads", "single_buffer_weights"))
def _dit_block_impl(x, c, params, num_heads, single_buffer_weights):
    N, T, D = x.shape
    H = num_heads
    Dh = D // H
    f32, bf16 = jnp.float32, jnp.bfloat16

    # ---- hoisted adaLN modulation: one small XLA matmul, passed as (N, 6, D) ----
    ada = _silu(c.astype(f32)) @ params["w_ada"].astype(f32) + params["b_ada"].astype(f32)
    ada = ada.reshape(N, 6, D).astype(f32)

    # ---- head-major, bf16 weight views (prepared once, fused under jit) ----
    w_qkv_hm = params["w_qkv"].reshape(D, 3, H, Dh).transpose(1, 2, 0, 3).astype(bf16)  # (3,H,D,Dh)
    b_qkv_hm = params["b_qkv"].reshape(3, H, Dh)[:, :, None, :].astype(f32)             # (3,H,1,Dh)
    w_proj_hm = params["w_proj"].reshape(H, Dh, D).astype(bf16)                          # (H,Dh,D)
    b_proj = params["b_proj"].astype(f32)                                                # (1,D)
    w_fc1 = params["w_fc1"].astype(bf16)                                                 # (D,Dm)
    b_fc1 = params["b_fc1"].astype(f32)                                                  # (1,Dm)
    w_fc2 = params["w_fc2"].astype(bf16)                                                 # (Dm,D)
    b_fc2 = params["b_fc2"].astype(f32)                                                  # (1,D)

    weights = (w_qkv_hm, b_qkv_hm, w_proj_hm, b_proj, w_fc1, b_fc1, w_fc2, b_fc2)

    def resident_spec(arr):
        nd = arr.ndim
        kwargs = {}
        if single_buffer_weights:
            # Grid-invariant weights: no point double-buffering them.
            kwargs["pipeline_mode"] = pl.Buffered(1)
        return pl.BlockSpec(arr.shape, lambda n, _z=(0,) * nd: _z, **kwargs)

    in_specs = [
        pl.BlockSpec((1, T, D), lambda n: (n, 0, 0)),   # x: one batch row per step
        pl.BlockSpec((1, 6, D), lambda n: (n, 0, 0)),   # adaLN modulation rows
    ] + [resident_spec(w) for w in weights]

    out_spec = pl.BlockSpec((1, T, D), lambda n: (n, 0, 0))

    kernel = make_dit_block_kernel(D, H)

    return pl.pallas_call(
        kernel,
        out_shape=jax.ShapeDtypeStruct((N, T, D), x.dtype),
        grid=(N,),
        in_specs=in_specs,
        out_specs=out_spec,
        compiler_params=pltpu.CompilerParams(
            dimension_semantics=("parallel",),           # shard batch across TCs (v7x)
            vmem_limit_bytes=48 * 1024 * 1024,
        ),
    )(x, ada, *weights)


def dit_block(x, c, params, num_heads):
    """Pallas DiTBlock forward. x: (N, T, D), c: (N, D) -> (N, T, D)."""
    try:
        return jax.block_until_ready(
            _dit_block_impl(x, c, params, num_heads=num_heads,
                            single_buffer_weights=True))
    except Exception:
        # Fallback for environments without BlockSpec(pipeline_mode=pl.Buffered(1)).
        return jax.block_until_ready(
            _dit_block_impl(x, c, params, num_heads=num_heads,
                            single_buffer_weights=False))


# ----------------------------- pure-JAX reference ----------------------------

def dit_block_ref(x, c, params, num_heads):
    N, T, D = x.shape
    H = num_heads
    Dh = D // H
    ada = _silu(c) @ params["w_ada"] + params["b_ada"]           # (N, 6D)
    shift_msa, scale_msa, gate_msa, shift_mlp, scale_mlp, gate_mlp = \
        jnp.split(ada, 6, axis=-1)

    def mod(xn, sh, sc):
        return xn * (1.0 + sc[:, None, :]) + sh[:, None, :]

    xm = mod(_layer_norm(x), shift_msa, scale_msa)
    qkv = xm @ params["w_qkv"] + params["b_qkv"]                 # (N, T, 3D)
    q, k, v = jnp.split(qkv, 3, axis=-1)
    q = q.reshape(N, T, H, Dh).transpose(0, 2, 1, 3) * (Dh ** -0.5)
    k = k.reshape(N, T, H, Dh).transpose(0, 2, 1, 3)
    v = v.reshape(N, T, H, Dh).transpose(0, 2, 1, 3)
    s = jnp.einsum("nhtd,nhsd->nhts", q, k)
    p = jax.nn.softmax(s, axis=-1)
    o = jnp.einsum("nhts,nhsd->nhtd", p, v).transpose(0, 2, 1, 3).reshape(N, T, D)
    attn = o @ params["w_proj"] + params["b_proj"]
    x1 = x + gate_msa[:, None, :] * attn

    xm2 = mod(_layer_norm(x1), shift_mlp, scale_mlp)
    h = _gelu_tanh(xm2 @ params["w_fc1"] + params["b_fc1"])
    mlp = h @ params["w_fc2"] + params["b_fc2"]
    return x1 + gate_mlp[:, None, :] * mlp


# ----------------------------- main -----------------------------------------

if __name__ == "__main__":
    N, T, D, H = 2, 8, 32, 4          # batch, seq, hidden, heads
    Dm = int(D * 4.0)                 # mlp hidden

    key = jax.random.PRNGKey(0)
    ks = jax.random.split(key, 12)

    x = jax.random.normal(ks[0], (N, T, D), jnp.float32)
    c = jax.random.normal(ks[1], (N, D), jnp.float32)

    def w(k, shape, s=0.02):
        v = s * jax.random.normal(k, shape, jnp.float32)
        # Round to bf16-representable values so the kernel's bf16 weights and
        # the f32 reference weights are numerically identical.
        return v.astype(jnp.bfloat16).astype(jnp.float32)

    params = {
        "w_ada": w(ks[2], (D, 6 * D)),
        "b_ada": w(ks[3], (1, 6 * D)),
        "w_qkv": w(ks[4], (D, 3 * D)),
        "b_qkv": w(ks[5], (1, 3 * D)),
        "w_proj": w(ks[6], (D, D)),
        "b_proj": w(ks[7], (1, D)),
        "w_fc1": w(ks[8], (D, Dm)),
        "b_fc1": w(ks[9], (1, Dm)),
        "w_fc2": w(ks[10], (Dm, D)),
        "b_fc2": w(ks[11], (1, D)),
    }

    out = dit_block(x, c, params, H)
    out = jax.block_until_ready(out)

    ref = dit_block_ref(x, c, params, H)
    assert out.shape == (N, T, D)
    err = float(jnp.max(jnp.abs(out - ref)))
    assert jnp.allclose(out, ref, atol=1e-2, rtol=1e-2), f"max abs diff = {err}"

    print("KERNEL_OK")
</pallas_src>

<mosaic_0001>
module attributes {stable_mosaic.version = 11 : i64} {
  func.func @kernel(%arg0: i32, %arg1: memref<1x8x32xf32, #tpu.memory_space<vmem>>, %arg2: memref<1x6x32xf32, #tpu.memory_space<vmem>>, %arg3: memref<3x4x32x8xbf16, #tpu.memory_space<vmem>>, %arg4: memref<3x4x1x8xf32, #tpu.memory_space<vmem>>, %arg5: memref<4x8x32xbf16, #tpu.memory_space<vmem>>, %arg6: memref<1x32xf32, #tpu.memory_space<vmem>>, %arg7: memref<32x128xbf16, #tpu.memory_space<vmem>>, %arg8: memref<1x128xf32, #tpu.memory_space<vmem>>, %arg9: memref<128x32xbf16, #tpu.memory_space<vmem>>, %arg10: memref<1x32xf32, #tpu.memory_space<vmem>>, %arg11: memref<1x8x32xf32, #tpu.memory_space<vmem>>) attributes {dimension_semantics = [#tpu.dimension_semantics<parallel>], iteration_bounds = array<i64: 2>, scalar_prefetch = 0 : i64, scratch_operands = 0 : i64, tpu.core_type = #tpu.core_type<tc>, window_params = [{transform_indices = @transform_0, window_bounds = array<i64: 1, 8, 32>}, {transform_indices = @transform_1, window_bounds = array<i64: 1, 6, 32>}, {pipeline_mode = #tpu.pipeline_mode<synchronous>, transform_indices = @transform_2, window_bounds = array<i64: 3, 4, 32, 8>}, {pipeline_mode = #tpu.pipeline_mode<synchronous>, transform_indices = @transform_3, window_bounds = array<i64: 3, 4, 1, 8>}, {pipeline_mode = #tpu.pipeline_mode<synchronous>, transform_indices = @transform_4, window_bounds = array<i64: 4, 8, 32>}, {pipeline_mode = #tpu.pipeline_mode<synchronous>, transform_indices = @transform_5, window_bounds = array<i64: 1, 32>}, {pipeline_mode = #tpu.pipeline_mode<synchronous>, transform_indices = @transform_6, window_bounds = array<i64: 32, 128>}, {pipeline_mode = #tpu.pipeline_mode<synchronous>, transform_indices = @transform_7, window_bounds = array<i64: 1, 128>}, {pipeline_mode = #tpu.pipeline_mode<synchronous>, transform_indices = @transform_8, window_bounds = array<i64: 128, 32>}, {pipeline_mode = #tpu.pipeline_mode<synchronous>, transform_indices = @transform_9, window_bounds = array<i64: 1, 32>}, {transform_indices = @transform_10, window_bounds = array<i64: 1, 8, 32>}]} {
    %c0 = arith.constant 0 : index
    %c0_0 = arith.constant 0 : index
    %c0_1 = arith.constant 0 : index
    %0 = vector.load %arg1[%c0, %c0_0, %c0_1] : memref<1x8x32xf32, #tpu.memory_space<vmem>>, vector<1x8x32xf32>
    %1 = vector.shape_cast %0 : vector<1x8x32xf32> to vector<8x32xf32>
    %c0_2 = arith.constant 0 : index
    %c0_3 = arith.constant 0 : index
    %c0_4 = arith.constant 0 : index
    %2 = vector.load %arg2[%c0_2, %c0_3, %c0_4] : memref<1x6x32xf32, #tpu.memory_space<vmem>>, vector<1x6x32xf32>
    %3 = vector.shape_cast %2 : vector<1x6x32xf32> to vector<6x32xf32>
    %4 = vector.extract_strided_slice %3 {offsets = [0, 0], sizes = [1, 32], strides = [1, 1]} : vector<6x32xf32> to vector<1x32xf32>
    %5 = vector.extract_strided_slice %3 {offsets = [1, 0], sizes = [1, 32], strides = [1, 1]} : vector<6x32xf32> to vector<1x32xf32>
    %6 = vector.extract_strided_slice %3 {offsets = [2, 0], sizes = [1, 32], strides = [1, 1]} : vector<6x32xf32> to vector<1x32xf32>
    %7 = vector.extract_strided_slice %3 {offsets = [3, 0], sizes = [1, 32], strides = [1, 1]} : vector<6x32xf32> to vector<1x32xf32>
    %8 = vector.extract_strided_slice %3 {offsets = [4, 0], sizes = [1, 32], strides = [1, 1]} : vector<6x32xf32> to vector<1x32xf32>
    %9 = vector.extract_strided_slice %3 {offsets = [5, 0], sizes = [1, 32], strides = [1, 1]} : vector<6x32xf32> to vector<1x32xf32>
    %cst = arith.constant dense<0.000000e+00> : vector<8xf32>
    %10 = vector.multi_reduction <add>, %1, %cst [1] : vector<8x32xf32> to vector<8xf32>
    %11 = vector.shape_cast %10 : vector<8xf32> to vector<8x1xf32>
    %cst_5 = arith.constant 3.200000e+01 : f32
    %12 = vector.broadcast %cst_5 : f32 to vector<8x1xf32>
    %13 = arith.divf %11, %12 : vector<8x1xf32>
    %14 = vector.broadcast %13 : vector<8x1xf32> to vector<8x32xf32>
    %15 = arith.subf %1, %14 : vector<8x32xf32>
    %16 = arith.mulf %15, %15 : vector<8x32xf32>
    %cst_6 = arith.constant dense<0.000000e+00> : vector<8xf32>
    %17 = vector.multi_reduction <add>, %16, %cst_6 [1] : vector<8x32xf32> to vector<8xf32>
    %18 = vector.shape_cast %17 : vector<8xf32> to vector<8x1xf32>
    %cst_7 = arith.constant 3.200000e+01 : f32
    %19 = vector.broadcast %cst_7 : f32 to vector<8x1xf32>
    %20 = arith.divf %18, %19 : vector<8x1xf32>
    %21 = vector.broadcast %13 : vector<8x1xf32> to vector<8x32xf32>
    %22 = arith.subf %1, %21 : vector<8x32xf32>
    %cst_8 = arith.constant 9.99999997E-7 : f32
    %23 = vector.broadcast %cst_8 : f32 to vector<8x1xf32>
    %24 = arith.addf %20, %23 : vector<8x1xf32>
    %25 = math.rsqrt %24 : vector<8x1xf32>
    %26 = vector.broadcast %25 : vector<8x1xf32> to vector<8x32xf32>
    %27 = arith.mulf %22, %26 : vector<8x32xf32>
    %cst_9 = arith.constant 1.000000e+00 : f32
    %28 = vector.broadcast %cst_9 : f32 to vector<1x32xf32>
    %29 = arith.addf %28, %5 : vector<1x32xf32>
    %30 = vector.broadcast %29 : vector<1x32xf32> to vector<8x32xf32>
    %31 = arith.mulf %27, %30 : vector<8x32xf32>
    %32 = vector.broadcast %4 : vector<1x32xf32> to vector<8x32xf32>
    %33 = arith.addf %31, %32 : vector<8x32xf32>
    %34 = arith.truncf %33 : vector<8x32xf32> to vector<8x32xbf16>
    %cst_10 = arith.constant 0.000000e+00 : f32
    %35 = vector.broadcast %cst_10 : f32 to vector<8x32xf32>
    %c0_11 = arith.constant 0 : index
    %c0_12 = arith.constant 0 : index
    %c0_13 = arith.constant 0 : index
    %c0_14 = arith.constant 0 : index
    %36 = vector.load %arg3[%c0_11, %c0_12, %c0_13, %c0_14] : memref<3x4x32x8xbf16, #tpu.memory_space<vmem>>, vector<1x1x32x8xbf16>
    %37 = vector.shape_cast %36 : vector<1x1x32x8xbf16> to vector<32x8xbf16>
    %cst_15 = arith.constant dense<0.000000e+00> : vector<8x8xf32>
    %38 = tpu.matmul %34, %37, %cst_15 {dimension_numbers = #tpu.dot_dimension_numbers<[1], [0], [0], [1], [0, 0, 1, 1], [], []>} : vector<8x32xbf16>, vector<32x8xbf16>, vector<8x8xf32> -> vector<8x8xf32>
    %c0_16 = arith.constant 0 : index
    %c0_17 = arith.constant 0 : index
    %c0_18 = arith.constant 0 : index
    %c0_19 = arith.constant 0 : index
    %39 = vector.load %arg4[%c0_16, %c0_17, %c0_18, %c0_19] : memref<3x4x1x8xf32, #tpu.memory_space<vmem>>, vector<1x1x1x8xf32>
    %40 = vector.shape_cast %39 : vector<1x1x1x8xf32> to vector<1x8xf32>
    %41 = vector.broadcast %40 : vector<1x8xf32> to vector<8x8xf32>
    %42 = arith.addf %38, %41 : vector<8x8xf32>
    %c1 = arith.constant 1 : index
    %c0_20 = arith.constant 0 : index
    %c0_21 = arith.constant 0 : index
    %c0_22 = arith.constant 0 : index
    %43 = vector.load %arg3[%c1, %c0_20, %c0_21, %c0_22] : memref<3x4x32x8xbf16, #tpu.memory_space<vmem>>, vector<1x1x32x8xbf16>
    %44 = vector.shape_cast %43 : vector<1x1x32x8xbf16> to vector<32x8xbf16>
    %cst_23 = arith.constant dense<0.000000e+00> : vector<8x8xf32>
    %45 = tpu.matmul %34, %44, %cst_23 {dimension_numbers = #tpu.dot_dimension_numbers<[1], [0], [0], [1], [0, 0, 1, 1], [], []>} : vector<8x32xbf16>, vector<32x8xbf16>, vector<8x8xf32> -> vector<8x8xf32>
    %c1_24 = arith.constant 1 : index
    %c0_25 = arith.constant 0 : index
    %c0_26 = arith.constant 0 : index
    %c0_27 = arith.constant 0 : index
    %46 = vector.load %arg4[%c1_24, %c0_25, %c0_26, %c0_27] : memref<3x4x1x8xf32, #tpu.memory_space<vmem>>, vector<1x1x1x8xf32>
    %47 = vector.shape_cast %46 : vector<1x1x1x8xf32> to vector<1x8xf32>
    %48 = vector.broadcast %47 : vector<1x8xf32> to vector<8x8xf32>
    %49 = arith.addf %45, %48 : vector<8x8xf32>
    %c2 = arith.constant 2 : index
    %c0_28 = arith.constant 0 : index
    %c0_29 = arith.constant 0 : index
    %c0_30 = arith.constant 0 : index
    %50 = vector.load %arg3[%c2, %c0_28, %c0_29, %c0_30] : memref<3x4x32x8xbf16, #tpu.memory_space<vmem>>, vector<1x1x32x8xbf16>
    %51 = vector.shape_cast %50 : vector<1x1x32x8xbf16> to vector<32x8xbf16>
    %cst_31 = arith.constant dense<0.000000e+00> : vector<8x8xf32>
    %52 = tpu.matmul %34, %51, %cst_31 {dimension_numbers = #tpu.dot_dimension_numbers<[1], [0], [0], [1], [0, 0, 1, 1], [], []>} : vector<8x32xbf16>, vector<32x8xbf16>, vector<8x8xf32> -> vector<8x8xf32>
    %c2_32 = arith.constant 2 : index
    %c0_33 = arith.constant 0 : index
    %c0_34 = arith.constant 0 : index
    %c0_35 = arith.constant 0 : index
    %53 = vector.load %arg4[%c2_32, %c0_33, %c0_34, %c0_35] : memref<3x4x1x8xf32, #tpu.memory_space<vmem>>, vector<1x1x1x8xf32>
    %54 = vector.shape_cast %53 : vector<1x1x1x8xf32> to vector<1x8xf32>
    %55 = vector.broadcast %54 : vector<1x8xf32> to vector<8x8xf32>
    %56 = arith.addf %52, %55 : vector<8x8xf32>
    %cst_36 = arith.constant 0.353553385 : f32
    %57 = vector.broadcast %cst_36 : f32 to vector<8x8xf32>
    %58 = arith.mulf %42, %57 : vector<8x8xf32>
    %59 = arith.truncf %58 : vector<8x8xf32> to vector<8x8xbf16>
    %60 = arith.truncf %49 : vector<8x8xf32> to vector<8x8xbf16>
    %cst_37 = arith.constant dense<0.000000e+00> : vector<8x8xf32>
    %61 = tpu.matmul %59, %60, %cst_37 {dimension_numbers = #tpu.dot_dimension_numbers<[1], [1], [0], [0], [0, 0, 1, 0], [], []>} : vector<8x8xbf16>, vector<8x8xbf16>, vector<8x8xf32> -> vector<8x8xf32>
    %cst_38 = arith.constant dense<0xFF800000> : vector<8xf32>
    %62 = vector.multi_reduction <maximumf>, %61, %cst_38 [1] : vector<8x8xf32> to vector<8xf32>
    %63 = vector.shape_cast %62 : vector<8xf32> to vector<8x1xf32>
    %64 = vector.broadcast %63 : vector<8x1xf32> to vector<8x8xf32>
    %65 = arith.subf %61, %64 : vector<8x8xf32>
    %66 = math.exp %65 : vector<8x8xf32>
    %cst_39 = arith.constant dense<0.000000e+00> : vector<8xf32>
    %67 = vector.multi_reduction <add>, %66, %cst_39 [1] : vector<8x8xf32> to vector<8xf32>
    %68 = vector.shape_cast %67 : vector<8xf32> to vector<8x1xf32>
    %69 = tpu.reciprocal %68 {approx = true} : vector<8x1xf32> -> vector<8x1xf32>
    %70 = vector.broadcast %69 : vector<8x1xf32> to vector<8x8xf32>
    %71 = arith.mulf %66, %70 : vector<8x8xf32>
    %72 = arith.truncf %71 : vector<8x8xf32> to vector<8x8xbf16>
    %73 = arith.truncf %56 : vector<8x8xf32> to vector<8x8xbf16>
    %cst_40 = arith.constant dense<0.000000e+00> : vector<8x8xf32>
    %74 = tpu.matmul %72, %73, %cst_40 {dimension_numbers = #tpu.dot_dimension_numbers<[1], [0], [0], [1], [0, 0, 1, 1], [], []>} : vector<8x8xbf16>, vector<8x8xbf16>, vector<8x8xf32> -> vector<8x8xf32>
    %75 = arith.truncf %74 : vector<8x8xf32> to vector<8x8xbf16>
    %c0_41 = arith.constant 0 : index
    %c0_42 = arith.constant 0 : index
    %c0_43 = arith.constant 0 : index
    %76 = vector.load %arg5[%c0_41, %c0_42, %c0_43] : memref<4x8x32xbf16, #tpu.memory_space<vmem>>, vector<1x8x32xbf16>
    %77 = vector.shape_cast %76 : vector<1x8x32xbf16> to vector<8x32xbf16>
    %cst_44 = arith.constant dense<0.000000e+00> : vector<8x32xf32>
    %78 = tpu.matmul %75, %77, %cst_44 {dimension_numbers = #tpu.dot_dimension_numbers<[1], [0], [0], [1], [0, 0, 1, 1], [], []>} : vector<8x8xbf16>, vector<8x32xbf16>, vector<8x32xf32> -> vector<8x32xf32>
    %79 = arith.addf %35, %78 : vector<8x32xf32>
    %c0_45 = arith.constant 0 : index
    %c1_46 = arith.constant 1 : index
    %c0_47 = arith.constant 0 : index
    %c0_48 = arith.constant 0 : index
    %80 = vector.load %arg3[%c0_45, %c1_46, %c0_47, %c0_48] : memref<3x4x32x8xbf16, #tpu.memory_space<vmem>>, vector<1x1x32x8xbf16>
    %81 = vector.shape_cast %80 : vector<1x1x32x8xbf16> to vector<32x8xbf16>
    %cst_49 = arith.constant dense<0.000000e+00> : vector<8x8xf32>
    %82 = tpu.matmul %34, %81, %cst_49 {dimension_numbers = #tpu.dot_dimension_numbers<[1], [0], [0], [1], [0, 0, 1, 1], [], []>} : vector<8x32xbf16>, vector<32x8xbf16>, vector<8x8xf32> -> vector<8x8xf32>
    %c0_50 = arith.constant 0 : index
    %c1_51 = arith.constant 1 : index
    %c0_52 = arith.constant 0 : index
    %c0_53 = arith.constant 0 : index
    %83 = vector.load %arg4[%c0_50, %c1_51, %c0_52, %c0_53] : memref<3x4x1x8xf32, #tpu.memory_space<vmem>>, vector<1x1x1x8xf32>
    %84 = vector.shape_cast %83 : vector<1x1x1x8xf32> to vector<1x8xf32>
    %85 = vector.broadcast %84 : vector<1x8xf32> to vector<8x8xf32>
    %86 = arith.addf %82, %85 : vector<8x8xf32>
    %c1_54 = arith.constant 1 : index
    %c1_55 = arith.constant 1 : index
    %c0_56 = arith.constant 0 : index
    %c0_57 = arith.constant 0 : index
    %87 = vector.load %arg3[%c1_54, %c1_55, %c0_56, %c0_57] : memref<3x4x32x8xbf16, #tpu.memory_space<vmem>>, vector<1x1x32x8xbf16>
    %88 = vector.shape_cast %87 : vector<1x1x32x8xbf16> to vector<32x8xbf16>
    %cst_58 = arith.constant dense<0.000000e+00> : vector<8x8xf32>
    %89 = tpu.matmul %34, %88, %cst_58 {dimension_numbers = #tpu.dot_dimension_numbers<[1], [0], [0], [1], [0, 0, 1, 1], [], []>} : vector<8x32xbf16>, vector<32x8xbf16>, vector<8x8xf32> -> vector<8x8xf32>
    %c1_59 = arith.constant 1 : index
    %c1_60 = arith.constant 1 : index
    %c0_61 = arith.constant 0 : index
    %c0_62 = arith.constant 0 : index
    %90 = vector.load %arg4[%c1_59, %c1_60, %c0_61, %c0_62] : memref<3x4x1x8xf32, #tpu.memory_space<vmem>>, vector<1x1x1x8xf32>
    %91 = vector.shape_cast %90 : vector<1x1x1x8xf32> to vector<1x8xf32>
    %92 = vector.broadcast %91 : vector<1x8xf32> to vector<8x8xf32>
    %93 = arith.addf %89, %92 : vector<8x8xf32>
    %c2_63 = arith.constant 2 : index
    %c1_64 = arith.constant 1 : index
    %c0_65 = arith.constant 0 : index
    %c0_66 = arith.constant 0 : index
    %94 = vector.load %arg3[%c2_63, %c1_64, %c0_65, %c0_66] : memref<3x4x32x8xbf16, #tpu.memory_space<vmem>>, vector<1x1x32x8xbf16>
    %95 = vector.shape_cast %94 : vector<1x1x32x8xbf16> to vector<32x8xbf16>
    %cst_67 = arith.constant dense<0.000000e+00> : vector<8x8xf32>
    %96 = tpu.matmul %34, %95, %cst_67 {dimension_numbers = #tpu.dot_dimension_numbers<[1], [0], [0], [1], [0, 0, 1, 1], [], []>} : vector<8x32xbf16>, vector<32x8xbf16>, vector<8x8xf32> -> vector<8x8xf32>
    %c2_68 = arith.constant 2 : index
    %c1_69 = arith.constant 1 : index
    %c0_70 = arith.constant 0 : index
    %c0_71 = arith.constant 0 : index
    %97 = vector.load %arg4[%c2_68, %c1_69, %c0_70, %c0_71] : memref<3x4x1x8xf32, #tpu.memory_space<vmem>>, vector<1x1x1x8xf32>
    %98 = vector.shape_cast %97 : vector<1x1x1x8xf32> to vector<1x8xf32>
    %99 = vector.broadcast %98 : vector<1x8xf32> to vector<8x8xf32>
    %100 = arith.addf %96, %99 : vector<8x8xf32>
    %cst_72 = arith.constant 0.353553385 : f32
    %101 = vector.broadcast %cst_72 : f32 to vector<8x8xf32>
    %102 = arith.mulf %86, %101 : vector<8x8xf32>
    %103 = arith.truncf %102 : vector<8x8xf32> to vector<8x8xbf16>
    %104 = arith.truncf %93 : vector<8x8xf32> to vector<8x8xbf16>
    %cst_73 = arith.constant dense<0.000000e+00> : vector<8x8xf32>
    %105 = tpu.matmul %103, %104, %cst_73 {dimension_numbers = #tpu.dot_dimension_numbers<[1], [1], [0], [0], [0, 0, 1, 0], [], []>} : vector<8x8xbf16>, vector<8x8xbf16>, vector<8x8xf32> -> vector<8x8xf32>
    %cst_74 = arith.constant dense<0xFF800000> : vector<8xf32>
    %106 = vector.multi_reduction <maximumf>, %105, %cst_74 [1] : vector<8x8xf32> to vector<8xf32>
    %107 = vector.shape_cast %106 : vector<8xf32> to vector<8x1xf32>
    %108 = vector.broadcast %107 : vector<8x1xf32> to vector<8x8xf32>
    %109 = arith.subf %105, %108 : vector<8x8xf32>
    %110 = math.exp %109 : vector<8x8xf32>
    %cst_75 = arith.constant dense<0.000000e+00> : vector<8xf32>
    %111 = vector.multi_reduction <add>, %110, %cst_75 [1] : vector<8x8xf32> to vector<8xf32>
    %112 = vector.shape_cast %111 : vector<8xf32> to vector<8x1xf32>
    %113 = tpu.reciprocal %112 {approx = true} : vector<8x1xf32> -> vector<8x1xf32>
    %114 = vector.broadcast %113 : vector<8x1xf32> to vector<8x8xf32>
    %115 = arith.mulf %110, %114 : vector<8x8xf32>
    %116 = arith.truncf %115 : vector<8x8xf32> to vector<8x8xbf16>
    %117 = arith.truncf %100 : vector<8x8xf32> to vector<8x8xbf16>
    %cst_76 = arith.constant dense<0.000000e+00> : vector<8x8xf32>
    %118 = tpu.matmul %116, %117, %cst_76 {dimension_numbers = #tpu.dot_dimension_numbers<[1], [0], [0], [1], [0, 0, 1, 1], [], []>} : vector<8x8xbf16>, vector<8x8xbf16>, vector<8x8xf32> -> vector<8x8xf32>
    %119 = arith.truncf %118 : vector<8x8xf32> to vector<8x8xbf16>
    %c1_77 = arith.constant 1 : index
    %c0_78 = arith.constant 0 : index
    %c0_79 = arith.constant 0 : index
    %120 = vector.load %arg5[%c1_77, %c0_78, %c0_79] : memref<4x8x32xbf16, #tpu.memory_space<vmem>>, vector<1x8x32xbf16>
    %121 = vector.shape_cast %120 : vector<1x8x32xbf16> to vector<8x32xbf16>
    %cst_80 = arith.constant dense<0.000000e+00> : vector<8x32xf32>
    %122 = tpu.matmul %119, %121, %cst_80 {dimension_numbers = #tpu.dot_dimension_numbers<[1], [0], [0], [1], [0, 0, 1, 1], [], []>} : vector<8x8xbf16>, vector<8x32xbf16>, vector<8x32xf32> -> vector<8x32xf32>
    %123 = arith.addf %79, %122 : vector<8x32xf32>
    %c0_81 = arith.constant 0 : index
    %c2_82 = arith.constant 2 : index
    %c0_83 = arith.constant 0 : index
    %c0_84 = arith.constant 0 : index
    %124 = vector.load %arg3[%c0_81, %c2_82, %c0_83, %c0_84] : memref<3x4x32x8xbf16, #tpu.memory_space<vmem>>, vector<1x1x32x8xbf16>
    %125 = vector.shape_cast %124 : vector<1x1x32x8xbf16> to vector<32x8xbf16>
    %cst_85 = arith.constant dense<0.000000e+00> : vector<8x8xf32>
    %126 = tpu.matmul %34, %125, %cst_85 {dimension_numbers = #tpu.dot_dimension_numbers<[1], [0], [0], [1], [0, 0, 1, 1], [], []>} : vector<8x32xbf16>, vector<32x8xbf16>, vector<8x8xf32> -> vector<8x8xf32>
    %c0_86 = arith.constant 0 : index
    %c2_87 = arith.constant 2 : index
    %c0_88 = arith.constant 0 : index
    %c0_89 = arith.constant 0 : index
    %127 = vector.load %arg4[%c0_86, %c2_87, %c0_88, %c0_89] : memref<3x4x1x8xf32, #tpu.memory_space<vmem>>, vector<1x1x1x8xf32>
    %128 = vector.shape_cast %127 : vector<1x1x1x8xf32> to vector<1x8xf32>
    %129 = vector.broadcast %128 : vector<1x8xf32> to vector<8x8xf32>
    %130 = arith.addf %126, %129 : vector<8x8xf32>
    %c1_90 = arith.constant 1 : index
    %c2_91 = arith.constant 2 : index
    %c0_92 = arith.constant 0 : index
    %c0_93 = arith.constant 0 : index
    %131 = vector.load %arg3[%c1_90, %c2_91, %c0_92, %c0_93] : memref<3x4x32x8xbf16, #tpu.memory_space<vmem>>, vector<1x1x32x8xbf16>
    %132 = vector.shape_cast %131 : vector<1x1x32x8xbf16> to vector<32x8xbf16>
    %cst_94 = arith.constant dense<0.000000e+00> : vector<8x8xf32>
    %133 = tpu.matmul %34, %132, %cst_94 {dimension_numbers = #tpu.dot_dimension_numbers<[1], [0], [0], [1], [0, 0, 1, 1], [], []>} : vector<8x32xbf16>, vector<32x8xbf16>, vector<8x8xf32> -> vector<8x8xf32>
    %c1_95 = arith.constant 1 : index
    %c2_96 = arith.constant 2 : index
    %c0_97 = arith.constant 0 : index
    %c0_98 = arith.constant 0 : index
    %134 = vector.load %arg4[%c1_95, %c2_96, %c0_97, %c0_98] : memref<3x4x1x8xf32, #tpu.memory_space<vmem>>, vector<1x1x1x8xf32>
    %135 = vector.shape_cast %134 : vector<1x1x1x8xf32> to vector<1x8xf32>
    %136 = vector.broadcast %135 : vector<1x8xf32> to vector<8x8xf32>
    %137 = arith.addf %133, %136 : vector<8x8xf32>
    %c2_99 = arith.constant 2 : index
    %c2_100 = arith.constant 2 : index
    %c0_101 = arith.constant 0 : index
    %c0_102 = arith.constant 0 : index
    %138 = vector.load %arg3[%c2_99, %c2_100, %c0_101, %c0_102] : memref<3x4x32x8xbf16, #tpu.memory_space<vmem>>, vector<1x1x32x8xbf16>
    %139 = vector.shape_cast %138 : vector<1x1x32x8xbf16> to vector<32x8xbf16>
    %cst_103 = arith.constant dense<0.000000e+00> : vector<8x8xf32>
    %140 = tpu.matmul %34, %139, %cst_103 {dimension_numbers = #tpu.dot_dimension_numbers<[1], [0], [0], [1], [0, 0, 1, 1], [], []>} : vector<8x32xbf16>, vector<32x8xbf16>, vector<8x8xf32> -> vector<8x8xf32>
    %c2_104 = arith.constant 2 : index
    %c2_105 = arith.constant 2 : index
    %c0_106 = arith.constant 0 : index
    %c0_107 = arith.constant 0 : index
    %141 = vector.load %arg4[%c2_104, %c2_105, %c0_106, %c0_107] : memref<3x4x1x8xf32, #tpu.memory_space<vmem>>, vector<1x1x1x8xf32>
    %142 = vector.shape_cast %141 : vector<1x1x1x8xf32> to vector<1x8xf32>
    %143 = vector.broadcast %142 : vector<1x8xf32> to vector<8x8xf32>
    %144 = arith.addf %140, %143 : vector<8x8xf32>
    %cst_108 = arith.constant 0.353553385 : f32
    %145 = vector.broadcast %cst_108 : f32 to vector<8x8xf32>
    %146 = arith.mulf %130, %145 : vector<8x8xf32>
    %147 = arith.truncf %146 : vector<8x8xf32> to vector<8x8xbf16>
    %148 = arith.truncf %137 : vector<8x8xf32> to vector<8x8xbf16>
    %cst_109 = arith.constant dense<0.000000e+00> : vector<8x8xf32>
    %149 = tpu.matmul %147, %148, %cst_109 {dimension_numbers = #tpu.dot_dimension_numbers<[1], [1], [0], [0], [0, 0, 1, 0], [], []>} : vector<8x8xbf16>, vector<8x8xbf16>, vector<8x8xf32> -> vector<8x8xf32>
    %cst_110 = arith.constant dense<0xFF800000> : vector<8xf32>
    %150 = vector.multi_reduction <maximumf>, %149, %cst_110 [1] : vector<8x8xf32> to vector<8xf32>
    %151 = vector.shape_cast %150 : vector<8xf32> to vector<8x1xf32>
    %152 = vector.broadcast %151 : vector<8x1xf32> to vector<8x8xf32>
    %153 = arith.subf %149, %152 : vector<8x8xf32>
    %154 = math.exp %153 : vector<8x8xf32>
    %cst_111 = arith.constant dense<0.000000e+00> : vector<8xf32>
    %155 = vector.multi_reduction <add>, %154, %cst_111 [1] : vector<8x8xf32> to vector<8xf32>
    %156 = vector.shape_cast %155 : vector<8xf32> to vector<8x1xf32>
    %157 = tpu.reciprocal %156 {approx = true} : vector<8x1xf32> -> vector<8x1xf32>
    %158 = vector.broadcast %157 : vector<8x1xf32> to vector<8x8xf32>
    %159 = arith.mulf %154, %158 : vector<8x8xf32>
    %160 = arith.truncf %159 : vector<8x8xf32> to vector<8x8xbf16>
    %161 = arith.truncf %144 : vector<8x8xf32> to vector<8x8xbf16>
    %cst_112 = arith.constant dense<0.000000e+00> : vector<8x8xf32>
    %162 = tpu.matmul %160, %161, %cst_112 {dimension_numbers = #tpu.dot_dimension_numbers<[1], [0], [0], [1], [0, 0, 1, 1], [], []>} : vector<8x8xbf16>, vector<8x8xbf16>, vector<8x8xf32> -> vector<8x8xf32>
    %163 = arith.truncf %162 : vector<8x8xf32> to vector<8x8xbf16>
    %c2_113 = arith.constant 2 : index
    %c0_114 = arith.constant 0 : index
    %c0_115 = arith.constant 0 : index
    %164 = vector.load %arg5[%c2_113, %c0_114, %c0_115] : memref<4x8x32xbf16, #tpu.memory_space<vmem>>, vector<1x8x32xbf16>
    %165 = vector.shape_cast %164 : vector<1x8x32xbf16> to vector<8x32xbf16>
    %cst_116 = arith.constant dense<0.000000e+00> : vector<8x32xf32>
    %166 = tpu.matmul %163, %165, %cst_116 {dimension_numbers = #tpu.dot_dimension_numbers<[1], [0], [0], [1], [0, 0, 1, 1], [], []>} : vector<8x8xbf16>, vector<8x32xbf16>, vector<8x32xf32> -> vector<8x32xf32>
    %167 = arith.addf %123, %166 : vector<8x32xf32>
    %c0_117 = arith.constant 0 : index
    %c3 = arith.constant 3 : index
    %c0_118 = arith.constant 0 : index
    %c0_119 = arith.constant 0 : index
    %168 = vector.load %arg3[%c0_117, %c3, %c0_118, %c0_119] : memref<3x4x32x8xbf16, #tpu.memory_space<vmem>>, vector<1x1x32x8xbf16>
    %169 = vector.shape_cast %168 : vector<1x1x32x8xbf16> to vector<32x8xbf16>
    %cst_120 = arith.constant dense<0.000000e+00> : vector<8x8xf32>
    %170 = tpu.matmul %34, %169, %cst_120 {dimension_numbers = #tpu.dot_dimension_numbers<[1], [0], [0], [1], [0, 0, 1, 1], [], []>} : vector<8x32xbf16>, vector<32x8xbf16>, vector<8x8xf32> -> vector<8x8xf32>
    %c0_121 = arith.constant 0 : index
    %c3_122 = arith.constant 3 : index
    %c0_123 = arith.constant 0 : index
    %c0_124 = arith.constant 0 : index
    %171 = vector.load %arg4[%c0_121, %c3_122, %c0_123, %c0_124] : memref<3x4x1x8xf32, #tpu.memory_space<vmem>>, vector<1x1x1x8xf32>
    %172 = vector.shape_cast %171 : vector<1x1x1x8xf32> to vector<1x8xf32>
    %173 = vector.broadcast %172 : vector<1x8xf32> to vector<8x8xf32>
    %174 = arith.addf %170, %173 : vector<8x8xf32>
    %c1_125 = arith.constant 1 : index
    %c3_126 = arith.constant 3 : index
    %c0_127 = arith.constant 0 : index
    %c0_128 = arith.constant 0 : index
    %175 = vector.load %arg3[%c1_125, %c3_126, %c0_127, %c0_128] : memref<3x4x32x8xbf16, #tpu.memory_space<vmem>>, vector<1x1x32x8xbf16>
    %176 = vector.shape_cast %175 : vector<1x1x32x8xbf16> to vector<32x8xbf16>
    %cst_129 = arith.constant dense<0.000000e+00> : vector<8x8xf32>
    %177 = tpu.matmul %34, %176, %cst_129 {dimension_numbers = #tpu.dot_dimension_numbers<[1], [0], [0], [1], [0, 0, 1, 1], [], []>} : vector<8x32xbf16>, vector<32x8xbf16>, vector<8x8xf32> -> vector<8x8xf32>
    %c1_130 = arith.constant 1 : index
    %c3_131 = arith.constant 3 : index
    %c0_132 = arith.constant 0 : index
    %c0_133 = arith.constant 0 : index
    %178 = vector.load %arg4[%c1_130, %c3_131, %c0_132, %c0_133] : memref<3x4x1x8xf32, #tpu.memory_space<vmem>>, vector<1x1x1x8xf32>
    %179 = vector.shape_cast %178 : vector<1x1x1x8xf32> to vector<1x8xf32>
    %180 = vector.broadcast %179 : vector<1x8xf32> to vector<8x8xf32>
    %181 = arith.addf %177, %180 : vector<8x8xf32>
    %c2_134 = arith.constant 2 : index
    %c3_135 = arith.constant 3 : index
    %c0_136 = arith.constant 0 : index
    %c0_137 = arith.constant 0 : index
    %182 = vector.load %arg3[%c2_134, %c3_135, %c0_136, %c0_137] : memref<3x4x32x8xbf16, #tpu.memory_space<vmem>>, vector<1x1x32x8xbf16>
    %183 = vector.shape_cast %182 : vector<1x1x32x8xbf16> to vector<32x8xbf16>
    %cst_138 = arith.constant dense<0.000000e+00> : vector<8x8xf32>
    %184 = tpu.matmul %34, %183, %cst_138 {dimension_numbers = #tpu.dot_dimension_numbers<[1], [0], [0], [1], [0, 0, 1, 1], [], []>} : vector<8x32xbf16>, vector<32x8xbf16>, vector<8x8xf32> -> vector<8x8xf32>
    %c2_139 = arith.constant 2 : index
    %c3_140 = arith.constant 3 : index
    %c0_141 = arith.constant 0 : index
    %c0_142 = arith.constant 0 : index
    %185 = vector.load %arg4[%c2_139, %c3_140, %c0_141, %c0_142] : memref<3x4x1x8xf32, #tpu.memory_space<vmem>>, vector<1x1x1x8xf32>
    %186 = vector.shape_cast %185 : vector<1x1x1x8xf32> to vector<1x8xf32>
    %187 = vector.broadcast %186 : vector<1x8xf32> to vector<8x8xf32>
    %188 = arith.addf %184, %187 : vector<8x8xf32>
    %cst_143 = arith.constant 0.353553385 : f32
    %189 = vector.broadcast %cst_143 : f32 to vector<8x8xf32>
    %190 = arith.mulf %174, %189 : vector<8x8xf32>
    %191 = arith.truncf %190 : vector<8x8xf32> to vector<8x8xbf16>
    %192 = arith.truncf %181 : vector<8x8xf32> to vector<8x8xbf16>
    %cst_144 = arith.constant dense<0.000000e+00> : vector<8x8xf32>
    %193 = tpu.matmul %191, %192, %cst_144 {dimension_numbers = #tpu.dot_dimension_numbers<[1], [1], [0], [0], [0, 0, 1, 0], [], []>} : vector<8x8xbf16>, vector<8x8xbf16>, vector<8x8xf32> -> vector<8x8xf32>
    %cst_145 = arith.constant dense<0xFF800000> : vector<8xf32>
    %194 = vector.multi_reduction <maximumf>, %193, %cst_145 [1] : vector<8x8xf32> to vector<8xf32>
    %195 = vector.shape_cast %194 : vector<8xf32> to vector<8x1xf32>
    %196 = vector.broadcast %195 : vector<8x1xf32> to vector<8x8xf32>
    %197 = arith.subf %193, %196 : vector<8x8xf32>
    %198 = math.exp %197 : vector<8x8xf32>
    %cst_146 = arith.constant dense<0.000000e+00> : vector<8xf32>
    %199 = vector.multi_reduction <add>, %198, %cst_146 [1] : vector<8x8xf32> to vector<8xf32>
    %200 = vector.shape_cast %199 : vector<8xf32> to vector<8x1xf32>
    %201 = tpu.reciprocal %200 {approx = true} : vector<8x1xf32> -> vector<8x1xf32>
    %202 = vector.broadcast %201 : vector<8x1xf32> to vector<8x8xf32>
    %203 = arith.mulf %198, %202 : vector<8x8xf32>
    %204 = arith.truncf %203 : vector<8x8xf32> to vector<8x8xbf16>
    %205 = arith.truncf %188 : vector<8x8xf32> to vector<8x8xbf16>
    %cst_147 = arith.constant dense<0.000000e+00> : vector<8x8xf32>
    %206 = tpu.matmul %204, %205, %cst_147 {dimension_numbers = #tpu.dot_dimension_numbers<[1], [0], [0], [1], [0, 0, 1, 1], [], []>} : vector<8x8xbf16>, vector<8x8xbf16>, vector<8x8xf32> -> vector<8x8xf32>
    %207 = arith.truncf %206 : vector<8x8xf32> to vector<8x8xbf16>
    %c3_148 = arith.constant 3 : index
    %c0_149 = arith.constant 0 : index
    %c0_150 = arith.constant 0 : index
    %208 = vector.load %arg5[%c3_148, %c0_149, %c0_150] : memref<4x8x32xbf16, #tpu.memory_space<vmem>>, vector<1x8x32xbf16>
    %209 = vector.shape_cast %208 : vector<1x8x32xbf16> to vector<8x32xbf16>
    %cst_151 = arith.constant dense<0.000000e+00> : vector<8x32xf32>
    %210 = tpu.matmul %207, %209, %cst_151 {dimension_numbers = #tpu.dot_dimension_numbers<[1], [0], [0], [1], [0, 0, 1, 1], [], []>} : vector<8x8xbf16>, vector<8x32xbf16>, vector<8x32xf32> -> vector<8x32xf32>
    %211 = arith.addf %167, %210 : vector<8x32xf32>
    %c0_152 = arith.constant 0 : index
    %c0_153 = arith.constant 0 : index
    %212 = vector.load %arg6[%c0_152, %c0_153] : memref<1x32xf32, #tpu.memory_space<vmem>>, vector<1x32xf32>
    %213 = vector.broadcast %212 : vector<1x32xf32> to vector<8x32xf32>
    %214 = arith.addf %211, %213 : vector<8x32xf32>
    %215 = vector.broadcast %6 : vector<1x32xf32> to vector<8x32xf32>
    %216 = arith.mulf %215, %214 : vector<8x32xf32>
    %217 = arith.addf %1, %216 : vector<8x32xf32>
    %cst_154 = arith.constant dense<0.000000e+00> : vector<8xf32>
    %218 = vector.multi_reduction <add>, %217, %cst_154 [1] : vector<8x32xf32> to vector<8xf32>
    %219 = vector.shape_cast %218 : vector<8xf32> to vector<8x1xf32>
    %cst_155 = arith.constant 3.200000e+01 : f32
    %220 = vector.broadcast %cst_155 : f32 to vector<8x1xf32>
    %221 = arith.divf %219, %220 : vector<8x1xf32>
    %222 = vector.broadcast %221 : vector<8x1xf32> to vector<8x32xf32>
    %223 = arith.subf %217, %222 : vector<8x32xf32>
    %224 = arith.mulf %223, %223 : vector<8x32xf32>
    %cst_156 = arith.constant dense<0.000000e+00> : vector<8xf32>
    %225 = vector.multi_reduction <add>, %224, %cst_156 [1] : vector<8x32xf32> to vector<8xf32>
    %226 = vector.shape_cast %225 : vector<8xf32> to vector<8x1xf32>
    %cst_157 = arith.constant 3.200000e+01 : f32
    %227 = vector.broadcast %cst_157 : f32 to vector<8x1xf32>
    %228 = arith.divf %226, %227 : vector<8x1xf32>
    %229 = vector.broadcast %221 : vector<8x1xf32> to vector<8x32xf32>
    %230 = arith.subf %217, %229 : vector<8x32xf32>
    %cst_158 = arith.constant 9.99999997E-7 : f32
    %231 = vector.broadcast %cst_158 : f32 to vector<8x1xf32>
    %232 = arith.addf %228, %231 : vector<8x1xf32>
    %233 = math.rsqrt %232 : vector<8x1xf32>
    %234 = vector.broadcast %233 : vector<8x1xf32> to vector<8x32xf32>
    %235 = arith.mulf %230, %234 : vector<8x32xf32>
    %cst_159 = arith.constant 1.000000e+00 : f32
    %236 = vector.broadcast %cst_159 : f32 to vector<1x32xf32>
    %237 = arith.addf %236, %8 : vector<1x32xf32>
    %238 = vector.broadcast %237 : vector<1x32xf32> to vector<8x32xf32>
    %239 = arith.mulf %235, %238 : vector<8x32xf32>
    %240 = vector.broadcast %7 : vector<1x32xf32> to vector<8x32xf32>
    %241 = arith.addf %239, %240 : vector<8x32xf32>
    %242 = arith.truncf %241 : vector<8x32xf32> to vector<8x32xbf16>
    %c0_160 = arith.constant 0 : index
    %c0_161 = arith.constant 0 : index
    %243 = vector.load %arg7[%c0_160, %c0_161] : memref<32x128xbf16, #tpu.memory_space<vmem>>, vector<32x128xbf16>
    %cst_162 = arith.constant dense<0.000000e+00> : vector<8x128xf32>
    %244 = tpu.matmul %242, %243, %cst_162 {dimension_numbers = #tpu.dot_dimension_numbers<[1], [0], [0], [1], [0, 0, 1, 1], [], []>} : vector<8x32xbf16>, vector<32x128xbf16>, vector<8x128xf32> -> vector<8x128xf32>
    %c0_163 = arith.constant 0 : index
    %c0_164 = arith.constant 0 : index
    %245 = vector.load %arg8[%c0_163, %c0_164] : memref<1x128xf32, #tpu.memory_space<vmem>>, vector<1x128xf32>
    %246 = vector.broadcast %245 : vector<1x128xf32> to vector<8x128xf32>
    %247 = arith.addf %244, %246 : vector<8x128xf32>
    %cst_165 = arith.constant 5.000000e-01 : f32
    %248 = vector.broadcast %cst_165 : f32 to vector<8x128xf32>
    %249 = arith.mulf %248, %247 : vector<8x128xf32>
    %cst_166 = arith.constant 4.471500e-02 : f32
    %250 = vector.broadcast %cst_166 : f32 to vector<8x128xf32>
    %251 = arith.mulf %250, %247 : vector<8x128xf32>
    %252 = arith.mulf %251, %247 : vector<8x128xf32>
    %253 = arith.mulf %252, %247 : vector<8x128xf32>
    %254 = arith.addf %247, %253 : vector<8x128xf32>
    %cst_167 = arith.constant 0.797884583 : f32
    %255 = vector.broadcast %cst_167 : f32 to vector<8x128xf32>
    %256 = arith.mulf %255, %254 : vector<8x128xf32>
    %257 = math.tanh %256 : vector<8x128xf32>
    %cst_168 = arith.constant 1.000000e+00 : f32
    %258 = vector.broadcast %cst_168 : f32 to vector<8x128xf32>
    %259 = arith.addf %258, %257 : vector<8x128xf32>
    %260 = arith.mulf %249, %259 : vector<8x128xf32>
    %261 = arith.truncf %260 : vector<8x128xf32> to vector<8x128xbf16>
    %c0_169 = arith.constant 0 : index
    %c0_170 = arith.constant 0 : index
    %262 = vector.load %arg9[%c0_169, %c0_170] : memref<128x32xbf16, #tpu.memory_space<vmem>>, vector<128x32xbf16>
    %cst_171 = arith.constant dense<0.000000e+00> : vector<8x32xf32>
    %263 = tpu.matmul %261, %262, %cst_171 {dimension_numbers = #tpu.dot_dimension_numbers<[1], [0], [0], [1], [0, 0, 1, 1], [], []>} : vector<8x128xbf16>, vector<128x32xbf16>, vector<8x32xf32> -> vector<8x32xf32>
    %c0_172 = arith.constant 0 : index
    %c0_173 = arith.constant 0 : index
    %264 = vector.load %arg10[%c0_172, %c0_173] : memref<1x32xf32, #tpu.memory_space<vmem>>, vector<1x32xf32>
    %265 = vector.broadcast %264 : vector<1x32xf32> to vector<8x32xf32>
    %266 = arith.addf %263, %265 : vector<8x32xf32>
    %267 = vector.broadcast %9 : vector<1x32xf32> to vector<8x32xf32>
    %268 = arith.mulf %267, %266 : vector<8x32xf32>
    %269 = arith.addf %217, %268 : vector<8x32xf32>
    %c0_174 = arith.constant 0 : index
    %c0_175 = arith.constant 0 : index
    %c0_176 = arith.constant 0 : index
    %270 = vector.load %arg11[%c0_174, %c0_175, %c0_176] : memref<1x8x32xf32, #tpu.memory_space<vmem>>, vector<1x8x32xf32>
    %271 = vector.shape_cast %270 : vector<1x8x32xf32> to vector<8x32xf32>
    %272 = vector.shape_cast %269 : vector<8x32xf32> to vector<1x8x32xf32>
    tpu.vector_store %arg11[%c0_174, %c0_175, %c0_176], %272 {strides = array<i32>} : memref<1x8x32xf32, #tpu.memory_space<vmem>>, vector<1x8x32xf32>,
    return
  }
  func.func @transform_0(%arg0: i32) -> (i32, i32, i32) {
    %c0_i32 = arith.constant 0 : i32
    %c0_i32_0 = arith.constant 0 : i32
    %c0_i32_1 = arith.constant 0 : i32
    return %arg0, %c0_i32, %c0_i32_0 : i32, i32, i32
  }
  func.func @transform_1(%arg0: i32) -> (i32, i32, i32) {
    %c0_i32 = arith.constant 0 : i32
    %c0_i32_0 = arith.constant 0 : i32
    %c0_i32_1 = arith.constant 0 : i32
    return %arg0, %c0_i32, %c0_i32_0 : i32, i32, i32
  }
  func.func @transform_2(%arg0: i32) -> (i32, i32, i32, i32) {
    %c0_i32 = arith.constant 0 : i32
    %c0_i32_0 = arith.constant 0 : i32
    %c0_i32_1 = arith.constant 0 : i32
    %c0_i32_2 = arith.constant 0 : i32
    %c0_i32_3 = arith.constant 0 : i32
    return %c0_i32, %c0_i32_0, %c0_i32_1, %c0_i32_2 : i32, i32, i32, i32
  }
  func.func @transform_3(%arg0: i32) -> (i32, i32, i32, i32) {
    %c0_i32 = arith.constant 0 : i32
    %c0_i32_0 = arith.constant 0 : i32
    %c0_i32_1 = arith.constant 0 : i32
    %c0_i32_2 = arith.constant 0 : i32
    %c0_i32_3 = arith.constant 0 : i32
    return %c0_i32, %c0_i32_0, %c0_i32_1, %c0_i32_2 : i32, i32, i32, i32
  }
  func.func @transform_4(%arg0: i32) -> (i32, i32, i32) {
    %c0_i32 = arith.constant 0 : i32
    %c0_i32_0 = arith.constant 0 : i32
    %c0_i32_1 = arith.constant 0 : i32
    %c0_i32_2 = arith.constant 0 : i32
    return %c0_i32, %c0_i32_0, %c0_i32_1 : i32, i32, i32
  }
  func.func @transform_5(%arg0: i32) -> (i32, i32) {
    %c0_i32 = arith.constant 0 : i32
    %c0_i32_0 = arith.constant 0 : i32
    %c0_i32_1 = arith.constant 0 : i32
    return %c0_i32, %c0_i32_0 : i32, i32
  }
  func.func @transform_6(%arg0: i32) -> (i32, i32) {
    %c0_i32 = arith.constant 0 : i32
    %c0_i32_0 = arith.constant 0 : i32
    %c0_i32_1 = arith.constant 0 : i32
    return %c0_i32, %c0_i32_0 : i32, i32
  }
  func.func @transform_7(%arg0: i32) -> (i32, i32) {
    %c0_i32 = arith.constant 0 : i32
    %c0_i32_0 = arith.constant 0 : i32
    %c0_i32_1 = arith.constant 0 : i32
    return %c0_i32, %c0_i32_0 : i32, i32
  }
  func.func @transform_8(%arg0: i32) -> (i32, i32) {
    %c0_i32 = arith.constant 0 : i32
    %c0_i32_0 = arith.constant 0 : i32
    %c0_i32_1 = arith.constant 0 : i32
    return %c0_i32, %c0_i32_0 : i32, i32
  }
  func.func @transform_9(%arg0: i32) -> (i32, i32) {
    %c0_i32 = arith.constant 0 : i32
    %c0_i32_0 = arith.constant 0 : i32
    %c0_i32_1 = arith.constant 0 : i32
    return %c0_i32, %c0_i32_0 : i32, i32
  }
  func.func @transform_10(%arg0: i32) -> (i32, i32, i32) {
    %c0_i32 = arith.constant 0 : i32
    %c0_i32_0 = arith.constant 0 : i32
    %c0_i32_1 = arith.constant 0 : i32
    return %arg0, %c0_i32, %c0_i32_0 : i32, i32, i32
  }
}

module attributes {stable_mosaic.version = 11 : i64} {
  func.func @kernel(%arg0: i32, %arg1: memref<1x8x32xf32, #tpu.memory_space<vmem>>, %arg2: memref<1x6x32xf32, #tpu.memory_space<vmem>>, %arg3: memref<3x4x32x8xbf16, #tpu.memory_space<vmem>>, %arg4: memref<3x4x1x8xf32, #tpu.memory_space<vmem>>, %arg5: memref<4x8x32xbf16, #tpu.memory_space<vmem>>, %arg6: memref<1x32xf32, #tpu.memory_space<vmem>>, %arg7: memref<32x128xbf16, #tpu.memory_space<vmem>>, %arg8: memref<1x128xf32, #tpu.memory_space<vmem>>, %arg9: memref<128x32xbf16, #tpu.memory_space<vmem>>, %arg10: memref<1x32xf32, #tpu.memory_space<vmem>>, %arg11: memref<1x8x32xf32, #tpu.memory_space<vmem>>) attributes {dimension_semantics = [#tpu.dimension_semantics<parallel>], iteration_bounds = array<i64: 2>, scalar_prefetch = 0 : i64, scratch_operands = 0 : i64, tpu.core_type = #tpu.core_type<tc>, window_params = [{transform_indices = @transform_0, window_bounds = array<i64: 1, 8, 32>}, {transform_indices = @transform_1, window_bounds = array<i64: 1, 6, 32>}, {pipeline_mode = #tpu.pipeline_mode<synchronous>, transform_indices = @transform_2, window_bounds = array<i64: 3, 4, 32, 8>}, {pipeline_mode = #tpu.pipeline_mode<synchronous>, transform_indices = @transform_3, window_bounds = array<i64: 3, 4, 1, 8>}, {pipeline_mode = #tpu.pipeline_mode<synchronous>, transform_indices = @transform_4, window_bounds = array<i64: 4, 8, 32>}, {pipeline_mode = #tpu.pipeline_mode<synchronous>, transform_indices = @transform_5, window_bounds = array<i64: 1, 32>}, {pipeline_mode = #tpu.pipeline_mode<synchronous>, transform_indices = @transform_6, window_bounds = array<i64: 32, 128>}, {pipeline_mode = #tpu.pipeline_mode<synchronous>, transform_indices = @transform_7, window_bounds = array<i64: 1, 128>}, {pipeline_mode = #tpu.pipeline_mode<synchronous>, transform_indices = @transform_8, window_bounds = array<i64: 128, 32>}, {pipeline_mode = #tpu.pipeline_mode<synchronous>, transform_indices = @transform_9, window_bounds = array<i64: 1, 32>}, {transform_indices = @transform_10, window_bounds = array<i64: 1, 8, 32>}]} {
    %c0 = arith.constant 0 : index
    %c0_0 = arith.constant 0 : index
    %c0_1 = arith.constant 0 : index
    %0 = vector.load %arg1[%c0, %c0_0, %c0_1] : memref<1x8x32xf32, #tpu.memory_space<vmem>>, vector<1x8x32xf32>
    %1 = vector.shape_cast %0 : vector<1x8x32xf32> to vector<8x32xf32>
    %c0_2 = arith.constant 0 : index
    %c0_3 = arith.constant 0 : index
    %c0_4 = arith.constant 0 : index
    %2 = vector.load %arg2[%c0_2, %c0_3, %c0_4] : memref<1x6x32xf32, #tpu.memory_space<vmem>>, vector<1x6x32xf32>
    %3 = vector.shape_cast %2 : vector<1x6x32xf32> to vector<6x32xf32>
    %4 = vector.extract_strided_slice %3 {offsets = [0, 0], sizes = [1, 32], strides = [1, 1]} : vector<6x32xf32> to vector<1x32xf32>
    %5 = vector.extract_strided_slice %3 {offsets = [1, 0], sizes = [1, 32], strides = [1, 1]} : vector<6x32xf32> to vector<1x32xf32>
    %6 = vector.extract_strided_slice %3 {offsets = [2, 0], sizes = [1, 32], strides = [1, 1]} : vector<6x32xf32> to vector<1x32xf32>
    %7 = vector.extract_strided_slice %3 {offsets = [3, 0], sizes = [1, 32], strides = [1, 1]} : vector<6x32xf32> to vector<1x32xf32>
    %8 = vector.extract_strided_slice %3 {offsets = [4, 0], sizes = [1, 32], strides = [1, 1]} : vector<6x32xf32> to vector<1x32xf32>
    %9 = vector.extract_strided_slice %3 {offsets = [5, 0], sizes = [1, 32], strides = [1, 1]} : vector<6x32xf32> to vector<1x32xf32>
    %cst = arith.constant dense<0.000000e+00> : vector<8xf32>
    %10 = vector.multi_reduction <add>, %1, %cst [1] : vector<8x32xf32> to vector<8xf32>
    %11 = vector.shape_cast %10 : vector<8xf32> to vector<8x1xf32>
    %cst_5 = arith.constant 3.200000e+01 : f32
    %12 = vector.broadcast %cst_5 : f32 to vector<8x1xf32>
    %13 = arith.divf %11, %12 : vector<8x1xf32>
    %14 = vector.broadcast %13 : vector<8x1xf32> to vector<8x32xf32>
    %15 = arith.subf %1, %14 : vector<8x32xf32>
    %16 = arith.mulf %15, %15 : vector<8x32xf32>
    %cst_6 = arith.constant dense<0.000000e+00> : vector<8xf32>
    %17 = vector.multi_reduction <add>, %16, %cst_6 [1] : vector<8x32xf32> to vector<8xf32>
    %18 = vector.shape_cast %17 : vector<8xf32> to vector<8x1xf32>
    %cst_7 = arith.constant 3.200000e+01 : f32
    %19 = vector.broadcast %cst_7 : f32 to vector<8x1xf32>
    %20 = arith.divf %18, %19 : vector<8x1xf32>
    %21 = vector.broadcast %13 : vector<8x1xf32> to vector<8x32xf32>
    %22 = arith.subf %1, %21 : vector<8x32xf32>
    %cst_8 = arith.constant 9.99999997E-7 : f32
    %23 = vector.broadcast %cst_8 : f32 to vector<8x1xf32>
    %24 = arith.addf %20, %23 : vector<8x1xf32>
    %25 = math.rsqrt %24 : vector<8x1xf32>
    %26 = vector.broadcast %25 : vector<8x1xf32> to vector<8x32xf32>
    %27 = arith.mulf %22, %26 : vector<8x32xf32>
    %cst_9 = arith.constant 1.000000e+00 : f32
    %28 = vector.broadcast %cst_9 : f32 to vector<1x32xf32>
    %29 = arith.addf %28, %5 : vector<1x32xf32>
    %30 = vector.broadcast %29 : vector<1x32xf32> to vector<8x32xf32>
    %31 = arith.mulf %27, %30 : vector<8x32xf32>
    %32 = vector.broadcast %4 : vector<1x32xf32> to vector<8x32xf32>
    %33 = arith.addf %31, %32 : vector<8x32xf32>
    %34 = arith.truncf %33 : vector<8x32xf32> to vector<8x32xbf16>
    %cst_10 = arith.constant 0.000000e+00 : f32
    %35 = vector.broadcast %cst_10 : f32 to vector<8x32xf32>
    %c0_11 = arith.constant 0 : index
    %c0_12 = arith.constant 0 : index
    %c0_13 = arith.constant 0 : index
    %c0_14 = arith.constant 0 : index
    %36 = vector.load %arg3[%c0_11, %c0_12, %c0_13, %c0_14] : memref<3x4x32x8xbf16, #tpu.memory_space<vmem>>, vector<1x1x32x8xbf16>
    %37 = vector.shape_cast %36 : vector<1x1x32x8xbf16> to vector<32x8xbf16>
    %cst_15 = arith.constant dense<0.000000e+00> : vector<8x8xf32>
    %38 = tpu.matmul %34, %37, %cst_15 {dimension_numbers = #tpu.dot_dimension_numbers<[1], [0], [0], [1], [0, 0, 1, 1], [], []>} : vector<8x32xbf16>, vector<32x8xbf16>, vector<8x8xf32> -> vector<8x8xf32>
    %c0_16 = arith.constant 0 : index
    %c0_17 = arith.constant 0 : index
    %c0_18 = arith.constant 0 : index
    %c0_19 = arith.constant 0 : index
    %39 = vector.load %arg4[%c0_16, %c0_17, %c0_18, %c0_19] : memref<3x4x1x8xf32, #tpu.memory_space<vmem>>, vector<1x1x1x8xf32>
    %40 = vector.shape_cast %39 : vector<1x1x1x8xf32> to vector<1x8xf32>
    %41 = vector.broadcast %40 : vector<1x8xf32> to vector<8x8xf32>
    %42 = arith.addf %38, %41 : vector<8x8xf32>
    %c1 = arith.constant 1 : index
    %c0_20 = arith.constant 0 : index
    %c0_21 = arith.constant 0 : index
    %c0_22 = arith.constant 0 : index
    %43 = vector.load %arg3[%c1, %c0_20, %c0_21, %c0_22] : memref<3x4x32x8xbf16, #tpu.memory_space<vmem>>, vector<1x1x32x8xbf16>
    %44 = vector.shape_cast %43 : vector<1x1x32x8xbf16> to vector<32x8xbf16>
    %cst_23 = arith.constant dense<0.000000e+00> : vector<8x8xf32>
    %45 = tpu.matmul %34, %44, %cst_23 {dimension_numbers = #tpu.dot_dimension_numbers<[1], [0], [0], [1], [0, 0, 1, 1], [], []>} : vector<8x32xbf16>, vector<32x8xbf16>, vector<8x8xf32> -> vector<8x8xf32>
    %c1_24 = arith.constant 1 : index
    %c0_25 = arith.constant 0 : index
    %c0_26 = arith.constant 0 : index
    %c0_27 = arith.constant 0 : index
    %46 = vector.load %arg4[%c1_24, %c0_25, %c0_26, %c0_27] : memref<3x4x1x8xf32, #tpu.memory_space<vmem>>, vector<1x1x1x8xf32>
    %47 = vector.shape_cast %46 : vector<1x1x1x8xf32> to vector<1x8xf32>
    %48 = vector.broadcast %47 : vector<1x8xf32> to vector<8x8xf32>
    %49 = arith.addf %45, %48 : vector<8x8xf32>
    %c2 = arith.constant 2 : index
    %c0_28 = arith.constant 0 : index
    %c0_29 = arith.constant 0 : index
    %c0_30 = arith.constant 0 : index
    %50 = vector.load %arg3[%c2, %c0_28, %c0_29, %c0_30] : memref<3x4x32x8xbf16, #tpu.memory_space<vmem>>, vector<1x1x32x8xbf16>
    %51 = vector.shape_cast %50 : vector<1x1x32x8xbf16> to vector<32x8xbf16>
    %cst_31 = arith.constant dense<0.000000e+00> : vector<8x8xf32>
    %52 = tpu.matmul %34, %51, %cst_31 {dimension_numbers = #tpu.dot_dimension_numbers<[1], [0], [0], [1], [0, 0, 1, 1], [], []>} : vector<8x32xbf16>, vector<32x8xbf16>, vector<8x8xf32> -> vector<8x8xf32>
    %c2_32 = arith.constant 2 : index
    %c0_33 = arith.constant 0 : index
    %c0_34 = arith.constant 0 : index
    %c0_35 = arith.constant 0 : index
    %53 = vector.load %arg4[%c2_32, %c0_33, %c0_34, %c0_35] : memref<3x4x1x8xf32, #tpu.memory_space<vmem>>, vector<1x1x1x8xf32>
    %54 = vector.shape_cast %53 : vector<1x1x1x8xf32> to vector<1x8xf32>
    %55 = vector.broadcast %54 : vector<1x8xf32> to vector<8x8xf32>
    %56 = arith.addf %52, %55 : vector<8x8xf32>
    %cst_36 = arith.constant 0.353553385 : f32
    %57 = vector.broadcast %cst_36 : f32 to vector<8x8xf32>
    %58 = arith.mulf %42, %57 : vector<8x8xf32>
    %59 = arith.truncf %58 : vector<8x8xf32> to vector<8x8xbf16>
    %60 = arith.truncf %49 : vector<8x8xf32> to vector<8x8xbf16>
    %cst_37 = arith.constant dense<0.000000e+00> : vector<8x8xf32>
    %61 = tpu.matmul %59, %60, %cst_37 {dimension_numbers = #tpu.dot_dimension_numbers<[1], [1], [0], [0], [0, 0, 1, 0], [], []>} : vector<8x8xbf16>, vector<8x8xbf16>, vector<8x8xf32> -> vector<8x8xf32>
    %cst_38 = arith.constant dense<0xFF800000> : vector<8xf32>
    %62 = vector.multi_reduction <maximumf>, %61, %cst_38 [1] : vector<8x8xf32> to vector<8xf32>
    %63 = vector.shape_cast %62 : vector<8xf32> to vector<8x1xf32>
    %64 = vector.broadcast %63 : vector<8x1xf32> to vector<8x8xf32>
    %65 = arith.subf %61, %64 : vector<8x8xf32>
    %66 = math.exp %65 : vector<8x8xf32>
    %cst_39 = arith.constant dense<0.000000e+00> : vector<8xf32>
    %67 = vector.multi_reduction <add>, %66, %cst_39 [1] : vector<8x8xf32> to vector<8xf32>
    %68 = vector.shape_cast %67 : vector<8xf32> to vector<8x1xf32>
    %69 = tpu.reciprocal %68 {approx = true} : vector<8x1xf32> -> vector<8x1xf32>
    %70 = vector.broadcast %69 : vector<8x1xf32> to vector<8x8xf32>
    %71 = arith.mulf %66, %70 : vector<8x8xf32>
    %72 = arith.truncf %71 : vector<8x8xf32> to vector<8x8xbf16>
    %73 = arith.truncf %56 : vector<8x8xf32> to vector<8x8xbf16>
    %cst_40 = arith.constant dense<0.000000e+00> : vector<8x8xf32>
    %74 = tpu.matmul %72, %73, %cst_40 {dimension_numbers = #tpu.dot_dimension_numbers<[1], [0], [0], [1], [0, 0, 1, 1], [], []>} : vector<8x8xbf16>, vector<8x8xbf16>, vector<8x8xf32> -> vector<8x8xf32>
    %75 = arith.truncf %74 : vector<8x8xf32> to vector<8x8xbf16>
    %c0_41 = arith.constant 0 : index
    %c0_42 = arith.constant 0 : index
    %c0_43 = arith.constant 0 : index
    %76 = vector.load %arg5[%c0_41, %c0_42, %c0_43] : memref<4x8x32xbf16, #tpu.memory_space<vmem>>, vector<1x8x32xbf16>
    %77 = vector.shape_cast %76 : vector<1x8x32xbf16> to vector<8x32xbf16>
    %cst_44 = arith.constant dense<0.000000e+00> : vector<8x32xf32>
    %78 = tpu.matmul %75, %77, %cst_44 {dimension_numbers = #tpu.dot_dimension_numbers<[1], [0], [0], [1], [0, 0, 1, 1], [], []>} : vector<8x8xbf16>, vector<8x32xbf16>, vector<8x32xf32> -> vector<8x32xf32>
    %79 = arith.addf %35, %78 : vector<8x32xf32>
    %c0_45 = arith.constant 0 : index
    %c1_46 = arith.constant 1 : index
    %c0_47 = arith.constant 0 : index
    %c0_48 = arith.constant 0 : index
    %80 = vector.load %arg3[%c0_45, %c1_46, %c0_47, %c0_48] : memref<3x4x32x8xbf16, #tpu.memory_space<vmem>>, vector<1x1x32x8xbf16>
    %81 = vector.shape_cast %80 : vector<1x1x32x8xbf16> to vector<32x8xbf16>
    %cst_49 = arith.constant dense<0.000000e+00> : vector<8x8xf32>
    %82 = tpu.matmul %34, %81, %cst_49 {dimension_numbers = #tpu.dot_dimension_numbers<[1], [0], [0], [1], [0, 0, 1, 1], [], []>} : vector<8x32xbf16>, vector<32x8xbf16>, vector<8x8xf32> -> vector<8x8xf32>
    %c0_50 = arith.constant 0 : index
    %c1_51 = arith.constant 1 : index
    %c0_52 = arith.constant 0 : index
    %c0_53 = arith.constant 0 : index
    %83 = vector.load %arg4[%c0_50, %c1_51, %c0_52, %c0_53] : memref<3x4x1x8xf32, #tpu.memory_space<vmem>>, vector<1x1x1x8xf32>
    %84 = vector.shape_cast %83 : vector<1x1x1x8xf32> to vector<1x8xf32>
    %85 = vector.broadcast %84 : vector<1x8xf32> to vector<8x8xf32>
    %86 = arith.addf %82, %85 : vector<8x8xf32>
    %c1_54 = arith.constant 1 : index
    %c1_55 = arith.constant 1 : index
    %c0_56 = arith.constant 0 : index
    %c0_57 = arith.constant 0 : index
    %87 = vector.load %arg3[%c1_54, %c1_55, %c0_56, %c0_57] : memref<3x4x32x8xbf16, #tpu.memory_space<vmem>>, vector<1x1x32x8xbf16>
    %88 = vector.shape_cast %87 : vector<1x1x32x8xbf16> to vector<32x8xbf16>
    %cst_58 = arith.constant dense<0.000000e+00> : vector<8x8xf32>
    %89 = tpu.matmul %34, %88, %cst_58 {dimension_numbers = #tpu.dot_dimension_numbers<[1], [0], [0], [1], [0, 0, 1, 1], [], []>} : vector<8x32xbf16>, vector<32x8xbf16>, vector<8x8xf32> -> vector<8x8xf32>
    %c1_59 = arith.constant 1 : index
    %c1_60 = arith.constant 1 : index
    %c0_61 = arith.constant 0 : index
    %c0_62 = arith.constant 0 : index
    %90 = vector.load %arg4[%c1_59, %c1_60, %c0_61, %c0_62] : memref<3x4x1x8xf32, #tpu.memory_space<vmem>>, vector<1x1x1x8xf32>
    %91 = vector.shape_cast %90 : vector<1x1x1x8xf32> to vector<1x8xf32>
    %92 = vector.broadcast %91 : vector<1x8xf32> to vector<8x8xf32>
    %93 = arith.addf %89, %92 : vector<8x8xf32>
    %c2_63 = arith.constant 2 : index
    %c1_64 = arith.constant 1 : index
    %c0_65 = arith.constant 0 : index
    %c0_66 = arith.constant 0 : index
    %94 = vector.load %arg3[%c2_63, %c1_64, %c0_65, %c0_66] : memref<3x4x32x8xbf16, #tpu.memory_space<vmem>>, vector<1x1x32x8xbf16>
    %95 = vector.shape_cast %94 : vector<1x1x32x8xbf16> to vector<32x8xbf16>
    %cst_67 = arith.constant dense<0.000000e+00> : vector<8x8xf32>
    %96 = tpu.matmul %34, %95, %cst_67 {dimension_numbers = #tpu.dot_dimension_numbers<[1], [0], [0], [1], [0, 0, 1, 1], [], []>} : vector<8x32xbf16>, vector<32x8xbf16>, vector<8x8xf32> -> vector<8x8xf32>
    %c2_68 = arith.constant 2 : index
    %c1_69 = arith.constant 1 : index
    %c0_70 = arith.constant 0 : index
    %c0_71 = arith.constant 0 : index
    %97 = vector.load %arg4[%c2_68, %c1_69, %c0_70, %c0_71] : memref<3x4x1x8xf32, #tpu.memory_space<vmem>>, vector<1x1x1x8xf32>
    %98 = vector.shape_cast %97 : vector<1x1x1x8xf32> to vector<1x8xf32>
    %99 = vector.broadcast %98 : vector<1x8xf32> to vector<8x8xf32>
    %100 = arith.addf %96, %99 : vector<8x8xf32>
    %cst_72 = arith.constant 0.353553385 : f32
    %101 = vector.broadcast %cst_72 : f32 to vector<8x8xf32>
    %102 = arith.mulf %86, %101 : vector<8x8xf32>
    %103 = arith.truncf %102 : vector<8x8xf32> to vector<8x8xbf16>
    %104 = arith.truncf %93 : vector<8x8xf32> to vector<8x8xbf16>
    %cst_73 = arith.constant dense<0.000000e+00> : vector<8x8xf32>
    %105 = tpu.matmul %103, %104, %cst_73 {dimension_numbers = #tpu.dot_dimension_numbers<[1], [1], [0], [0], [0, 0, 1, 0], [], []>} : vector<8x8xbf16>, vector<8x8xbf16>, vector<8x8xf32> -> vector<8x8xf32>
    %cst_74 = arith.constant dense<0xFF800000> : vector<8xf32>
    %106 = vector.multi_reduction <maximumf>, %105, %cst_74 [1] : vector<8x8xf32> to vector<8xf32>
    %107 = vector.shape_cast %106 : vector<8xf32> to vector<8x1xf32>
    %108 = vector.broadcast %107 : vector<8x1xf32> to vector<8x8xf32>
    %109 = arith.subf %105, %108 : vector<8x8xf32>
    %110 = math.exp %109 : vector<8x8xf32>
    %cst_75 = arith.constant dense<0.000000e+00> : vector<8xf32>
    %111 = vector.multi_reduction <add>, %110, %cst_75 [1] : vector<8x8xf32> to vector<8xf32>
    %112 = vector.shape_cast %111 : vector<8xf32> to vector<8x1xf32>
    %113 = tpu.reciprocal %112 {approx = true} : vector<8x1xf32> -> vector<8x1xf32>
    %114 = vector.broadcast %113 : vector<8x1xf32> to vector<8x8xf32>
    %115 = arith.mulf %110, %114 : vector<8x8xf32>
    %116 = arith.truncf %115 : vector<8x8xf32> to vector<8x8xbf16>
    %117 = arith.truncf %100 : vector<8x8xf32> to vector<8x8xbf16>
    %cst_76 = arith.constant dense<0.000000e+00> : vector<8x8xf32>
    %118 = tpu.matmul %116, %117, %cst_76 {dimension_numbers = #tpu.dot_dimension_numbers<[1], [0], [0], [1], [0, 0, 1, 1], [], []>} : vector<8x8xbf16>, vector<8x8xbf16>, vector<8x8xf32> -> vector<8x8xf32>
    %119 = arith.truncf %118 : vector<8x8xf32> to vector<8x8xbf16>
    %c1_77 = arith.constant 1 : index
    %c0_78 = arith.constant 0 : index
    %c0_79 = arith.constant 0 : index
    %120 = vector.load %arg5[%c1_77, %c0_78, %c0_79] : memref<4x8x32xbf16, #tpu.memory_space<vmem>>, vector<1x8x32xbf16>
    %121 = vector.shape_cast %120 : vector<1x8x32xbf16> to vector<8x32xbf16>
    %cst_80 = arith.constant dense<0.000000e+00> : vector<8x32xf32>
    %122 = tpu.matmul %119, %121, %cst_80 {dimension_numbers = #tpu.dot_dimension_numbers<[1], [0], [0], [1], [0, 0, 1, 1], [], []>} : vector<8x8xbf16>, vector<8x32xbf16>, vector<8x32xf32> -> vector<8x32xf32>
    %123 = arith.addf %79, %122 : vector<8x32xf32>
    %c0_81 = arith.constant 0 : index
    %c2_82 = arith.constant 2 : index
    %c0_83 = arith.constant 0 : index
    %c0_84 = arith.constant 0 : index
    %124 = vector.load %arg3[%c0_81, %c2_82, %c0_83, %c0_84] : memref<3x4x32x8xbf16, #tpu.memory_space<vmem>>, vector<1x1x32x8xbf16>
    %125 = vector.shape_cast %124 : vector<1x1x32x8xbf16> to vector<32x8xbf16>
    %cst_85 = arith.constant dense<0.000000e+00> : vector<8x8xf32>
    %126 = tpu.matmul %34, %125, %cst_85 {dimension_numbers = #tpu.dot_dimension_numbers<[1], [0], [0], [1], [0, 0, 1, 1], [], []>} : vector<8x32xbf16>, vector<32x8xbf16>, vector<8x8xf32> -> vector<8x8xf32>
    %c0_86 = arith.constant 0 : index
    %c2_87 = arith.constant 2 : index
    %c0_88 = arith.constant 0 : index
    %c0_89 = arith.constant 0 : index
    %127 = vector.load %arg4[%c0_86, %c2_87, %c0_88, %c0_89] : memref<3x4x1x8xf32, #tpu.memory_space<vmem>>, vector<1x1x1x8xf32>
    %128 = vector.shape_cast %127 : vector<1x1x1x8xf32> to vector<1x8xf32>
    %129 = vector.broadcast %128 : vector<1x8xf32> to vector<8x8xf32>
    %130 = arith.addf %126, %129 : vector<8x8xf32>
    %c1_90 = arith.constant 1 : index
    %c2_91 = arith.constant 2 : index
    %c0_92 = arith.constant 0 : index
    %c0_93 = arith.constant 0 : index
    %131 = vector.load %arg3[%c1_90, %c2_91, %c0_92, %c0_93] : memref<3x4x32x8xbf16, #tpu.memory_space<vmem>>, vector<1x1x32x8xbf16>
    %132 = vector.shape_cast %131 : vector<1x1x32x8xbf16> to vector<32x8xbf16>
    %cst_94 = arith.constant dense<0.000000e+00> : vector<8x8xf32>
    %133 = tpu.matmul %34, %132, %cst_94 {dimension_numbers = #tpu.dot_dimension_numbers<[1], [0], [0], [1], [0, 0, 1, 1], [], []>} : vector<8x32xbf16>, vector<32x8xbf16>, vector<8x8xf32> -> vector<8x8xf32>
    %c1_95 = arith.constant 1 : index
    %c2_96 = arith.constant 2 : index
    %c0_97 = arith.constant 0 : index
    %c0_98 = arith.constant 0 : index
    %134 = vector.load %arg4[%c1_95, %c2_96, %c0_97, %c0_98] : memref<3x4x1x8xf32, #tpu.memory_space<vmem>>, vector<1x1x1x8xf32>
    %135 = vector.shape_cast %134 : vector<1x1x1x8xf32> to vector<1x8xf32>
    %136 = vector.broadcast %135 : vector<1x8xf32> to vector<8x8xf32>
    %137 = arith.addf %133, %136 : vector<8x8xf32>
    %c2_99 = arith.constant 2 : index
    %c2_100 = arith.constant 2 : index
    %c0_101 = arith.constant 0 : index
    %c0_102 = arith.constant 0 : index
    %138 = vector.load %arg3[%c2_99, %c2_100, %c0_101, %c0_102] : memref<3x4x32x8xbf16, #tpu.memory_space<vmem>>, vector<1x1x32x8xbf16>
    %139 = vector.shape_cast %138 : vector<1x1x32x8xbf16> to vector<32x8xbf16>
    %cst_103 = arith.constant dense<0.000000e+00> : vector<8x8xf32>
    %140 = tpu.matmul %34, %139, %cst_103 {dimension_numbers = #tpu.dot_dimension_numbers<[1], [0], [0], [1], [0, 0, 1, 1], [], []>} : vector<8x32xbf16>, vector<32x8xbf16>, vector<8x8xf32> -> vector<8x8xf32>
    %c2_104 = arith.constant 2 : index
    %c2_105 = arith.constant 2 : index
    %c0_106 = arith.constant 0 : index
    %c0_107 = arith.constant 0 : index
    %141 = vector.load %arg4[%c2_104, %c2_105, %c0_106, %c0_107] : memref<3x4x1x8xf32, #tpu.memory_space<vmem>>, vector<1x1x1x8xf32>
    %142 = vector.shape_cast %141 : vector<1x1x1x8xf32> to vector<1x8xf32>
    %143 = vector.broadcast %142 : vector<1x8xf32> to vector<8x8xf32>
    %144 = arith.addf %140, %143 : vector<8x8xf32>
    %cst_108 = arith.constant 0.353553385 : f32
    %145 = vector.broadcast %cst_108 : f32 to vector<8x8xf32>
    %146 = arith.mulf %130, %145 : vector<8x8xf32>
    %147 = arith.truncf %146 : vector<8x8xf32> to vector<8x8xbf16>
    %148 = arith.truncf %137 : vector<8x8xf32> to vector<8x8xbf16>
    %cst_109 = arith.constant dense<0.000000e+00> : vector<8x8xf32>
    %149 = tpu.matmul %147, %148, %cst_109 {dimension_numbers = #tpu.dot_dimension_numbers<[1], [1], [0], [0], [0, 0, 1, 0], [], []>} : vector<8x8xbf16>, vector<8x8xbf16>, vector<8x8xf32> -> vector<8x8xf32>
    %cst_110 = arith.constant dense<0xFF800000> : vector<8xf32>
    %150 = vector.multi_reduction <maximumf>, %149, %cst_110 [1] : vector<8x8xf32> to vector<8xf32>
    %151 = vector.shape_cast %150 : vector<8xf32> to vector<8x1xf32>
    %152 = vector.broadcast %151 : vector<8x1xf32> to vector<8x8xf32>
    %153 = arith.subf %149, %152 : vector<8x8xf32>
    %154 = math.exp %153 : vector<8x8xf32>
    %cst_111 = arith.constant dense<0.000000e+00> : vector<8xf32>
    %155 = vector.multi_reduction <add>, %154, %cst_111 [1] : vector<8x8xf32> to vector<8xf32>
    %156 = vector.shape_cast %155 : vector<8xf32> to vector<8x1xf32>
    %157 = tpu.reciprocal %156 {approx = true} : vector<8x1xf32> -> vector<8x1xf32>
    %158 = vector.broadcast %157 : vector<8x1xf32> to vector<8x8xf32>
    %159 = arith.mulf %154, %158 : vector<8x8xf32>
    %160 = arith.truncf %159 : vector<8x8xf32> to vector<8x8xbf16>
    %161 = arith.truncf %144 : vector<8x8xf32> to vector<8x8xbf16>
    %cst_112 = arith.constant dense<0.000000e+00> : vector<8x8xf32>
    %162 = tpu.matmul %160, %161, %cst_112 {dimension_numbers = #tpu.dot_dimension_numbers<[1], [0], [0], [1], [0, 0, 1, 1], [], []>} : vector<8x8xbf16>, vector<8x8xbf16>, vector<8x8xf32> -> vector<8x8xf32>
    %163 = arith.truncf %162 : vector<8x8xf32> to vector<8x8xbf16>
    %c2_113 = arith.constant 2 : index
    %c0_114 = arith.constant 0 : index
    %c0_115 = arith.constant 0 : index
    %164 = vector.load %arg5[%c2_113, %c0_114, %c0_115] : memref<4x8x32xbf16, #tpu.memory_space<vmem>>, vector<1x8x32xbf16>
    %165 = vector.shape_cast %164 : vector<1x8x32xbf16> to vector<8x32xbf16>
    %cst_116 = arith.constant dense<0.000000e+00> : vector<8x32xf32>
    %166 = tpu.matmul %163, %165, %cst_116 {dimension_numbers = #tpu.dot_dimension_numbers<[1], [0], [0], [1], [0, 0, 1, 1], [], []>} : vector<8x8xbf16>, vector<8x32xbf16>, vector<8x32xf32> -> vector<8x32xf32>
    %167 = arith.addf %123, %166 : vector<8x32xf32>
    %c0_117 = arith.constant 0 : index
    %c3 = arith.constant 3 : index
    %c0_118 = arith.constant 0 : index
    %c0_119 = arith.constant 0 : index
    %168 = vector.load %arg3[%c0_117, %c3, %c0_118, %c0_119] : memref<3x4x32x8xbf16, #tpu.memory_space<vmem>>, vector<1x1x32x8xbf16>
    %169 = vector.shape_cast %168 : vector<1x1x32x8xbf16> to vector<32x8xbf16>
    %cst_120 = arith.constant dense<0.000000e+00> : vector<8x8xf32>
    %170 = tpu.matmul %34, %169, %cst_120 {dimension_numbers = #tpu.dot_dimension_numbers<[1], [0], [0], [1], [0, 0, 1, 1], [], []>} : vector<8x32xbf16>, vector<32x8xbf16>, vector<8x8xf32> -> vector<8x8xf32>
    %c0_121 = arith.constant 0 : index
    %c3_122 = arith.constant 3 : index
    %c0_123 = arith.constant 0 : index
    %c0_124 = arith.constant 0 : index
    %171 = vector.load %arg4[%c0_121, %c3_122, %c0_123, %c0_124] : memref<3x4x1x8xf32, #tpu.memory_space<vmem>>, vector<1x1x1x8xf32>
    %172 = vector.shape_cast %171 : vector<1x1x1x8xf32> to vector<1x8xf32>
    %173 = vector.broadcast %172 : vector<1x8xf32> to vector<8x8xf32>
    %174 = arith.addf %170, %173 : vector<8x8xf32>
    %c1_125 = arith.constant 1 : index
    %c3_126 = arith.constant 3 : index
    %c0_127 = arith.constant 0 : index
    %c0_128 = arith.constant 0 : index
    %175 = vector.load %arg3[%c1_125, %c3_126, %c0_127, %c0_128] : memref<3x4x32x8xbf16, #tpu.memory_space<vmem>>, vector<1x1x32x8xbf16>
    %176 = vector.shape_cast %175 : vector<1x1x32x8xbf16> to vector<32x8xbf16>
    %cst_129 = arith.constant dense<0.000000e+00> : vector<8x8xf32>
    %177 = tpu.matmul %34, %176, %cst_129 {dimension_numbers = #tpu.dot_dimension_numbers<[1], [0], [0], [1], [0, 0, 1, 1], [], []>} : vector<8x32xbf16>, vector<32x8xbf16>, vector<8x8xf32> -> vector<8x8xf32>
    %c1_130 = arith.constant 1 : index
    %c3_131 = arith.constant 3 : index
    %c0_132 = arith.constant 0 : index
    %c0_133 = arith.constant 0 : index
    %178 = vector.load %arg4[%c1_130, %c3_131, %c0_132, %c0_133] : memref<3x4x1x8xf32, #tpu.memory_space<vmem>>, vector<1x1x1x8xf32>
    %179 = vector.shape_cast %178 : vector<1x1x1x8xf32> to vector<1x8xf32>
    %180 = vector.broadcast %179 : vector<1x8xf32> to vector<8x8xf32>
    %181 = arith.addf %177, %180 : vector<8x8xf32>
    %c2_134 = arith.constant 2 : index
    %c3_135 = arith.constant 3 : index
    %c0_136 = arith.constant 0 : index
    %c0_137 = arith.constant 0 : index
    %182 = vector.load %arg3[%c2_134, %c3_135, %c0_136, %c0_137] : memref<3x4x32x8xbf16, #tpu.memory_space<vmem>>, vector<1x1x32x8xbf16>
    %183 = vector.shape_cast %182 : vector<1x1x32x8xbf16> to vector<32x8xbf16>
    %cst_138 = arith.constant dense<0.000000e+00> : vector<8x8xf32>
    %184 = tpu.matmul %34, %183, %cst_138 {dimension_numbers = #tpu.dot_dimension_numbers<[1], [0], [0], [1], [0, 0, 1, 1], [], []>} : vector<8x32xbf16>, vector<32x8xbf16>, vector<8x8xf32> -> vector<8x8xf32>
    %c2_139 = arith.constant 2 : index
    %c3_140 = arith.constant 3 : index
    %c0_141 = arith.constant 0 : index
    %c0_142 = arith.constant 0 : index
    %185 = vector.load %arg4[%c2_139, %c3_140, %c0_141, %c0_142] : memref<3x4x1x8xf32, #tpu.memory_space<vmem>>, vector<1x1x1x8xf32>
    %186 = vector.shape_cast %185 : vector<1x1x1x8xf32> to vector<1x8xf32>
    %187 = vector.broadcast %186 : vector<1x8xf32> to vector<8x8xf32>
    %188 = arith.addf %184, %187 : vector<8x8xf32>
    %cst_143 = arith.constant 0.353553385 : f32
    %189 = vector.broadcast %cst_143 : f32 to vector<8x8xf32>
    %190 = arith.mulf %174, %189 : vector<8x8xf32>
    %191 = arith.truncf %190 : vector<8x8xf32> to vector<8x8xbf16>
    %192 = arith.truncf %181 : vector<8x8xf32> to vector<8x8xbf16>
    %cst_144 = arith.constant dense<0.000000e+00> : vector<8x8xf32>
    %193 = tpu.matmul %191, %192, %cst_144 {dimension_numbers = #tpu.dot_dimension_numbers<[1], [1], [0], [0], [0, 0, 1, 0], [], []>} : vector<8x8xbf16>, vector<8x8xbf16>, vector<8x8xf32> -> vector<8x8xf32>
    %cst_145 = arith.constant dense<0xFF800000> : vector<8xf32>
    %194 = vector.multi_reduction <maximumf>, %193, %cst_145 [1] : vector<8x8xf32> to vector<8xf32>
    %195 = vector.shape_cast %194 : vector<8xf32> to vector<8x1xf32>
    %196 = vector.broadcast %195 : vector<8x1xf32> to vector<8x8xf32>
    %197 = arith.subf %193, %196 : vector<8x8xf32>
    %198 = math.exp %197 : vector<8x8xf32>
    %cst_146 = arith.constant dense<0.000000e+00> : vector<8xf32>
    %199 = vector.multi_reduction <add>, %198, %cst_146 [1] : vector<8x8xf32> to vector<8xf32>
    %200 = vector.shape_cast %199 : vector<8xf32> to vector<8x1xf32>
    %201 = tpu.reciprocal %200 {approx = true} : vector<8x1xf32> -> vector<8x1xf32>
    %202 = vector.broadcast %201 : vector<8x1xf32> to vector<8x8xf32>
    %203 = arith.mulf %198, %202 : vector<8x8xf32>
    %204 = arith.truncf %203 : vector<8x8xf32> to vector<8x8xbf16>
    %205 = arith.truncf %188 : vector<8x8xf32> to vector<8x8xbf16>
    %cst_147 = arith.constant dense<0.000000e+00> : vector<8x8xf32>
    %206 = tpu.matmul %204, %205, %cst_147 {dimension_numbers = #tpu.dot_dimension_numbers<[1], [0], [0], [1], [0, 0, 1, 1], [], []>} : vector<8x8xbf16>, vector<8x8xbf16>, vector<8x8xf32> -> vector<8x8xf32>
    %207 = arith.truncf %206 : vector<8x8xf32> to vector<8x8xbf16>
    %c3_148 = arith.constant 3 : index
    %c0_149 = arith.constant 0 : index
    %c0_150 = arith.constant 0 : index
    %208 = vector.load %arg5[%c3_148, %c0_149, %c0_150] : memref<4x8x32xbf16, #tpu.memory_space<vmem>>, vector<1x8x32xbf16>
    %209 = vector.shape_cast %208 : vector<1x8x32xbf16> to vector<8x32xbf16>
    %cst_151 = arith.constant dense<0.000000e+00> : vector<8x32xf32>
    %210 = tpu.matmul %207, %209, %cst_151 {dimension_numbers = #tpu.dot_dimension_numbers<[1], [0], [0], [1], [0, 0, 1, 1], [], []>} : vector<8x8xbf16>, vector<8x32xbf16>, vector<8x32xf32> -> vector<8x32xf32>
    %211 = arith.addf %167, %210 : vector<8x32xf32>
    %c0_152 = arith.constant 0 : index
    %c0_153 = arith.constant 0 : index
    %212 = vector.load %arg6[%c0_152, %c0_153] : memref<1x32xf32, #tpu.memory_space<vmem>>, vector<1x32xf32>
    %213 = vector.broadcast %212 : vector<1x32xf32> to vector<8x32xf32>
    %214 = arith.addf %211, %213 : vector<8x32xf32>
    %215 = vector.broadcast %6 : vector<1x32xf32> to vector<8x32xf32>
    %216 = arith.mulf %215, %214 : vector<8x32xf32>
    %217 = arith.addf %1, %216 : vector<8x32xf32>
    %cst_154 = arith.constant dense<0.000000e+00> : vector<8xf32>
    %218 = vector.multi_reduction <add>, %217, %cst_154 [1] : vector<8x32xf32> to vector<8xf32>
    %219 = vector.shape_cast %218 : vector<8xf32> to vector<8x1xf32>
    %cst_155 = arith.constant 3.200000e+01 : f32
    %220 = vector.broadcast %cst_155 : f32 to vector<8x1xf32>
    %221 = arith.divf %219, %220 : vector<8x1xf32>
    %222 = vector.broadcast %221 : vector<8x1xf32> to vector<8x32xf32>
    %223 = arith.subf %217, %222 : vector<8x32xf32>
    %224 = arith.mulf %223, %223 : vector<8x32xf32>
    %cst_156 = arith.constant dense<0.000000e+00> : vector<8xf32>
    %225 = vector.multi_reduction <add>, %224, %cst_156 [1] : vector<8x32xf32> to vector<8xf32>
    %226 = vector.shape_cast %225 : vector<8xf32> to vector<8x1xf32>
    %cst_157 = arith.constant 3.200000e+01 : f32
    %227 = vector.broadcast %cst_157 : f32 to vector<8x1xf32>
    %228 = arith.divf %226, %227 : vector<8x1xf32>
    %229 = vector.broadcast %221 : vector<8x1xf32> to vector<8x32xf32>
    %230 = arith.subf %217, %229 : vector<8x32xf32>
    %cst_158 = arith.constant 9.99999997E-7 : f32
    %231 = vector.broadcast %cst_158 : f32 to vector<8x1xf32>
    %232 = arith.addf %228, %231 : vector<8x1xf32>
    %233 = math.rsqrt %232 : vector<8x1xf32>
    %234 = vector.broadcast %233 : vector<8x1xf32> to vector<8x32xf32>
    %235 = arith.mulf %230, %234 : vector<8x32xf32>
    %cst_159 = arith.constant 1.000000e+00 : f32
    %236 = vector.broadcast %cst_159 : f32 to vector<1x32xf32>
    %237 = arith.addf %236, %8 : vector<1x32xf32>
    %238 = vector.broadcast %237 : vector<1x32xf32> to vector<8x32xf32>
    %239 = arith.mulf %235, %238 : vector<8x32xf32>
    %240 = vector.broadcast %7 : vector<1x32xf32> to vector<8x32xf32>
    %241 = arith.addf %239, %240 : vector<8x32xf32>
    %242 = arith.truncf %241 : vector<8x32xf32> to vector<8x32xbf16>
    %c0_160 = arith.constant 0 : index
    %c0_161 = arith.constant 0 : index
    %243 = vector.load %arg7[%c0_160, %c0_161] : memref<32x128xbf16, #tpu.memory_space<vmem>>, vector<32x128xbf16>
    %cst_162 = arith.constant dense<0.000000e+00> : vector<8x128xf32>
    %244 = tpu.matmul %242, %243, %cst_162 {dimension_numbers = #tpu.dot_dimension_numbers<[1], [0], [0], [1], [0, 0, 1, 1], [], []>} : vector<8x32xbf16>, vector<32x128xbf16>, vector<8x128xf32> -> vector<8x128xf32>
    %c0_163 = arith.constant 0 : index
    %c0_164 = arith.constant 0 : index
    %245 = vector.load %arg8[%c0_163, %c0_164] : memref<1x128xf32, #tpu.memory_space<vmem>>, vector<1x128xf32>
    %246 = vector.broadcast %245 : vector<1x128xf32> to vector<8x128xf32>
    %247 = arith.addf %244, %246 : vector<8x128xf32>
    %cst_165 = arith.constant 5.000000e-01 : f32
    %248 = vector.broadcast %cst_165 : f32 to vector<8x128xf32>
    %249 = arith.mulf %248, %247 : vector<8x128xf32>
    %cst_166 = arith.constant 4.471500e-02 : f32
    %250 = vector.broadcast %cst_166 : f32 to vector<8x128xf32>
    %251 = arith.mulf %250, %247 : vector<8x128xf32>
    %252 = arith.mulf %251, %247 : vector<8x128xf32>
    %253 = arith.mulf %252, %247 : vector<8x128xf32>
    %254 = arith.addf %247, %253 : vector<8x128xf32>
    %cst_167 = arith.constant 0.797884583 : f32
    %255 = vector.broadcast %cst_167 : f32 to vector<8x128xf32>
    %256 = arith.mulf %255, %254 : vector<8x128xf32>
    %257 = math.tanh %256 : vector<8x128xf32>
    %cst_168 = arith.constant 1.000000e+00 : f32
    %258 = vector.broadcast %cst_168 : f32 to vector<8x128xf32>
    %259 = arith.addf %258, %257 : vector<8x128xf32>
    %260 = arith.mulf %249, %259 : vector<8x128xf32>
    %261 = arith.truncf %260 : vector<8x128xf32> to vector<8x128xbf16>
    %c0_169 = arith.constant 0 : index
    %c0_170 = arith.constant 0 : index
    %262 = vector.load %arg9[%c0_169, %c0_170] : memref<128x32xbf16, #tpu.memory_space<vmem>>, vector<128x32xbf16>
    %cst_171 = arith.constant dense<0.000000e+00> : vector<8x32xf32>
    %263 = tpu.matmul %261, %262, %cst_171 {dimension_numbers = #tpu.dot_dimension_numbers<[1], [0], [0], [1], [0, 0, 1, 1], [], []>} : vector<8x128xbf16>, vector<128x32xbf16>, vector<8x32xf32> -> vector<8x32xf32>
    %c0_172 = arith.constant 0 : index
    %c0_173 = arith.constant 0 : index
    %264 = vector.load %arg10[%c0_172, %c0_173] : memref<1x32xf32, #tpu.memory_space<vmem>>, vector<1x32xf32>
    %265 = vector.broadcast %264 : vector<1x32xf32> to vector<8x32xf32>
    %266 = arith.addf %263, %265 : vector<8x32xf32>
    %267 = vector.broadcast %9 : vector<1x32xf32> to vector<8x32xf32>
    %268 = arith.mulf %267, %266 : vector<8x32xf32>
    %269 = arith.addf %217, %268 : vector<8x32xf32>
    %c0_174 = arith.constant 0 : index
    %c0_175 = arith.constant 0 : index
    %c0_176 = arith.constant 0 : index
    %270 = vector.load %arg11[%c0_174, %c0_175, %c0_176] : memref<1x8x32xf32, #tpu.memory_space<vmem>>, vector<1x8x32xf32>
    %271 = vector.shape_cast %270 : vector<1x8x32xf32> to vector<8x32xf32>
    %272 = vector.shape_cast %269 : vector<8x32xf32> to vector<1x8x32xf32>
    tpu.vector_store %arg11[%c0_174, %c0_175, %c0_176], %272 {strides = array<i32>} : memref<1x8x32xf32, #tpu.memory_space<vmem>>, vector<1x8x32xf32>,
    return
  }
  func.func @transform_0(%arg0: i32) -> (i32, i32, i32) {
    %c0_i32 = arith.constant 0 : i32
    %c0_i32_0 = arith.constant 0 : i32
    %c0_i32_1 = arith.constant 0 : i32
    return %arg0, %c0_i32, %c0_i32_0 : i32, i32, i32
  }
  func.func @transform_1(%arg0: i32) -> (i32, i32, i32) {
    %c0_i32 = arith.constant 0 : i32
    %c0_i32_0 = arith.constant 0 : i32
    %c0_i32_1 = arith.constant 0 : i32
    return %arg0, %c0_i32, %c0_i32_0 : i32, i32, i32
  }
  func.func @transform_2(%arg0: i32) -> (i32, i32, i32, i32) {
    %c0_i32 = arith.constant 0 : i32
    %c0_i32_0 = arith.constant 0 : i32
    %c0_i32_1 = arith.constant 0 : i32
    %c0_i32_2 = arith.constant 0 : i32
    %c0_i32_3 = arith.constant 0 : i32
    return %c0_i32, %c0_i32_0, %c0_i32_1, %c0_i32_2 : i32, i32, i32, i32
  }
  func.func @transform_3(%arg0: i32) -> (i32, i32, i32, i32) {
    %c0_i32 = arith.constant 0 : i32
    %c0_i32_0 = arith.constant 0 : i32
    %c0_i32_1 = arith.constant 0 : i32
    %c0_i32_2 = arith.constant 0 : i32
    %c0_i32_3 = arith.constant 0 : i32
    return %c0_i32, %c0_i32_0, %c0_i32_1, %c0_i32_2 : i32, i32, i32, i32
  }
  func.func @transform_4(%arg0: i32) -> (i32, i32, i32) {
    %c0_i32 = arith.constant 0 : i32
    %c0_i32_0 = arith.constant 0 : i32
    %c0_i32_1 = arith.constant 0 : i32
    %c0_i32_2 = arith.constant 0 : i32
    return %c0_i32, %c0_i32_0, %c0_i32_1 : i32, i32, i32
  }
  func.func @transform_5(%arg0: i32) -> (i32, i32) {
    %c0_i32 = arith.constant 0 : i32
    %c0_i32_0 = arith.constant 0 : i32
    %c0_i32_1 = arith.constant 0 : i32
    return %c0_i32, %c0_i32_0 : i32, i32
  }
  func.func @transform_6(%arg0: i32) -> (i32, i32) {
    %c0_i32 = arith.constant 0 : i32
    %c0_i32_0 = arith.constant 0 : i32
    %c0_i32_1 = arith.constant 0 : i32
    return %c0_i32, %c0_i32_0 : i32, i32
  }
  func.func @transform_7(%arg0: i32) -> (i32, i32) {
    %c0_i32 = arith.constant 0 : i32
    %c0_i32_0 = arith.constant 0 : i32
    %c0_i32_1 = arith.constant 0 : i32
    return %c0_i32, %c0_i32_0 : i32, i32
  }
  func.func @transform_8(%arg0: i32) -> (i32, i32) {
    %c0_i32 = arith.constant 0 : i32
    %c0_i32_0 = arith.constant 0 : i32
    %c0_i32_1 = arith.constant 0 : i32
    return %c0_i32, %c0_i32_0 : i32, i32
  }
  func.func @transform_9(%arg0: i32) -> (i32, i32) {
    %c0_i32 = arith.constant 0 : i32
    %c0_i32_0 = arith.constant 0 : i32
    %c0_i32_1 = arith.constant 0 : i32
    return %c0_i32, %c0_i32_0 : i32, i32
  }
  func.func @transform_10(%arg0: i32) -> (i32, i32, i32) {
    %c0_i32 = arith.constant 0 : i32
    %c0_i32_0 = arith.constant 0 : i32
    %c0_i32_1 = arith.constant 0 : i32
    return %arg0, %c0_i32, %c0_i32_0 : i32, i32, i32
  }
}

</mosaic_0001>

<llo_original>
// kernel: _dit_block_impl.1
$region0: #{_dit_block_impl.1}
  #allocation0 [shape = 'u32[]', space=smem, size = 0x4, offset = 0x4, fixed_abs, tag = 'smem constant byte address 0x4 - core index']
  #allocation1 [shape = 'u32[144,128]{1,0:T(1,128)}', space=vmem, size = 0x12000, scoped, tag = 'internal scratch']
  %s0 = inlined_call_operand.vmem [shape: f32[2,8,32], index: 0, kind: input, shape index: {}]
  %s1 = inlined_call_operand.vmem [shape: f32[2,6,32], index: 1, kind: input, shape index: {}]
  %s2 = inlined_call_operand.vmem [shape: bf16[3,4,32,8], index: 2, kind: input, shape index: {}]
  %s3 = inlined_call_operand.vmem [shape: f32[3,4,1,8], index: 3, kind: input, shape index: {}]
  %s4 = inlined_call_operand.vmem [shape: bf16[4,8,32], index: 4, kind: input, shape index: {}]
  %s5 = inlined_call_operand.vmem [shape: f32[1,32], index: 5, kind: input, shape index: {}]
  %s6 = inlined_call_operand.vmem [shape: bf16[32,128], index: 6, kind: input, shape index: {}]
  %s7 = inlined_call_operand.vmem [shape: f32[1,128], index: 7, kind: input, shape index: {}]
  %s8 = inlined_call_operand.vmem [shape: bf16[128,32], index: 8, kind: input, shape index: {}]
  %s9 = inlined_call_operand.vmem [shape: f32[1,32], index: 9, kind: input, shape index: {}]
  %s10 = inlined_call_operand.hbm [shape: f32[2,8,32], index: 10, kind: output, shape index: {}]
  %s11 = sld [smem:[#allocation0]]
  $region73: #{_dit_block_impl.1} parent=0
    _
  %s13 = ssub.s32 1, %s11
  %s14 = scalar_select 0, %s13, %s11
  $region1: #{_dit_block_impl.1} parent=0
    #allocation2 [shape = 'u8[8192]{0}', space=vmem, size = 0x2000, scoped, tag = 'output window, operand 0']
    #allocation3 [shape = 's32[2]{0}', space=sflag, size = 0x8, scoped, tag = 'scoped memory for _dit_block_impl.1']
    %15 = vsyncpa [#allocation3], 0
    %s16 = scalar_lea.sflag [#allocation3], 1
    %17 = vsyncpa %s16, 0
    loop: start=0, step=1, limit=4
    $region2: #{_dit_block_impl.1} parent=1 // loop_pre_header
      _
    $region3: #{_dit_block_impl.1} parent=1 // loop_header
      %s19 = sphi 0, %s23
      %p20 = scmp.ge.s32.totalorder %s19, 4
      %s29 = sphi 0, %s31
      %s32 = sphi 0, %s29
      %s33 = sphi 0, %s32
      %s49 = sphi 0, %s33
      %s55 = sphi 0, %s57
      %s58 = sphi 0, %s55
      %s59 = sphi 0, %s58
      %s75 = sphi 0, %s59
      %s79 = sphi 0, %s79
      %s81 = sphi 0, %s79
      %s82 = sphi 0, %s81
      %s96 = sphi 0, %s82
      %s100 = sphi 0, %s100
      %s102 = sphi 0, %s100
      %s103 = sphi 0, %s102
      %s117 = sphi 0, %s103
      %s121 = sphi 0, %s121
      %s123 = sphi 0, %s121
      %s124 = sphi 0, %s123
      %s138 = sphi 0, %s124
      %s142 = sphi 0, %s142
      %s144 = sphi 0, %s142
      %s145 = sphi 0, %s144
      %s159 = sphi 0, %s145
      %s163 = sphi 0, %s163
      %s165 = sphi 0, %s163
      %s166 = sphi 0, %s165
      %s180 = sphi 0, %s166
      %s184 = sphi 0, %s184
      %s186 = sphi 0, %s184
      %s187 = sphi 0, %s186
      %s201 = sphi 0, %s187
      %s205 = sphi 0, %s205
      %s207 = sphi 0, %s205
      %s208 = sphi 0, %s207
      %s222 = sphi 0, %s208
      %s226 = sphi 0, %s226
      %s228 = sphi 0, %s226
      %s229 = sphi 0, %s228
      %s243 = sphi 0, %s229
      %s249 = sphi 0, %s251
      %s252 = sphi 0, %s249
      %s253 = sphi 0, %s252
      %s269 = sphi 0, %s253
    $region4: #{_dit_block_impl.1} parent=1 // loop_header_branch
      %22 = sbr.rel (%p20) target = $region8
    $region5: #{_dit_block_impl.1} parent=1 // loop_body
      %s24 = ssub.s32 %s19, 1
      %s25 = ssub.s32 %s19, 2
      %s26 = sadd.s32 %s19, 1
      %s27 = ssub.s32 %s19, %s26
      %p28 = scmp.eq.s32.totalorder %s27, 0
      %s30 = sadd.s32 %s29, 1
      %s31 = scalar_select %p28, %s29, %s30
      %p34 = pneg %p28
      %p35 = scmp.eq.s32.totalorder %s19, 1
      %p36 = por %p34, %p35
      %p37 = scmp.ne.s32.totalorder %s29, %s32
      %p38 = scmp.eq.s32.totalorder %s19, 0
      %p39 = por %p37, %p38
      %p40 = scmp.ne.s32.totalorder %s29, %s32
      %p41 = scmp.eq.s32.totalorder %s24, 1
      %p42 = por %p40, %p41
      %p43 = scmp.ne.s32.totalorder %s32, %s33
      %p44 = scmp.eq.s32.totalorder %s24, 0
      %p45 = por %p43, %p44
      %p46 = scmp.ne.s32.totalorder %s32, %s33
      %p47 = scmp.eq.s32.totalorder %s25, 1
      %p48 = por %p46, %p47
      %p50 = scmp.ne.s32.totalorder %s33, %s49
      %p51 = scmp.eq.s32.totalorder %s25, 0
      %p52 = por %p50, %p51
      %s53 = ssub.s32 %s19, %s26
      %p54 = scmp.eq.s32.totalorder %s53, 0
      %s56 = sadd.s32 %s55, 1
      %s57 = scalar_select %p54, %s55, %s56
      %p60 = pneg %p54
      %p61 = scmp.eq.s32.totalorder %s19, 1
      %p62 = por %p60, %p61
      %p63 = scmp.ne.s32.totalorder %s55, %s58
      %p64 = scmp.eq.s32.totalorder %s19, 0
      %p65 = por %p63, %p64
      %p66 = scmp.ne.s32.totalorder %s55, %s58
      %p67 = scmp.eq.s32.totalorder %s24, 1
      %p68 = por %p66, %p67
      %p69 = scmp.ne.s32.totalorder %s58, %s59
      %p70 = scmp.eq.s32.totalorder %s24, 0
      %p71 = por %p69, %p70
      %p72 = scmp.ne.s32.totalorder %s58, %s59
      %p73 = scmp.eq.s32.totalorder %s25, 1
      %p74 = por %p72, %p73
      %p76 = scmp.ne.s32.totalorder %s59, %s75
      %p77 = scmp.eq.s32.totalorder %s25, 0
      %p78 = por %p76, %p77
      %s80 = sadd.s32 %s79, 1
      %p83 = scmp.eq.s32.totalorder %s19, 1
      %p84 = scmp.ne.s32.totalorder %s79, %s81
      %p85 = scmp.eq.s32.totalorder %s19, 0
      %p86 = por %p84, %p85
      %p87 = scmp.ne.s32.totalorder %s79, %s81
      %p88 = scmp.eq.s32.totalorder %s24, 1
      %p89 = por %p87, %p88
      %p90 = scmp.ne.s32.totalorder %s81, %s82
      %p91 = scmp.eq.s32.totalorder %s24, 0
      %p92 = por %p90, %p91
      %p93 = scmp.ne.s32.totalorder %s81, %s82
      %p94 = scmp.eq.s32.totalorder %s25, 1
      %p95 = por %p93, %p94
      %p97 = scmp.ne.s32.totalorder %s82, %s96
      %p98 = scmp.eq.s32.totalorder %s25, 0
      %p99 = por %p97, %p98
      %s101 = sadd.s32 %s100, 1
      %p104 = scmp.eq.s32.totalorder %s19, 1
      %p105 = scmp.ne.s32.totalorder %s100, %s102
      %p106 = scmp.eq.s32.totalorder %s19, 0
      %p107 = por %p105, %p106
      %p108 = scmp.ne.s32.totalorder %s100, %s102
      %p109 = scmp.eq.s32.totalorder %s24, 1
      %p110 = por %p108, %p109
      %p111 = scmp.ne.s32.totalorder %s102, %s103
      %p112 = scmp.eq.s32.totalorder %s24, 0
      %p113 = por %p111, %p112
      %p114 = scmp.ne.s32.totalorder %s102, %s103
      %p115 = scmp.eq.s32.totalorder %s25, 1
      %p116 = por %p114, %p115
      %p118 = scmp.ne.s32.totalorder %s103, %s117
      %p119 = scmp.eq.s32.totalorder %s25, 0
      %p120 = por %p118, %p119
      %s122 = sadd.s32 %s121, 1
      %p125 = scmp.eq.s32.totalorder %s19, 1
      %p126 = scmp.ne.s32.totalorder %s121, %s123
      %p127 = scmp.eq.s32.totalorder %s19, 0
      %p128 = por %p126, %p127
      %p129 = scmp.ne.s32.totalorder %s121, %s123
      %p130 = scmp.eq.s32.totalorder %s24, 1
      %p131 = por %p129, %p130
      %p132 = scmp.ne.s32.totalorder %s123, %s124
      %p133 = scmp.eq.s32.totalorder %s24, 0
      %p134 = por %p132, %p133
      %p135 = scmp.ne.s32.totalorder %s123, %s124
      %p136 = scmp.eq.s32.totalorder %s25, 1
      %p137 = por %p135, %p136
      %p139 = scmp.ne.s32.totalorder %s124, %s138
      %p140 = scmp.eq.s32.totalorder %s25, 0
      %p141 = por %p139, %p140
      %s143 = sadd.s32 %s142, 1
      %p146 = scmp.eq.s32.totalorder %s19, 1
      %p147 = scmp.ne.s32.totalorder %s142, %s144
      %p148 = scmp.eq.s32.totalorder %s19, 0
      %p149 = por %p147, %p148
      %p150 = scmp.ne.s32.totalorder %s142, %s144
      %p151 = scmp.eq.s32.totalorder %s24, 1
      %p152 = por %p150, %p151
      %p153 = scmp.ne.s32.totalorder %s144, %s145
      %p154 = scmp.eq.s32.totalorder %s24, 0
      %p155 = por %p153, %p154
      %p156 = scmp.ne.s32.totalorder %s144, %s145
      %p157 = scmp.eq.s32.totalorder %s25, 1
      %p158 = por %p156, %p157
      %p160 = scmp.ne.s32.totalorder %s145, %s159
      %p161 = scmp.eq.s32.totalorder %s25, 0
      %p162 = por %p160, %p161
      %s164 = sadd.s32 %s163, 1
      %p167 = scmp.eq.s32.totalorder %s19, 1
      %p168 = scmp.ne.s32.totalorder %s163, %s165
      %p169 = scmp.eq.s32.totalorder %s19, 0
      %p170 = por %p168, %p169
      %p171 = scmp.ne.s32.totalorder %s163, %s165
      %p172 = scmp.eq.s32.totalorder %s24, 1
      %p173 = por %p171, %p172
      %p174 = scmp.ne.s32.totalorder %s165, %s166
      %p175 = scmp.eq.s32.totalorder %s24, 0
      %p176 = por %p174, %p175
      %p177 = scmp.ne.s32.totalorder %s165, %s166
      %p178 = scmp.eq.s32.totalorder %s25, 1
      %p179 = por %p177, %p178
      %p181 = scmp.ne.s32.totalorder %s166, %s180
      %p182 = scmp.eq.s32.totalorder %s25, 0
      %p183 = por %p181, %p182
      %s185 = sadd.s32 %s184, 1
      %p188 = scmp.eq.s32.totalorder %s19, 1
      %p189 = scmp.ne.s32.totalorder %s184, %s186
      %p190 = scmp.eq.s32.totalorder %s19, 0
      %p191 = por %p189, %p190
      %p192 = scmp.ne.s32.totalorder %s184, %s186
      %p193 = scmp.eq.s32.totalorder %s24, 1
      %p194 = por %p192, %p193
      %p195 = scmp.ne.s32.totalorder %s186, %s187
      %p196 = scmp.eq.s32.totalorder %s24, 0
      %p197 = por %p195, %p196
      %p198 = scmp.ne.s32.totalorder %s186, %s187
      %p199 = scmp.eq.s32.totalorder %s25, 1
      %p200 = por %p198, %p199
      %p202 = scmp.ne.s32.totalorder %s187, %s201
      %p203 = scmp.eq.s32.totalorder %s25, 0
      %p204 = por %p202, %p203
      %s206 = sadd.s32 %s205, 1
      %p209 = scmp.eq.s32.totalorder %s19, 1
      %p210 = scmp.ne.s32.totalorder %s205, %s207
      %p211 = scmp.eq.s32.totalorder %s19, 0
      %p212 = por %p210, %p211
      %p213 = scmp.ne.s32.totalorder %s205, %s207
      %p214 = scmp.eq.s32.totalorder %s24, 1
      %p215 = por %p213, %p214
      %p216 = scmp.ne.s32.totalorder %s207, %s208
      %p217 = scmp.eq.s32.totalorder %s24, 0
      %p218 = por %p216, %p217
      %p219 = scmp.ne.s32.totalorder %s207, %s208
      %p220 = scmp.eq.s32.totalorder %s25, 1
      %p221 = por %p219, %p220
      %p223 = scmp.ne.s32.totalorder %s208, %s222
      %p224 = scmp.eq.s32.totalorder %s25, 0
      %p225 = por %p223, %p224
      %s227 = sadd.s32 %s226, 1
      %p230 = scmp.eq.s32.totalorder %s19, 1
      %p231 = scmp.ne.s32.totalorder %s226, %s228
      %p232 = scmp.eq.s32.totalorder %s19, 0
      %p233 = por %p231, %p232
      %p234 = scmp.ne.s32.totalorder %s226, %s228
      %p235 = scmp.eq.s32.totalorder %s24, 1
      %p236 = por %p234, %p235
      %p237 = scmp.ne.s32.totalorder %s228, %s229
      %p238 = scmp.eq.s32.totalorder %s24, 0
      %p239 = por %p237, %p238
      %p240 = scmp.ne.s32.totalorder %s228, %s229
      %p241 = scmp.eq.s32.totalorder %s25, 1
      %p242 = por %p240, %p241
      %p244 = scmp.ne.s32.totalorder %s229, %s243
      %p245 = scmp.eq.s32.totalorder %s25, 0
      %p246 = por %p244, %p245
      %s247 = ssub.s32 %s19, %s26
      %p248 = scmp.eq.s32.totalorder %s247, 0
      %s250 = sadd.s32 %s249, 1
      %s251 = scalar_select %p248, %s249, %s250
      %p254 = pneg %p248
      %p255 = scmp.eq.s32.totalorder %s19, 1
      %p256 = por %p254, %p255
      %p257 = scmp.ne.s32.totalorder %s249, %s252
      %p258 = scmp.eq.s32.totalorder %s19, 0
      %p259 = por %p257, %p258
      %p260 = scmp.ne.s32.totalorder %s249, %s252
      %p261 = scmp.eq.s32.totalorder %s24, 1
      %p262 = por %p260, %p261
      %p263 = scmp.ne.s32.totalorder %s252, %s253
      %p264 = scmp.eq.s32.totalorder %s24, 0
      %p265 = por %p263, %p264
      %p266 = scmp.ne.s32.totalorder %s252, %s253
      %p267 = scmp.eq.s32.totalorder %s25, 1
      %p268 = por %p266, %p267
      %p270 = scmp.ne.s32.totalorder %s253, %s269
      %p271 = scmp.eq.s32.totalorder %s25, 0
      %p272 = por %p270, %p271
      %p273 = scmp.le.s32.totalorder 1, %s19
      %p274 = scmp.lt.s32.totalorder %s19, 3
      %p275 = pnand %p273, %p274
      %p276 = pneg %p275
      // Predicated region
      $region9: #{_dit_block_impl.1} parent=5 // pred_check
        _
      $region10: #{_dit_block_impl.1} parent=5 // pred_check_branch
        %278 = sbr.rel (%p275) target = $region12
      $region11: #{_dit_block_impl.1} parent=5 // pred_region
        %s279 = ssub.s32 %s19, 1
        // Predicated region
        $region13: #{_dit_block_impl.1} parent=11 // pred_check
          %p280 = pneg %p92
        $region14: #{_dit_block_impl.1} parent=11 // pred_check_branch
          %282 = sbr.rel (%p280) target = $region16
        $region15: #{_dit_block_impl.1} parent=11 // pred_region
          _
        $region16: #{_dit_block_impl.1} parent=11 // pred_fallthru
          _
        // Predicated region
        $region17: #{_dit_block_impl.1} parent=11 // pred_check
          %p283 = pneg %p113
        $region18: #{_dit_block_impl.1} parent=11 // pred_check_branch
          %285 = sbr.rel (%p283) target = $region20
        $region19: #{_dit_block_impl.1} parent=11 // pred_region
          _
        $region20: #{_dit_block_impl.1} parent=11 // pred_fallthru
          _
        // Predicated region
        $region21: #{_dit_block_impl.1} parent=11 // pred_check
          %p286 = pneg %p134
        $region22: #{_dit_block_impl.1} parent=11 // pred_check_branch
          %288 = sbr.rel (%p286) target = $region24
        $region23: #{_dit_block_impl.1} parent=11 // pred_region
          _
        $region24: #{_dit_block_impl.1} parent=11 // pred_fallthru
          _
        // Predicated region
        $region25: #{_dit_block_impl.1} parent=11 // pred_check
          %p289 = pneg %p155
        $region26: #{_dit_block_impl.1} parent=11 // pred_check_branch
          %291 = sbr.rel (%p289) target = $region28
        $region27: #{_dit_block_impl.1} parent=11 // pred_region
          _
        $region28: #{_dit_block_impl.1} parent=11 // pred_fallthru
          _
        // Predicated region
        $region29: #{_dit_block_impl.1} parent=11 // pred_check
          %p292 = pneg %p176
        $region30: #{_dit_block_impl.1} parent=11 // pred_check_branch
          %294 = sbr.rel (%p292) target = $region32
        $region31: #{_dit_block_impl.1} parent=11 // pred_region
          _
        $region32: #{_dit_block_impl.1} parent=11 // pred_fallthru
          _
        // Predicated region
        $region33: #{_dit_block_impl.1} parent=11 // pred_check
          %p295 = pneg %p197
        $region34: #{_dit_block_impl.1} parent=11 // pred_check_branch
          %297 = sbr.rel (%p295) target = $region36
        $region35: #{_dit_block_impl.1} parent=11 // pred_region
          _
        $region36: #{_dit_block_impl.1} parent=11 // pred_fallthru
          _
        // Predicated region
        $region37: #{_dit_block_impl.1} parent=11 // pred_check
          %p298 = pneg %p218
        $region38: #{_dit_block_impl.1} parent=11 // pred_check_branch
          %300 = sbr.rel (%p298) target = $region40
        $region39: #{_dit_block_impl.1} parent=11 // pred_region
          _
        $region40: #{_dit_block_impl.1} parent=11 // pred_fallthru
          _
        // Predicated region
        $region41: #{_dit_block_impl.1} parent=11 // pred_check
          %p301 = pneg %p239
        $region42: #{_dit_block_impl.1} parent=11 // pred_check_branch
          %303 = sbr.rel (%p301) target = $region44
        $region43: #{_dit_block_impl.1} parent=11 // pred_region
          _
        $region44: #{_dit_block_impl.1} parent=11 // pred_fallthru
          _
      $region12: #{_dit_block_impl.1} parent=5 // pred_fallthru
        _
      %p304 = scmp.lt.s32.totalorder %s19, 2
      // Predicated region
      $region45: #{_dit_block_impl.1} parent=5 // pred_check
        %p305 = pneg %p304
      $region46: #{_dit_block_impl.1} parent=5 // pred_check_branch
        %307 = sbr.rel (%p305) target = $region48
      $region47: #{_dit_block_impl.1} parent=5 // pred_region
        // Predicated region
        $region49: #{_dit_block_impl.1} parent=47 // pred_check
          %p308 = pneg %p39
        $region50: #{_dit_block_impl.1} parent=47 // pred_check_branch
          %310 = sbr.rel (%p308) target = $region52
        $region51: #{_dit_block_impl.1} parent=47 // pred_region
          %p311 = scmp.lt.s32.totalorder %s19, 1
          %s312 = scalar_select %p311, %s19, 1
          %s313 = smul.addr %s312, 8
          %s314 = scalar_lea.vmem %s0, %s313
        $region52: #{_dit_block_impl.1} parent=47 // pred_fallthru
          _
        // Predicated region
        $region53: #{_dit_block_impl.1} parent=47 // pred_check
          %p315 = pneg %p65
        $region54: #{_dit_block_impl.1} parent=47 // pred_check_branch
          %317 = sbr.rel (%p315) target = $region56
        $region55: #{_dit_block_impl.1} parent=47 // pred_region
          %p318 = scmp.lt.s32.totalorder %s19, 1
          %s319 = scalar_select %p318, %s19, 1
          %s320 = smul.addr %s319, 8
          %s321 = scalar_lea.vmem %s1, %s320
        $region56: #{_dit_block_impl.1} parent=47 // pred_fallthru
          _
      $region48: #{_dit_block_impl.1} parent=5 // pred_fallthru
        _
      %p322 = scmp.le.s32.totalorder 1, %s19
      %p323 = scmp.lt.s32.totalorder %s19, 3
      %p324 = pnand %p322, %p323
      %p325 = pneg %p324
      // Predicated region
      $region57: #{_dit_block_impl.1} parent=5 // pred_check
        _
      $region58: #{_dit_block_impl.1} parent=5 // pred_check_branch
        %327 = sbr.rel (%p324) target = $region60
      $region59: #{_dit_block_impl.1} parent=5 // pred_region
        %s328 = ssub.s32 %s19, 1
        %p329 = scmp.lt.s32.totalorder %s24, 1
        %s330 = scalar_select %p329, %s24, 1
        %s331 = smul.addr %s330, 8
        %s332 = scalar_lea.vmem %s0, %s331
        %p333 = pneg %p45
        %p334 = pneg %p42
        %p335 = scmp.lt.s32.totalorder %s24, 1
        %s336 = scalar_select %p335, %s24, 1
        %s337 = smul.addr %s336, 8
        %s338 = scalar_lea.vmem %s1, %s337
        %p339 = pneg %p71
        %p340 = pneg %p68
        %p341 = pneg %p92
        %p342 = pneg %p89
        %p343 = pneg %p113
        %p344 = pneg %p110
        %p345 = pneg %p134
        %p346 = pneg %p131
        %p347 = pneg %p155
        %p348 = pneg %p152
        %p349 = pneg %p176
        %p350 = pneg %p173
        %p351 = pneg %p197
        %p352 = pneg %p194
        %p353 = pneg %p218
        %p354 = pneg %p215
        %p355 = pneg %p239
        %p356 = pneg %p236
        %p357 = pneg %p265
        %p358 = pneg %p262
        %s359 = sand.u32 %s252, 1
        %s360 = scalar_lea.sflag [#allocation3], %s359
        %s361 = sand.u32 %s252, 1
        %s362 = smul.addr %s361, 8
        %s363 = scalar_lea.vmem [#allocation2], %s362
        %p364 = scmp.lt.s32.totalorder %s24, 1
        %s365 = scalar_select %p364, %s24, 1
        %s366 = smul.addr %s365, 8
        %s367 = scalar_lea.vmem %s0, %s366
        %p368 = scmp.lt.s32.totalorder %s24, 1
        %s369 = scalar_select %p368, %s24, 1
        %s370 = smul.addr %s369, 8
        %s371 = scalar_lea.vmem %s1, %s370
        %v373 = vld [vmem:[%s367] sm:$0xff]
        %v374 = vld [vmem:[%s371] sm:$0x3f]
        %vm375 = vcmask 261120
        %v376 = vsel %vm375, %v373, 0.0
        %377 = vadd.xlane.f32.xlu0 %v376
        %v378 = vpop.xlane.xlu0 %377
        %v379 = vrcp.pop 32.0
        %v380 = vmul.f32 %v378, %v379
        %v381 = vsub.f32 %v373, %v380
        %v382 = vmul.f32 %v381, %v381
        %v383 = vsel %vm375, %v382, 0.0
        %384 = vadd.xlane.f32.xlu0 %v383
        %v385 = vpop.xlane.xlu0 %384
        %v386 = vmul.f32 %v385, %v379
        %v387 = vadd.f32 %v386, 1e-06
        %v388 = vrsqrt.pop %v387
        %v389 = vmul.f32 %v381, %v388
        %v390 = vadd.f32 %v374, 1.0
        %v391 = vlaneseq
        %v392 = vshrl.u32 %v391, 7
        %v393 = vsub.s32 1, %v392
        %v394 = vrot.slane %v390, %v393
        %v395 = vmul.f32 %v389, %v394
        %v396 = vlaneseq
        %v397 = vshrl.u32 %v396, 7
        %v398 = vsub.s32 0, %v397
        %v399 = vrot.slane %v374, %v398
        %v400 = vadd.f32 %v395, %v399
        %v401 = vpack.c.bf16 %v400, %v400
        %v402 = vld [vmem:[%s2] sm:$0xf]
        %v403 = vld [vmem:[%s2 + $0x4] sm:$0xf]
        %v404 = vld [vmem:[%s2 + $0x8] sm:$0xf]
        %v405 = vld [vmem:[%s2 + $0xc] sm:$0xf]
        %v406 = vld [vmem:[%s3] sm:$0x1]
        %v408 = vlaneseq
        %v409 = vshrl.u32 %v408, 7
        %v410 = vsub.s32 0, %v409
        %v411 = vrot.slane %v406, %v410
        %v417 = vunpack.c.l.b16 %v402
        %v418 = vunpack.c.l.b16 %v403
        %v419 = vunpack.c.l.b16 %v404
        %v420 = vunpack.c.l.b16 %v405
        %v421 = vpack.c.b16 %v418, %v417
        %v422 = vpack.c.b16 %v420, %v419
        %v426 = vsel %vm375, %v401, 0
        %428 = vmatprep.subr.bf16.mxu0 0
        %429 = vmatpush1.bf16.msra.mxu0 %v421
        %430 = vmatprep.subr.bf16.mxu0 0
        %431 = vmatpush1.bf16.msra.mxu0 %v422
        %432 = vmatprep.subr.bf16.mxu0 0
        %433 = vmatpush1.bf16.msra.mxu0 0
        %434 = vmatprep.subr.bf16.mxu0 0
        %435 = vmatpush1.bf16.msra.mxu0 0
        %436 = vmatprep.subr.bf16.mxu0 0
        %437 = vmatpush1.bf16.msra.mxu0 0
        %438 = vmatprep.subr.bf16.mxu0 0
        %439 = vmatpush1.bf16.msra.mxu0 0
        %440 = vmatprep.subr.bf16.mxu0 0
        %441 = vmatpush1.bf16.msra.mxu0 0
        %442 = vmatprep.subr.bf16.mxu0 0
        %443 = vmatpush1.bf16.msra.mxu0 0
        %444 = vmatprep.subr.bf16.mxu0 0
        %445 = vmatpush1.bf16.msra.mxu0 0
        %446 = vmatprep.subr.bf16.mxu0 0
        %447 = vmatpush1.bf16.msra.mxu0 0
        %448 = vmatprep.subr.bf16.mxu0 0
        %449 = vmatpush1.bf16.msra.mxu0 0
        %450 = vmatprep.subr.bf16.mxu0 0
        %451 = vmatpush1.bf16.msra.mxu0 0
        %452 = vmatprep.subr.bf16.mxu0 0
        %453 = vmatpush1.bf16.msra.mxu0 0
        %454 = vmatprep.subr.bf16.mxu0 0
        %455 = vmatpush1.bf16.msra.mxu0 0
        %456 = vmatprep.subr.bf16.mxu0 0
        %457 = vmatpush1.bf16.msra.mxu0 0
        %458 = vmatprep.subr.bf16.mxu0 0
        %459 = vmatpush1.bf16.msra.mxu0 0
        %460 = vmatprep.mubr.bf16.mxu0 0
        %461 = vmatmul.mubr.bf16.gmra.mrb[0].mxu0 %v426
        %v462 = vpop.f32.mrb[0].mxu0
        %v463 = vadd.f32 %v411, %v462
        %v464 = vpop.f32.mrb[0].mxu0
        %v465 = vpop.f32.mrb[0].mxu0
        %v466 = vpop.f32.mrb[0].mxu0
        %467 = vdwg.mxu0
        %s468 = scalar_lea.vmem %s2, 64
        %v469 = vld [vmem:[%s468] sm:$0xf]
        %v470 = vld [vmem:[%s468 + $0x4] sm:$0xf]
        %v471 = vld [vmem:[%s468 + $0x8] sm:$0xf]
        %v472 = vld [vmem:[%s468 + $0xc] sm:$0xf]
        %s473 = scalar_lea.vmem %s3, 4
        %v474 = vld [vmem:[%s473] sm:$0x1]
        %v476 = vlaneseq
        %v477 = vshrl.u32 %v476, 7
        %v478 = vsub.s32 0, %v477
        %v479 = vrot.slane %v474, %v478
        %v485 = vunpack.c.l.b16 %v469
        %v486 = vunpack.c.l.b16 %v470
        %v487 = vunpack.c.l.b16 %v471
        %v488 = vunpack.c.l.b16 %v472
        %v489 = vpack.c.b16 %v486, %v485
        %v490 = vpack.c.b16 %v488, %v487
        %493 = vmatprep.subr.bf16.mxu0 0
        %494 = vmatpush1.bf16.msra.mxu0 %v489
        %495 = vmatprep.subr.bf16.mxu0 0
        %496 = vmatpush1.bf16.msra.mxu0 %v490
        %497 = vmatprep.subr.bf16.mxu0 0
        %498 = vmatpush1.bf16.msra.mxu0 0
        %499 = vmatprep.subr.bf16.mxu0 0
        %500 = vmatpush1.bf16.msra.mxu0 0
        %501 = vmatprep.subr.bf16.mxu0 0
        %502 = vmatpush1.bf16.msra.mxu0 0
        %503 = vmatprep.subr.bf16.mxu0 0
        %504 = vmatpush1.bf16.msra.mxu0 0
        %505 = vmatprep.subr.bf16.mxu0 0
        %506 = vmatpush1.bf16.msra.mxu0 0
        %507 = vmatprep.subr.bf16.mxu0 0
        %508 = vmatpush1.bf16.msra.mxu0 0
        %509 = vmatprep.subr.bf16.mxu0 0
        %510 = vmatpush1.bf16.msra.mxu0 0
        %511 = vmatprep.subr.bf16.mxu0 0
        %512 = vmatpush1.bf16.msra.mxu0 0
        %513 = vmatprep.subr.bf16.mxu0 0
        %514 = vmatpush1.bf16.msra.mxu0 0
        %515 = vmatprep.subr.bf16.mxu0 0
        %516 = vmatpush1.bf16.msra.mxu0 0
        %517 = vmatprep.subr.bf16.mxu0 0
        %518 = vmatpush1.bf16.msra.mxu0 0
        %519 = vmatprep.subr.bf16.mxu0 0
        %520 = vmatpush1.bf16.msra.mxu0 0
        %521 = vmatprep.subr.bf16.mxu0 0
        %522 = vmatpush1.bf16.msra.mxu0 0
        %523 = vmatprep.subr.bf16.mxu0 0
        %524 = vmatpush1.bf16.msra.mxu0 0
        %525 = vmatprep.mubr.bf16.mxu0 0
        %526 = vmatmul.mubr.bf16.gmra.mrb[0].mxu0 %v426
        %v527 = vpop.f32.mrb[0].mxu0
        %v528 = vadd.f32 %v479, %v527
        %v529 = vpop.f32.mrb[0].mxu0
        %v530 = vpop.f32.mrb[0].mxu0
        %v531 = vpop.f32.mrb[0].mxu0
        %532 = vdwg.mxu0
        %s533 = scalar_lea.vmem %s2, 128
        %v534 = vld [vmem:[%s533] sm:$0xf]
        %v535 = vld [vmem:[%s533 + $0x4] sm:$0xf]
        %v536 = vld [vmem:[%s533 + $0x8] sm:$0xf]
        %v537 = vld [vmem:[%s533 + $0xc] sm:$0xf]
        %s538 = scalar_lea.vmem %s3, 8
        %v539 = vld [vmem:[%s538] sm:$0x1]
        %v541 = vlaneseq
        %v542 = vshrl.u32 %v541, 7
        %v543 = vsub.s32 0, %v542
        %v544 = vrot.slane %v539, %v543
        %v550 = vunpack.c.l.b16 %v534
        %v551 = vunpack.c.l.b16 %v535
        %v552 = vunpack.c.l.b16 %v536
        %v553 = vunpack.c.l.b16 %v537
        %v554 = vpack.c.b16 %v551, %v550
        %v555 = vpack.c.b16 %v553, %v552
        %558 = vmatprep.subr.bf16.mxu0 0
        %559 = vmatpush1.bf16.msra.mxu0 %v554
        %560 = vmatprep.subr.bf16.mxu0 0
        %561 = vmatpush1.bf16.msra.mxu0 %v555
        %562 = vmatprep.subr.bf16.mxu0 0
        %563 = vmatpush1.bf16.msra.mxu0 0
        %564 = vmatprep.subr.bf16.mxu0 0
        %565 = vmatpush1.bf16.msra.mxu0 0
        %566 = vmatprep.subr.bf16.mxu0 0
        %567 = vmatpush1.bf16.msra.mxu0 0
        %568 = vmatprep.subr.bf16.mxu0 0
        %569 = vmatpush1.bf16.msra.mxu0 0
        %570 = vmatprep.subr.bf16.mxu0 0
        %571 = vmatpush1.bf16.msra.mxu0 0
        %572 = vmatprep.subr.bf16.mxu0 0
        %573 = vmatpush1.bf16.msra.mxu0 0
        %574 = vmatprep.subr.bf16.mxu0 0
        %575 = vmatpush1.bf16.msra.mxu0 0
        %576 = vmatprep.subr.bf16.mxu0 0
        %577 = vmatpush1.bf16.msra.mxu0 0
        %578 = vmatprep.subr.bf16.mxu0 0
        %579 = vmatpush1.bf16.msra.mxu0 0
        %580 = vmatprep.subr.bf16.mxu0 0
        %581 = vmatpush1.bf16.msra.mxu0 0
        %582 = vmatprep.subr.bf16.mxu0 0
        %583 = vmatpush1.bf16.msra.mxu0 0
        %584 = vmatprep.subr.bf16.mxu0 0
        %585 = vmatpush1.bf16.msra.mxu0 0
        %586 = vmatprep.subr.bf16.mxu0 0
        %587 = vmatpush1.bf16.msra.mxu0 0
        %588 = vmatprep.subr.bf16.mxu0 0
        %589 = vmatpush1.bf16.msra.mxu0 0
        %590 = vmatprep.mubr.bf16.mxu0 0
        %591 = vmatmul.mubr.bf16.gmra.mrb[0].mxu0 %v426
        %v592 = vpop.f32.mrb[0].mxu0
        %v593 = vadd.f32 %v544, %v592
        %v594 = vpop.f32.mrb[0].mxu0
        %v595 = vpop.f32.mrb[0].mxu0
        %v596 = vpop.f32.mrb[0].mxu0
        %597 = vdwg.mxu0
        %v598 = vmul.f32 %v463, 0.35355338
        %v599 = vpack.c.bf16 %v598, %v598
        %v600 = vpack.c.bf16 %v528, %v528
        %vm601 = vcmask 64512
        %v603 = vsel %vm601, %v599, 0
        %v606 = vsel %vm601, %v600, 0
        %608 = vmatprep.subr.bf16.mxu0 0
        %609 = vmatpush1.bf16.xpose.msra.mxu0 %v606
        %610 = vmatprep.subr.bf16.mxu0 0
        %611 = vmatpush1.bf16.xpose.msra.mxu0 0
        %612 = vmatprep.subr.bf16.mxu0 0
        %613 = vmatpush1.bf16.xpose.msra.mxu0 0
        %614 = vmatprep.subr.bf16.mxu0 0
        %615 = vmatpush1.bf16.xpose.msra.mxu0 0
        %616 = vmatprep.subr.bf16.mxu0 0
        %617 = vmatpush1.bf16.xpose.msra.mxu0 0
        %618 = vmatprep.subr.bf16.mxu0 0
        %619 = vmatpush1.bf16.xpose.msra.mxu0 0
        %620 = vmatprep.subr.bf16.mxu0 0
        %621 = vmatpush1.bf16.xpose.msra.mxu0 0
        %622 = vmatprep.subr.bf16.mxu0 0
        %623 = vmatpush1.bf16.xpose.msra.mxu0 0
        %624 = vmatprep.subr.bf16.mxu0 0
        %625 = vmatpush1.bf16.xpose.msra.mxu0 0
        %626 = vmatprep.subr.bf16.mxu0 0
        %627 = vmatpush1.bf16.xpose.msra.mxu0 0
        %628 = vmatprep.subr.bf16.mxu0 0
        %629 = vmatpush1.bf16.xpose.msra.mxu0 0
        %630 = vmatprep.subr.bf16.mxu0 0
        %631 = vmatpush1.bf16.xpose.msra.mxu0 0
        %632 = vmatprep.subr.bf16.mxu0 0
        %633 = vmatpush1.bf16.xpose.msra.mxu0 0
        %634 = vmatprep.subr.bf16.mxu0 0
        %635 = vmatpush1.bf16.xpose.msra.mxu0 0
        %636 = vmatprep.subr.bf16.mxu0 0
        %637 = vmatpush1.bf16.xpose.msra.mxu0 0
        %638 = vmatprep.subr.bf16.mxu0 0
        %639 = vmatpush1.bf16.xpose.msra.mxu0 0
        %640 = vmatprep.mubr.bf16.mxu0 0
        %641 = vmatmul.mubr.bf16.gmra.mrb[0].mxu0 %v603
        %v642 = vpop.f32.mrb[0].mxu0
        %v643 = vadd.f32 0.0, %v642
        %v644 = vpop.f32.mrb[0].mxu0
        %v645 = vpop.f32.mrb[0].mxu0
        %v646 = vpop.f32.mrb[0].mxu0
        %647 = vdwg.mxu0
        %v648 = vsel %vm601, %v643, -inf
        %649 = vmax.xlane.f32.xlu0 %v648
        %v650 = vpop.xlane.xlu0 %649
        %v651 = vsub.f32 %v643, %v650
        %v652 = vmul.f32 %v651, 1.442695
        %v653 = vpow.pop %v652
        %v654 = vsel %vm601, %v653, 0.0
        %655 = vadd.xlane.f32.xlu0 %v654
        %v656 = vpop.xlane.xlu0 %655
        %v657 = vrcp.pop %v656
        %v658 = vmul.f32 %v653, %v657
        %v659 = vpack.c.bf16 %v658, %v658
        %v660 = vpack.c.bf16 %v593, %v593
        %v662 = vsel %vm601, %v659, 0
        %vm664 = vcmask 1043456
        %v666 = vsel %vm664, %v660, 0
        %668 = vmatprep.subr.bf16.mxu0 0
        %669 = vmatpush1.bf16.msra.mxu0 %v666
        %670 = vmatprep.subr.bf16.mxu0 0
        %671 = vmatpush1.bf16.msra.mxu0 0
        %672 = vmatprep.subr.bf16.mxu0 0
        %673 = vmatpush1.bf16.msra.mxu0 0
        %674 = vmatprep.subr.bf16.mxu0 0
        %675 = vmatpush1.bf16.msra.mxu0 0
        %676 = vmatprep.subr.bf16.mxu0 0
        %677 = vmatpush1.bf16.msra.mxu0 0
        %678 = vmatprep.subr.bf16.mxu0 0
        %679 = vmatpush1.bf16.msra.mxu0 0
        %680 = vmatprep.subr.bf16.mxu0 0
        %681 = vmatpush1.bf16.msra.mxu0 0
        %682 = vmatprep.subr.bf16.mxu0 0
        %683 = vmatpush1.bf16.msra.mxu0 0
        %684 = vmatprep.subr.bf16.mxu0 0
        %685 = vmatpush1.bf16.msra.mxu0 0
        %686 = vmatprep.subr.bf16.mxu0 0
        %687 = vmatpush1.bf16.msra.mxu0 0
        %688 = vmatprep.subr.bf16.mxu0 0
        %689 = vmatpush1.bf16.msra.mxu0 0
        %690 = vmatprep.subr.bf16.mxu0 0
        %691 = vmatpush1.bf16.msra.mxu0 0
        %692 = vmatprep.subr.bf16.mxu0 0
        %693 = vmatpush1.bf16.msra.mxu0 0
        %694 = vmatprep.subr.bf16.mxu0 0
        %695 = vmatpush1.bf16.msra.mxu0 0
        %696 = vmatprep.subr.bf16.mxu0 0
        %697 = vmatpush1.bf16.msra.mxu0 0
        %698 = vmatprep.subr.bf16.mxu0 0
        %699 = vmatpush1.bf16.msra.mxu0 0
        %700 = vmatprep.mubr.bf16.mxu0 0
        %701 = vmatmul.mubr.bf16.gmra.mrb[0].mxu0 %v662
        %v702 = vpop.f32.mrb[0].mxu0
        %v703 = vadd.f32 0.0, %v702
        %v704 = vpop.f32.mrb[0].mxu0
        %v705 = vpop.f32.mrb[0].mxu0
        %v706 = vpop.f32.mrb[0].mxu0
        %707 = vdwg.mxu0
        %v708 = vpack.c.bf16 %v703, %v703
        %v709 = vld [vmem:[%s4] sm:$0xf]
        %s710 = scalar_lea.vmem %s2, 16
        %v711 = vld [vmem:[%s710] sm:$0xf]
        %v712 = vld [vmem:[%s710 + $0x4] sm:$0xf]
        %v713 = vld [vmem:[%s710 + $0x8] sm:$0xf]
        %v714 = vld [vmem:[%s710 + $0xc] sm:$0xf]
        %s715 = scalar_lea.vmem %s3, 1
        %v716 = vld [vmem:[%s715] sm:$0x1]
        %v718 = vlaneseq
        %v719 = vshrl.u32 %v718, 7
        %v720 = vsub.s32 0, %v719
        %v721 = vrot.slane %v716, %v720
        %v727 = vunpack.c.l.b16 %v711
        %v728 = vunpack.c.l.b16 %v712
        %v729 = vunpack.c.l.b16 %v713
        %v730 = vunpack.c.l.b16 %v714
        %v731 = vpack.c.b16 %v728, %v727
        %v732 = vpack.c.b16 %v730, %v729
        %735 = vmatprep.subr.bf16.mxu0 0
        %736 = vmatpush1.bf16.msra.mxu0 %v731
        %737 = vmatprep.subr.bf16.mxu0 0
        %738 = vmatpush1.bf16.msra.mxu0 %v732
        %739 = vmatprep.subr.bf16.mxu0 0
        %740 = vmatpush1.bf16.msra.mxu0 0
        %741 = vmatprep.subr.bf16.mxu0 0
        %742 = vmatpush1.bf16.msra.mxu0 0
        %743 = vmatprep.subr.bf16.mxu0 0
        %744 = vmatpush1.bf16.msra.mxu0 0
        %745 = vmatprep.subr.bf16.mxu0 0
        %746 = vmatpush1.bf16.msra.mxu0 0
        %747 = vmatprep.subr.bf16.mxu0 0
        %748 = vmatpush1.bf16.msra.mxu0 0
        %749 = vmatprep.subr.bf16.mxu0 0
        %750 = vmatpush1.bf16.msra.mxu0 0
        %751 = vmatprep.subr.bf16.mxu0 0
        %752 = vmatpush1.bf16.msra.mxu0 0
        %753 = vmatprep.subr.bf16.mxu0 0
        %754 = vmatpush1.bf16.msra.mxu0 0
        %755 = vmatprep.subr.bf16.mxu0 0
        %756 = vmatpush1.bf16.msra.mxu0 0
        %757 = vmatprep.subr.bf16.mxu0 0
        %758 = vmatpush1.bf16.msra.mxu0 0
        %759 = vmatprep.subr.bf16.mxu0 0
        %760 = vmatpush1.bf16.msra.mxu0 0
        %761 = vmatprep.subr.bf16.mxu0 0
        %762 = vmatpush1.bf16.msra.mxu0 0
        %763 = vmatprep.subr.bf16.mxu0 0
        %764 = vmatpush1.bf16.msra.mxu0 0
        %765 = vmatprep.subr.bf16.mxu0 0
        %766 = vmatpush1.bf16.msra.mxu0 0
        %767 = vmatprep.mubr.bf16.mxu0 0
        %768 = vmatmul.mubr.bf16.gmra.mrb[0].mxu0 %v426
        %v769 = vpop.f32.mrb[0].mxu0
        %v770 = vadd.f32 %v721, %v769
        %v771 = vpop.f32.mrb[0].mxu0
        %v772 = vpop.f32.mrb[0].mxu0
        %v773 = vpop.f32.mrb[0].mxu0
        %774 = vdwg.mxu0
        %s775 = scalar_lea.vmem %s2, 80
        %v776 = vld [vmem:[%s775] sm:$0xf]
        %v777 = vld [vmem:[%s775 + $0x4] sm:$0xf]
        %v778 = vld [vmem:[%s775 + $0x8] sm:$0xf]
        %v779 = vld [vmem:[%s775 + $0xc] sm:$0xf]
        %s780 = scalar_lea.vmem %s3, 5
        %v781 = vld [vmem:[%s780] sm:$0x1]
        %v783 = vlaneseq
        %v784 = vshrl.u32 %v783, 7
        %v785 = vsub.s32 0, %v784
        %v786 = vrot.slane %v781, %v785
        %v792 = vunpack.c.l.b16 %v776
        %v793 = vunpack.c.l.b16 %v777
        %v794 = vunpack.c.l.b16 %v778
        %v795 = vunpack.c.l.b16 %v779
        %v796 = vpack.c.b16 %v793, %v792
        %v797 = vpack.c.b16 %v795, %v794
        %800 = vmatprep.subr.bf16.mxu0 0
        %801 = vmatpush1.bf16.msra.mxu0 %v796
        %802 = vmatprep.subr.bf16.mxu0 0
        %803 = vmatpush1.bf16.msra.mxu0 %v797
        %804 = vmatprep.subr.bf16.mxu0 0
        %805 = vmatpush1.bf16.msra.mxu0 0
        %806 = vmatprep.subr.bf16.mxu0 0
        %807 = vmatpush1.bf16.msra.mxu0 0
        %808 = vmatprep.subr.bf16.mxu0 0
        %809 = vmatpush1.bf16.msra.mxu0 0
        %810 = vmatprep.subr.bf16.mxu0 0
        %811 = vmatpush1.bf16.msra.mxu0 0
        %812 = vmatprep.subr.bf16.mxu0 0
        %813 = vmatpush1.bf16.msra.mxu0 0
        %814 = vmatprep.subr.bf16.mxu0 0
        %815 = vmatpush1.bf16.msra.mxu0 0
        %816 = vmatprep.subr.bf16.mxu0 0
        %817 = vmatpush1.bf16.msra.mxu0 0
        %818 = vmatprep.subr.bf16.mxu0 0
        %819 = vmatpush1.bf16.msra.mxu0 0
        %820 = vmatprep.subr.bf16.mxu0 0
        %821 = vmatpush1.bf16.msra.mxu0 0
        %822 = vmatprep.subr.bf16.mxu0 0
        %823 = vmatpush1.bf16.msra.mxu0 0
        %824 = vmatprep.subr.bf16.mxu0 0
        %825 = vmatpush1.bf16.msra.mxu0 0
        %826 = vmatprep.subr.bf16.mxu0 0
        %827 = vmatpush1.bf16.msra.mxu0 0
        %828 = vmatprep.subr.bf16.mxu0 0
        %829 = vmatpush1.bf16.msra.mxu0 0
        %830 = vmatprep.subr.bf16.mxu0 0
        %831 = vmatpush1.bf16.msra.mxu0 0
        %832 = vmatprep.mubr.bf16.mxu0 0
        %833 = vmatmul.mubr.bf16.gmra.mrb[0].mxu0 %v426
        %v834 = vpop.f32.mrb[0].mxu0
        %v835 = vadd.f32 %v786, %v834
        %v836 = vpop.f32.mrb[0].mxu0
        %v837 = vpop.f32.mrb[0].mxu0
        %v838 = vpop.f32.mrb[0].mxu0
        %839 = vdwg.mxu0
        %s840 = scalar_lea.vmem %s2, 144
        %v841 = vld [vmem:[%s840] sm:$0xf]
        %v842 = vld [vmem:[%s840 + $0x4] sm:$0xf]
        %v843 = vld [vmem:[%s840 + $0x8] sm:$0xf]
        %v844 = vld [vmem:[%s840 + $0xc] sm:$0xf]
        %s845 = scalar_lea.vmem %s3, 9
        %v846 = vld [vmem:[%s845] sm:$0x1]
        %v848 = vlaneseq
        %v849 = vshrl.u32 %v848, 7
        %v850 = vsub.s32 0, %v849
        %v851 = vrot.slane %v846, %v850
        %v857 = vunpack.c.l.b16 %v841
        %v858 = vunpack.c.l.b16 %v842
        %v859 = vunpack.c.l.b16 %v843
        %v860 = vunpack.c.l.b16 %v844
        %v861 = vpack.c.b16 %v858, %v857
        %v862 = vpack.c.b16 %v860, %v859
        %865 = vmatprep.subr.bf16.mxu0 0
        %866 = vmatpush1.bf16.msra.mxu0 %v861
        %867 = vmatprep.subr.bf16.mxu0 0
        %868 = vmatpush1.bf16.msra.mxu0 %v862
        %869 = vmatprep.subr.bf16.mxu0 0
        %870 = vmatpush1.bf16.msra.mxu0 0
        %871 = vmatprep.subr.bf16.mxu0 0
        %872 = vmatpush1.bf16.msra.mxu0 0
        %873 = vmatprep.subr.bf16.mxu0 0
        %874 = vmatpush1.bf16.msra.mxu0 0
        %875 = vmatprep.subr.bf16.mxu0 0
        %876 = vmatpush1.bf16.msra.mxu0 0
        %877 = vmatprep.subr.bf16.mxu0 0
        %878 = vmatpush1.bf16.msra.mxu0 0
        %879 = vmatprep.subr.bf16.mxu0 0
        %880 = vmatpush1.bf16.msra.mxu0 0
        %881 = vmatprep.subr.bf16.mxu0 0
        %882 = vmatpush1.bf16.msra.mxu0 0
        %883 = vmatprep.subr.bf16.mxu0 0
        %884 = vmatpush1.bf16.msra.mxu0 0
        %885 = vmatprep.subr.bf16.mxu0 0
        %886 = vmatpush1.bf16.msra.mxu0 0
        %887 = vmatprep.subr.bf16.mxu0 0
        %888 = vmatpush1.bf16.msra.mxu0 0
        %889 = vmatprep.subr.bf16.mxu0 0
        %890 = vmatpush1.bf16.msra.mxu0 0
        %891 = vmatprep.subr.bf16.mxu0 0
        %892 = vmatpush1.bf16.msra.mxu0 0
        %893 = vmatprep.subr.bf16.mxu0 0
        %894 = vmatpush1.bf16.msra.mxu0 0
        %895 = vmatprep.subr.bf16.mxu0 0
        %896 = vmatpush1.bf16.msra.mxu0 0
        %897 = vmatprep.mubr.bf16.mxu0 0
        %898 = vmatmul.mubr.bf16.gmra.mrb[0].mxu0 %v426
        %v899 = vpop.f32.mrb[0].mxu0
        %v900 = vadd.f32 %v851, %v899
        %v901 = vpop.f32.mrb[0].mxu0
        %v902 = vpop.f32.mrb[0].mxu0
        %v903 = vpop.f32.mrb[0].mxu0
        %904 = vdwg.mxu0
        %v905 = vmul.f32 %v770, 0.35355338
        %v906 = vpack.c.bf16 %v905, %v905
        %v907 = vpack.c.bf16 %v835, %v835
        %v909 = vsel %vm601, %v906, 0
        %v912 = vsel %vm601, %v907, 0
        %914 = vmatprep.subr.bf16.mxu0 0
        %915 = vmatpush1.bf16.xpose.msra.mxu0 %v912
        %916 = vmatprep.subr.bf16.mxu0 0
        %917 = vmatpush1.bf16.xpose.msra.mxu0 0
        %918 = vmatprep.subr.bf16.mxu0 0
        %919 = vmatpush1.bf16.xpose.msra.mxu0 0
        %920 = vmatprep.subr.bf16.mxu0 0
        %921 = vmatpush1.bf16.xpose.msra.mxu0 0
        %922 = vmatprep.subr.bf16.mxu0 0
        %923 = vmatpush1.bf16.xpose.msra.mxu0 0
        %924 = vmatprep.subr.bf16.mxu0 0
        %925 = vmatpush1.bf16.xpose.msra.mxu0 0
        %926 = vmatprep.subr.bf16.mxu0 0
        %927 = vmatpush1.bf16.xpose.msra.mxu0 0
        %928 = vmatprep.subr.bf16.mxu0 0
        %929 = vmatpush1.bf16.xpose.msra.mxu0 0
        %930 = vmatprep.subr.bf16.mxu0 0
        %931 = vmatpush1.bf16.xpose.msra.mxu0 0
        %932 = vmatprep.subr.bf16.mxu0 0
        %933 = vmatpush1.bf16.xpose.msra.mxu0 0
        %934 = vmatprep.subr.bf16.mxu0 0
        %935 = vmatpush1.bf16.xpose.msra.mxu0 0
        %936 = vmatprep.subr.bf16.mxu0 0
        %937 = vmatpush1.bf16.xpose.msra.mxu0 0
        %938 = vmatprep.subr.bf16.mxu0 0
        %939 = vmatpush1.bf16.xpose.msra.mxu0 0
        %940 = vmatprep.subr.bf16.mxu0 0
        %941 = vmatpush1.bf16.xpose.msra.mxu0 0
        %942 = vmatprep.subr.bf16.mxu0 0
        %943 = vmatpush1.bf16.xpose.msra.mxu0 0
        %944 = vmatprep.subr.bf16.mxu0 0
        %945 = vmatpush1.bf16.xpose.msra.mxu0 0
        %946 = vmatprep.mubr.bf16.mxu0 0
        %947 = vmatmul.mubr.bf16.gmra.mrb[0].mxu0 %v909
        %v948 = vpop.f32.mrb[0].mxu0
        %v949 = vadd.f32 0.0, %v948
        %v950 = vpop.f32.mrb[0].mxu0
        %v951 = vpop.f32.mrb[0].mxu0
        %v952 = vpop.f32.mrb[0].mxu0
        %953 = vdwg.mxu0
        %v954 = vsel %vm601, %v949, -inf
        %955 = vmax.xlane.f32.xlu0 %v954
        %v956 = vpop.xlane.xlu0 %955
        %v957 = vsub.f32 %v949, %v956
        %v958 = vmul.f32 %v957, 1.442695
        %v959 = vpow.pop %v958
        %v960 = vsel %vm601, %v959, 0.0
        %961 = vadd.xlane.f32.xlu0 %v960
        %v962 = vpop.xlane.xlu0 %961
        %v963 = vrcp.pop %v962
        %v964 = vmul.f32 %v959, %v963
        %v965 = vpack.c.bf16 %v964, %v964
        %v966 = vpack.c.bf16 %v900, %v900
        %v968 = vsel %vm601, %v965, 0
        %v971 = vsel %vm664, %v966, 0
        %973 = vmatprep.subr.bf16.mxu0 0
        %974 = vmatpush1.bf16.msra.mxu0 %v971
        %975 = vmatprep.subr.bf16.mxu0 0
        %976 = vmatpush1.bf16.msra.mxu0 0
        %977 = vmatprep.subr.bf16.mxu0 0
        %978 = vmatpush1.bf16.msra.mxu0 0
        %979 = vmatprep.subr.bf16.mxu0 0
        %980 = vmatpush1.bf16.msra.mxu0 0
        %981 = vmatprep.subr.bf16.mxu0 0
        %982 = vmatpush1.bf16.msra.mxu0 0
        %983 = vmatprep.subr.bf16.mxu0 0
        %984 = vmatpush1.bf16.msra.mxu0 0
        %985 = vmatprep.subr.bf16.mxu0 0
        %986 = vmatpush1.bf16.msra.mxu0 0
        %987 = vmatprep.subr.bf16.mxu0 0
        %988 = vmatpush1.bf16.msra.mxu0 0
        %989 = vmatprep.subr.bf16.mxu0 0
        %990 = vmatpush1.bf16.msra.mxu0 0
        %991 = vmatprep.subr.bf16.mxu0 0
        %992 = vmatpush1.bf16.msra.mxu0 0
        %993 = vmatprep.subr.bf16.mxu0 0
        %994 = vmatpush1.bf16.msra.mxu0 0
        %995 = vmatprep.subr.bf16.mxu0 0
        %996 = vmatpush1.bf16.msra.mxu0 0
        %997 = vmatprep.subr.bf16.mxu0 0
        %998 = vmatpush1.bf16.msra.mxu0 0
        %999 = vmatprep.subr.bf16.mxu0 0
        %1000 = vmatpush1.bf16.msra.mxu0 0
        %1001 = vmatprep.subr.bf16.mxu0 0
        %1002 = vmatpush1.bf16.msra.mxu0 0
        %1003 = vmatprep.subr.bf16.mxu0 0
        %1004 = vmatpush1.bf16.msra.mxu0 0
        %1005 = vmatprep.mubr.bf16.mxu0 0
        %1006 = vmatmul.mubr.bf16.gmra.mrb[0].mxu0 %v968
        %v1007 = vpop.f32.mrb[0].mxu0
        %v1008 = vadd.f32 0.0, %v1007
        %v1009 = vpop.f32.mrb[0].mxu0
        %v1010 = vpop.f32.mrb[0].mxu0
        %v1011 = vpop.f32.mrb[0].mxu0
        %1012 = vdwg.mxu0
        %v1013 = vpack.c.bf16 %v1008, %v1008
        %s1014 = scalar_lea.vmem %s4, 4
        %v1015 = vld [vmem:[%s1014] sm:$0xf]
        %v1017 = vsel %vm601, %v1013, 0
        %v1020 = vsel %vm664, %v1015, 0
        %1022 = vmatprep.subr.bf16.mxu0 0
        %1023 = vmatpush1.bf16.msra.mxu0 %v1020
        %1024 = vmatprep.subr.bf16.mxu0 0
        %1025 = vmatpush1.bf16.msra.mxu0 0
        %1026 = vmatprep.subr.bf16.mxu0 0
        %1027 = vmatpush1.bf16.msra.mxu0 0
        %1028 = vmatprep.subr.bf16.mxu0 0
        %1029 = vmatpush1.bf16.msra.mxu0 0
        %1030 = vmatprep.subr.bf16.mxu0 0
        %1031 = vmatpush1.bf16.msra.mxu0 0
        %1032 = vmatprep.subr.bf16.mxu0 0
        %1033 = vmatpush1.bf16.msra.mxu0 0
        %1034 = vmatprep.subr.bf16.mxu0 0
        %1035 = vmatpush1.bf16.msra.mxu0 0
        %1036 = vmatprep.subr.bf16.mxu0 0
        %1037 = vmatpush1.bf16.msra.mxu0 0
        %1038 = vmatprep.subr.bf16.mxu0 0
        %1039 = vmatpush1.bf16.msra.mxu0 0
        %1040 = vmatprep.subr.bf16.mxu0 0
        %1041 = vmatpush1.bf16.msra.mxu0 0
        %1042 = vmatprep.subr.bf16.mxu0 0
        %1043 = vmatpush1.bf16.msra.mxu0 0
        %1044 = vmatprep.subr.bf16.mxu0 0
        %1045 = vmatpush1.bf16.msra.mxu0 0
        %1046 = vmatprep.subr.bf16.mxu0 0
        %1047 = vmatpush1.bf16.msra.mxu0 0
        %1048 = vmatprep.subr.bf16.mxu0 0
        %1049 = vmatpush1.bf16.msra.mxu0 0
        %1050 = vmatprep.subr.bf16.mxu0 0
        %1051 = vmatpush1.bf16.msra.mxu0 0
        %1052 = vmatprep.subr.bf16.mxu0 0
        %1053 = vmatpush1.bf16.msra.mxu0 0
        %1054 = vmatprep.mubr.bf16.mxu0 0
        %1055 = vmatmul.mubr.bf16.gmra.mrb[0].mxu0 %v1017
        %v1056 = vpop.f32.mrb[0].mxu0
        %v1057 = vadd.f32 0.0, %v1056
        %v1058 = vpop.f32.mrb[0].mxu0
        %v1059 = vpop.f32.mrb[0].mxu0
        %v1060 = vpop.f32.mrb[0].mxu0
        %1061 = vdwg.mxu0
        %v1063 = vsel %vm601, %v708, 0
        %v1066 = vsel %vm664, %v709, 0
        %1068 = vmatprep.subr.bf16.mxu0 0
        %1069 = vmatpush1.bf16.msra.mxu0 %v1066
        %1070 = vmatprep.subr.bf16.mxu0 0
        %1071 = vmatpush1.bf16.msra.mxu0 0
        %1072 = vmatprep.subr.bf16.mxu0 0
        %1073 = vmatpush1.bf16.msra.mxu0 0
        %1074 = vmatprep.subr.bf16.mxu0 0
        %1075 = vmatpush1.bf16.msra.mxu0 0
        %1076 = vmatprep.subr.bf16.mxu0 0
        %1077 = vmatpush1.bf16.msra.mxu0 0
        %1078 = vmatprep.subr.bf16.mxu0 0
        %1079 = vmatpush1.bf16.msra.mxu0 0
        %1080 = vmatprep.subr.bf16.mxu0 0
        %1081 = vmatpush1.bf16.msra.mxu0 0
        %1082 = vmatprep.subr.bf16.mxu0 0
        %1083 = vmatpush1.bf16.msra.mxu0 0
        %1084 = vmatprep.subr.bf16.mxu0 0
        %1085 = vmatpush1.bf16.msra.mxu0 0
        %1086 = vmatprep.subr.bf16.mxu0 0
        %1087 = vmatpush1.bf16.msra.mxu0 0
        %1088 = vmatprep.subr.bf16.mxu0 0
        %1089 = vmatpush1.bf16.msra.mxu0 0
        %1090 = vmatprep.subr.bf16.mxu0 0
        %1091 = vmatpush1.bf16.msra.mxu0 0
        %1092 = vmatprep.subr.bf16.mxu0 0
        %1093 = vmatpush1.bf16.msra.mxu0 0
        %1094 = vmatprep.subr.bf16.mxu0 0
        %1095 = vmatpush1.bf16.msra.mxu0 0
        %1096 = vmatprep.subr.bf16.mxu0 0
        %1097 = vmatpush1.bf16.msra.mxu0 0
        %1098 = vmatprep.subr.bf16.mxu0 0
        %1099 = vmatpush1.bf16.msra.mxu0 0
        %1100 = vmatprep.mubr.bf16.mxu0 0
        %1101 = vmatmul.mubr.bf16.gmra.mrb[0].mxu0 %v1063
        %v1102 = vpop.f32.mrb[0].mxu0
        %v1103 = vadd.f32 %v1057, %v1102
        %v1104 = vpop.f32.mrb[0].mxu0
        %v1105 = vpop.f32.mrb[0].mxu0
        %v1106 = vpop.f32.mrb[0].mxu0
        %1107 = vdwg.mxu0
        %s1108 = scalar_lea.vmem %s2, 32
        %v1109 = vld [vmem:[%s1108] sm:$0xf]
        %v1110 = vld [vmem:[%s1108 + $0x4] sm:$0xf]
        %v1111 = vld [vmem:[%s1108 + $0x8] sm:$0xf]
        %v1112 = vld [vmem:[%s1108 + $0xc] sm:$0xf]
        %s1113 = scalar_lea.vmem %s3, 2
        %v1114 = vld [vmem:[%s1113] sm:$0x1]
        %v1116 = vlaneseq
        %v1117 = vshrl.u32 %v1116, 7
        %v1118 = vsub.s32 0, %v1117
        %v1119 = vrot.slane %v1114, %v1118
        %v1125 = vunpack.c.l.b16 %v1109
        %v1126 = vunpack.c.l.b16 %v1110
        %v1127 = vunpack.c.l.b16 %v1111
        %v1128 = vunpack.c.l.b16 %v1112
        %v1129 = vpack.c.b16 %v1126, %v1125
        %v1130 = vpack.c.b16 %v1128, %v1127
        %1133 = vmatprep.subr.bf16.mxu0 0
        %1134 = vmatpush1.bf16.msra.mxu0 %v1129
        %1135 = vmatprep.subr.bf16.mxu0 0
        %1136 = vmatpush1.bf16.msra.mxu0 %v1130
        %1137 = vmatprep.subr.bf16.mxu0 0
        %1138 = vmatpush1.bf16.msra.mxu0 0
        %1139 = vmatprep.subr.bf16.mxu0 0
        %1140 = vmatpush1.bf16.msra.mxu0 0
        %1141 = vmatprep.subr.bf16.mxu0 0
        %1142 = vmatpush1.bf16.msra.mxu0 0
        %1143 = vmatprep.subr.bf16.mxu0 0
        %1144 = vmatpush1.bf16.msra.mxu0 0
        %1145 = vmatprep.subr.bf16.mxu0 0
        %1146 = vmatpush1.bf16.msra.mxu0 0
        %1147 = vmatprep.subr.bf16.mxu0 0
        %1148 = vmatpush1.bf16.msra.mxu0 0
        %1149 = vmatprep.subr.bf16.mxu0 0
        %1150 = vmatpush1.bf16.msra.mxu0 0
        %1151 = vmatprep.subr.bf16.mxu0 0
        %1152 = vmatpush1.bf16.msra.mxu0 0
        %1153 = vmatprep.subr.bf16.mxu0 0
        %1154 = vmatpush1.bf16.msra.mxu0 0
        %1155 = vmatprep.subr.bf16.mxu0 0
        %1156 = vmatpush1.bf16.msra.mxu0 0
        %1157 = vmatprep.subr.bf16.mxu0 0
        %1158 = vmatpush1.bf16.msra.mxu0 0
        %1159 = vmatprep.subr.bf16.mxu0 0
        %1160 = vmatpush1.bf16.msra.mxu0 0
        %1161 = vmatprep.subr.bf16.mxu0 0
        %1162 = vmatpush1.bf16.msra.mxu0 0
        %1163 = vmatprep.subr.bf16.mxu0 0
        %1164 = vmatpush1.bf16.msra.mxu0 0
        %1165 = vmatprep.mubr.bf16.mxu0 0
        %1166 = vmatmul.mubr.bf16.gmra.mrb[0].mxu0 %v426
        %v1167 = vpop.f32.mrb[0].mxu0
        %v1168 = vadd.f32 %v1119, %v1167
        %v1169 = vpop.f32.mrb[0].mxu0
        %v1170 = vpop.f32.mrb[0].mxu0
        %v1171 = vpop.f32.mrb[0].mxu0
        %1172 = vdwg.mxu0
        %s1173 = scalar_lea.vmem %s2, 96
        %v1174 = vld [vmem:[%s1173] sm:$0xf]
        %v1175 = vld [vmem:[%s1173 + $0x4] sm:$0xf]
        %v1176 = vld [vmem:[%s1173 + $0x8] sm:$0xf]
        %v1177 = vld [vmem:[%s1173 + $0xc] sm:$0xf]
        %s1178 = scalar_lea.vmem %s3, 6
        %v1179 = vld [vmem:[%s1178] sm:$0x1]
        %v1181 = vlaneseq
        %v1182 = vshrl.u32 %v1181, 7
        %v1183 = vsub.s32 0, %v1182
        %v1184 = vrot.slane %v1179, %v1183
        %v1190 = vunpack.c.l.b16 %v1174
        %v1191 = vunpack.c.l.b16 %v1175
        %v1192 = vunpack.c.l.b16 %v1176
        %v1193 = vunpack.c.l.b16 %v1177
        %v1194 = vpack.c.b16 %v1191, %v1190
        %v1195 = vpack.c.b16 %v1193, %v1192
        %1198 = vmatprep.subr.bf16.mxu0 0
        %1199 = vmatpush1.bf16.msra.mxu0 %v1194
        %1200 = vmatprep.subr.bf16.mxu0 0
        %1201 = vmatpush1.bf16.msra.mxu0 %v1195
        %1202 = vmatprep.subr.bf16.mxu0 0
        %1203 = vmatpush1.bf16.msra.mxu0 0
        %1204 = vmatprep.subr.bf16.mxu0 0
        %1205 = vmatpush1.bf16.msra.mxu0 0
        %1206 = vmatprep.subr.bf16.mxu0 0
        %1207 = vmatpush1.bf16.msra.mxu0 0
        %1208 = vmatprep.subr.bf16.mxu0 0
        %1209 = vmatpush1.bf16.msra.mxu0 0
        %1210 = vmatprep.subr.bf16.mxu0 0
        %1211 = vmatpush1.bf16.msra.mxu0 0
        %1212 = vmatprep.subr.bf16.mxu0 0
        %1213 = vmatpush1.bf16.msra.mxu0 0
        %1214 = vmatprep.subr.bf16.mxu0 0
        %1215 = vmatpush1.bf16.msra.mxu0 0
        %1216 = vmatprep.subr.bf16.mxu0 0
        %1217 = vmatpush1.bf16.msra.mxu0 0
        %1218 = vmatprep.subr.bf16.mxu0 0
        %1219 = vmatpush1.bf16.msra.mxu0 0
        %1220 = vmatprep.subr.bf16.mxu0 0
        %1221 = vmatpush1.bf16.msra.mxu0 0
        %1222 = vmatprep.subr.bf16.mxu0 0
        %1223 = vmatpush1.bf16.msra.mxu0 0
        %1224 = vmatprep.subr.bf16.mxu0 0
        %1225 = vmatpush1.bf16.msra.mxu0 0
        %1226 = vmatprep.subr.bf16.mxu0 0
        %1227 = vmatpush1.bf16.msra.mxu0 0
        %1228 = vmatprep.subr.bf16.mxu0 0
        %1229 = vmatpush1.bf16.msra.mxu0 0
        %1230 = vmatprep.mubr.bf16.mxu0 0
        %1231 = vmatmul.mubr.bf16.gmra.mrb[0].mxu0 %v426
        %v1232 = vpop.f32.mrb[0].mxu0
        %v1233 = vadd.f32 %v1184, %v1232
        %v1234 = vpop.f32.mrb[0].mxu0
        %v1235 = vpop.f32.mrb[0].mxu0
        %v1236 = vpop.f32.mrb[0].mxu0
        %1237 = vdwg.mxu0
        %s1238 = scalar_lea.vmem %s2, 160
        %v1239 = vld [vmem:[%s1238] sm:$0xf]
        %v1240 = vld [vmem:[%s1238 + $0x4] sm:$0xf]
        %v1241 = vld [vmem:[%s1238 + $0x8] sm:$0xf]
        %v1242 = vld [vmem:[%s1238 + $0xc] sm:$0xf]
        %s1243 = scalar_lea.vmem %s3, 10
        %v1244 = vld [vmem:[%s1243] sm:$0x1]
        %v1246 = vlaneseq
        %v1247 = vshrl.u32 %v1246, 7
        %v1248 = vsub.s32 0, %v1247
        %v1249 = vrot.slane %v1244, %v1248
        %v1255 = vunpack.c.l.b16 %v1239
        %v1256 = vunpack.c.l.b16 %v1240
        %v1257 = vunpack.c.l.b16 %v1241
        %v1258 = vunpack.c.l.b16 %v1242
        %v1259 = vpack.c.b16 %v1256, %v1255
        %v1260 = vpack.c.b16 %v1258, %v1257
        %1263 = vmatprep.subr.bf16.mxu0 0
        %1264 = vmatpush1.bf16.msra.mxu0 %v1259
        %1265 = vmatprep.subr.bf16.mxu0 0
        %1266 = vmatpush1.bf16.msra.mxu0 %v1260
        %1267 = vmatprep.subr.bf16.mxu0 0
        %1268 = vmatpush1.bf16.msra.mxu0 0
        %1269 = vmatprep.subr.bf16.mxu0 0
        %1270 = vmatpush1.bf16.msra.mxu0 0
        %1271 = vmatprep.subr.bf16.mxu0 0
        %1272 = vmatpush1.bf16.msra.mxu0 0
        %1273 = vmatprep.subr.bf16.mxu0 0
        %1274 = vmatpush1.bf16.msra.mxu0 0
        %1275 = vmatprep.subr.bf16.mxu0 0
        %1276 = vmatpush1.bf16.msra.mxu0 0
        %1277 = vmatprep.subr.bf16.mxu0 0
        %1278 = vmatpush1.bf16.msra.mxu0 0
        %1279 = vmatprep.subr.bf16.mxu0 0
        %1280 = vmatpush1.bf16.msra.mxu0 0
        %1281 = vmatprep.subr.bf16.mxu0 0
        %1282 = vmatpush1.bf16.msra.mxu0 0
        %1283 = vmatprep.subr.bf16.mxu0 0
        %1284 = vmatpush1.bf16.msra.mxu0 0
        %1285 = vmatprep.subr.bf16.mxu0 0
        %1286 = vmatpush1.bf16.msra.mxu0 0
        %1287 = vmatprep.subr.bf16.mxu0 0
        %1288 = vmatpush1.bf16.msra.mxu0 0
        %1289 = vmatprep.subr.bf16.mxu0 0
        %1290 = vmatpush1.bf16.msra.mxu0 0
        %1291 = vmatprep.subr.bf16.mxu0 0
        %1292 = vmatpush1.bf16.msra.mxu0 0
        %1293 = vmatprep.subr.bf16.mxu0 0
        %1294 = vmatpush1.bf16.msra.mxu0 0
        %1295 = vmatprep.mubr.bf16.mxu0 0
        %1296 = vmatmul.mubr.bf16.gmra.mrb[0].mxu0 %v426
        %v1297 = vpop.f32.mrb[0].mxu0
        %v1298 = vadd.f32 %v1249, %v1297
        %v1299 = vpop.f32.mrb[0].mxu0
        %v1300 = vpop.f32.mrb[0].mxu0
        %v1301 = vpop.f32.mrb[0].mxu0
        %1302 = vdwg.mxu0
        %v1303 = vmul.f32 %v1168, 0.35355338
        %v1304 = vpack.c.bf16 %v1303, %v1303
        %v1305 = vpack.c.bf16 %v1233, %v1233
        %v1307 = vsel %vm601, %v1304, 0
        %v1310 = vsel %vm601, %v1305, 0
        %1312 = vmatprep.subr.bf16.mxu0 0
        %1313 = vmatpush1.bf16.xpose.msra.mxu0 %v1310
        %1314 = vmatprep.subr.bf16.mxu0 0
        %1315 = vmatpush1.bf16.xpose.msra.mxu0 0
        %1316 = vmatprep.subr.bf16.mxu0 0
        %1317 = vmatpush1.bf16.xpose.msra.mxu0 0
        %1318 = vmatprep.subr.bf16.mxu0 0
        %1319 = vmatpush1.bf16.xpose.msra.mxu0 0
        %1320 = vmatprep.subr.bf16.mxu0 0
        %1321 = vmatpush1.bf16.xpose.msra.mxu0 0
        %1322 = vmatprep.subr.bf16.mxu0 0
        %1323 = vmatpush1.bf16.xpose.msra.mxu0 0
        %1324 = vmatprep.subr.bf16.mxu0 0
        %1325 = vmatpush1.bf16.xpose.msra.mxu0 0
        %1326 = vmatprep.subr.bf16.mxu0 0
        %1327 = vmatpush1.bf16.xpose.msra.mxu0 0
        %1328 = vmatprep.subr.bf16.mxu0 0
        %1329 = vmatpush1.bf16.xpose.msra.mxu0 0
        %1330 = vmatprep.subr.bf16.mxu0 0
        %1331 = vmatpush1.bf16.xpose.msra.mxu0 0
        %1332 = vmatprep.subr.bf16.mxu0 0
        %1333 = vmatpush1.bf16.xpose.msra.mxu0 0
        %1334 = vmatprep.subr.bf16.mxu0 0
        %1335 = vmatpush1.bf16.xpose.msra.mxu0 0
        %1336 = vmatprep.subr.bf16.mxu0 0
        %1337 = vmatpush1.bf16.xpose.msra.mxu0 0
        %1338 = vmatprep.subr.bf16.mxu0 0
        %1339 = vmatpush1.bf16.xpose.msra.mxu0 0
        %1340 = vmatprep.subr.bf16.mxu0 0
        %1341 = vmatpush1.bf16.xpose.msra.mxu0 0
        %1342 = vmatprep.subr.bf16.mxu0 0
        %1343 = vmatpush1.bf16.xpose.msra.mxu0 0
        %1344 = vmatprep.mubr.bf16.mxu0 0
        %1345 = vmatmul.mubr.bf16.gmra.mrb[0].mxu0 %v1307
        %v1346 = vpop.f32.mrb[0].mxu0
        %v1347 = vadd.f32 0.0, %v1346
        %v1348 = vpop.f32.mrb[0].mxu0
        %v1349 = vpop.f32.mrb[0].mxu0
        %v1350 = vpop.f32.mrb[0].mxu0
        %1351 = vdwg.mxu0
        %v1352 = vsel %vm601, %v1347, -inf
        %1353 = vmax.xlane.f32.xlu0 %v1352
        %v1354 = vpop.xlane.xlu0 %1353
        %v1355 = vsub.f32 %v1347, %v1354
        %v1356 = vmul.f32 %v1355, 1.442695
        %v1357 = vpow.pop %v1356
        %v1358 = vsel %vm601, %v1357, 0.0
        %1359 = vadd.xlane.f32.xlu0 %v1358
        %v1360 = vpop.xlane.xlu0 %1359
        %v1361 = vrcp.pop %v1360
        %v1362 = vmul.f32 %v1357, %v1361
        %v1363 = vpack.c.bf16 %v1362, %v1362
        %v1364 = vpack.c.bf16 %v1298, %v1298
        %v1366 = vsel %vm601, %v1363, 0
        %v1369 = vsel %vm664, %v1364, 0
        %1371 = vmatprep.subr.bf16.mxu0 0
        %1372 = vmatpush1.bf16.msra.mxu0 %v1369
        %1373 = vmatprep.subr.bf16.mxu0 0
        %1374 = vmatpush1.bf16.msra.mxu0 0
        %1375 = vmatprep.subr.bf16.mxu0 0
        %1376 = vmatpush1.bf16.msra.mxu0 0
        %1377 = vmatprep.subr.bf16.mxu0 0
        %1378 = vmatpush1.bf16.msra.mxu0 0
        %1379 = vmatprep.subr.bf16.mxu0 0
        %1380 = vmatpush1.bf16.msra.mxu0 0
        %1381 = vmatprep.subr.bf16.mxu0 0
        %1382 = vmatpush1.bf16.msra.mxu0 0
        %1383 = vmatprep.subr.bf16.mxu0 0
        %1384 = vmatpush1.bf16.msra.mxu0 0
        %1385 = vmatprep.subr.bf16.mxu0 0
        %1386 = vmatpush1.bf16.msra.mxu0 0
        %1387 = vmatprep.subr.bf16.mxu0 0
        %1388 = vmatpush1.bf16.msra.mxu0 0
        %1389 = vmatprep.subr.bf16.mxu0 0
        %1390 = vmatpush1.bf16.msra.mxu0 0
        %1391 = vmatprep.subr.bf16.mxu0 0
        %1392 = vmatpush1.bf16.msra.mxu0 0
        %1393 = vmatprep.subr.bf16.mxu0 0
        %1394 = vmatpush1.bf16.msra.mxu0 0
        %1395 = vmatprep.subr.bf16.mxu0 0
        %1396 = vmatpush1.bf16.msra.mxu0 0
        %1397 = vmatprep.subr.bf16.mxu0 0
        %1398 = vmatpush1.bf16.msra.mxu0 0
        %1399 = vmatprep.subr.bf16.mxu0 0
        %1400 = vmatpush1.bf16.msra.mxu0 0
        %1401 = vmatprep.subr.bf16.mxu0 0
        %1402 = vmatpush1.bf16.msra.mxu0 0
        %1403 = vmatprep.mubr.bf16.mxu0 0
        %1404 = vmatmul.mubr.bf16.gmra.mrb[0].mxu0 %v1366
        %v1405 = vpop.f32.mrb[0].mxu0
        %v1406 = vadd.f32 0.0, %v1405
        %v1407 = vpop.f32.mrb[0].mxu0
        %v1408 = vpop.f32.mrb[0].mxu0
        %v1409 = vpop.f32.mrb[0].mxu0
        %1410 = vdwg.mxu0
        %v1411 = vpack.c.bf16 %v1406, %v1406
        %s1412 = scalar_lea.vmem %s4, 8
        %v1413 = vld [vmem:[%s1412] sm:$0xf]
        %v1415 = vsel %vm601, %v1411, 0
        %v1418 = vsel %vm664, %v1413, 0
        %1420 = vmatprep.subr.bf16.mxu0 0
        %1421 = vmatpush1.bf16.msra.mxu0 %v1418
        %1422 = vmatprep.subr.bf16.mxu0 0
        %1423 = vmatpush1.bf16.msra.mxu0 0
        %1424 = vmatprep.subr.bf16.mxu0 0
        %1425 = vmatpush1.bf16.msra.mxu0 0
        %1426 = vmatprep.subr.bf16.mxu0 0
        %1427 = vmatpush1.bf16.msra.mxu0 0
        %1428 = vmatprep.subr.bf16.mxu0 0
        %1429 = vmatpush1.bf16.msra.mxu0 0
        %1430 = vmatprep.subr.bf16.mxu0 0
        %1431 = vmatpush1.bf16.msra.mxu0 0
        %1432 = vmatprep.subr.bf16.mxu0 0
        %1433 = vmatpush1.bf16.msra.mxu0 0
        %1434 = vmatprep.subr.bf16.mxu0 0
        %1435 = vmatpush1.bf16.msra.mxu0 0
        %1436 = vmatprep.subr.bf16.mxu0 0
        %1437 = vmatpush1.bf16.msra.mxu0 0
        %1438 = vmatprep.subr.bf16.mxu0 0
        %1439 = vmatpush1.bf16.msra.mxu0 0
        %1440 = vmatprep.subr.bf16.mxu0 0
        %1441 = vmatpush1.bf16.msra.mxu0 0
        %1442 = vmatprep.subr.bf16.mxu0 0
        %1443 = vmatpush1.bf16.msra.mxu0 0
        %1444 = vmatprep.subr.bf16.mxu0 0
        %1445 = vmatpush1.bf16.msra.mxu0 0
        %1446 = vmatprep.subr.bf16.mxu0 0
        %1447 = vmatpush1.bf16.msra.mxu0 0
        %1448 = vmatprep.subr.bf16.mxu0 0
        %1449 = vmatpush1.bf16.msra.mxu0 0
        %1450 = vmatprep.subr.bf16.mxu0 0
        %1451 = vmatpush1.bf16.msra.mxu0 0
        %1452 = vmatprep.mubr.bf16.mxu0 0
        %1453 = vmatmul.mubr.bf16.gmra.mrb[0].mxu0 %v1415
        %v1454 = vpop.f32.mrb[0].mxu0
        %v1455 = vadd.f32 0.0, %v1454
        %v1456 = vpop.f32.mrb[0].mxu0
        %v1457 = vpop.f32.mrb[0].mxu0
        %v1458 = vpop.f32.mrb[0].mxu0
        %1459 = vdwg.mxu0
        %v1460 = vadd.f32 %v1103, %v1455
        %s1461 = scalar_lea.vmem %s2, 48
        %v1462 = vld [vmem:[%s1461] sm:$0xf]
        %v1463 = vld [vmem:[%s1461 + $0x4] sm:$0xf]
        %v1464 = vld [vmem:[%s1461 + $0x8] sm:$0xf]
        %v1465 = vld [vmem:[%s1461 + $0xc] sm:$0xf]
        %s1466 = scalar_lea.vmem %s3, 3
        %v1467 = vld [vmem:[%s1466] sm:$0x1]
        %v1469 = vlaneseq
        %v1470 = vshrl.u32 %v1469, 7
        %v1471 = vsub.s32 0, %v1470
        %v1472 = vrot.slane %v1467, %v1471
        %v1478 = vunpack.c.l.b16 %v1462
        %v1479 = vunpack.c.l.b16 %v1463
        %v1480 = vunpack.c.l.b16 %v1464
        %v1481 = vunpack.c.l.b16 %v1465
        %v1482 = vpack.c.b16 %v1479, %v1478
        %v1483 = vpack.c.b16 %v1481, %v1480
        %1486 = vmatprep.subr.bf16.mxu0 0
        %1487 = vmatpush1.bf16.msra.mxu0 %v1482
        %1488 = vmatprep.subr.bf16.mxu0 0
        %1489 = vmatpush1.bf16.msra.mxu0 %v1483
        %1490 = vmatprep.subr.bf16.mxu0 0
        %1491 = vmatpush1.bf16.msra.mxu0 0
        %1492 = vmatprep.subr.bf16.mxu0 0
        %1493 = vmatpush1.bf16.msra.mxu0 0
        %1494 = vmatprep.subr.bf16.mxu0 0
        %1495 = vmatpush1.bf16.msra.mxu0 0
        %1496 = vmatprep.subr.bf16.mxu0 0
        %1497 = vmatpush1.bf16.msra.mxu0 0
        %1498 = vmatprep.subr.bf16.mxu0 0
        %1499 = vmatpush1.bf16.msra.mxu0 0
        %1500 = vmatprep.subr.bf16.mxu0 0
        %1501 = vmatpush1.bf16.msra.mxu0 0
        %1502 = vmatprep.subr.bf16.mxu0 0
        %1503 = vmatpush1.bf16.msra.mxu0 0
        %1504 = vmatprep.subr.bf16.mxu0 0
        %1505 = vmatpush1.bf16.msra.mxu0 0
        %1506 = vmatprep.subr.bf16.mxu0 0
        %1507 = vmatpush1.bf16.msra.mxu0 0
        %1508 = vmatprep.subr.bf16.mxu0 0
        %1509 = vmatpush1.bf16.msra.mxu0 0
        %1510 = vmatprep.subr.bf16.mxu0 0
        %1511 = vmatpush1.bf16.msra.mxu0 0
        %1512 = vmatprep.subr.bf16.mxu0 0
        %1513 = vmatpush1.bf16.msra.mxu0 0
        %1514 = vmatprep.subr.bf16.mxu0 0
        %1515 = vmatpush1.bf16.msra.mxu0 0
        %1516 = vmatprep.subr.bf16.mxu0 0
        %1517 = vmatpush1.bf16.msra.mxu0 0
        %1518 = vmatprep.mubr.bf16.mxu0 0
        %1519 = vmatmul.mubr.bf16.gmra.mrb[0].mxu0 %v426
        %v1520 = vpop.f32.mrb[0].mxu0
        %v1521 = vadd.f32 %v1472, %v1520
        %v1522 = vpop.f32.mrb[0].mxu0
        %v1523 = vpop.f32.mrb[0].mxu0
        %v1524 = vpop.f32.mrb[0].mxu0
        %1525 = vdwg.mxu0
        %s1526 = scalar_lea.vmem %s2, 112
        %v1527 = vld [vmem:[%s1526] sm:$0xf]
        %v1528 = vld [vmem:[%s1526 + $0x4] sm:$0xf]
        %v1529 = vld [vmem:[%s1526 + $0x8] sm:$0xf]
        %v1530 = vld [vmem:[%s1526 + $0xc] sm:$0xf]
        %s1531 = scalar_lea.vmem %s3, 7
        %v1532 = vld [vmem:[%s1531] sm:$0x1]
        %v1534 = vlaneseq
        %v1535 = vshrl.u32 %v1534, 7
        %v1536 = vsub.s32 0, %v1535
        %v1537 = vrot.slane %v1532, %v1536
        %v1543 = vunpack.c.l.b16 %v1527
        %v1544 = vunpack.c.l.b16 %v1528
        %v1545 = vunpack.c.l.b16 %v1529
        %v1546 = vunpack.c.l.b16 %v1530
        %v1547 = vpack.c.b16 %v1544, %v1543
        %v1548 = vpack.c.b16 %v1546, %v1545
        %1551 = vmatprep.subr.bf16.mxu0 0
        %1552 = vmatpush1.bf16.msra.mxu0 %v1547
        %1553 = vmatprep.subr.bf16.mxu0 0
        %1554 = vmatpush1.bf16.msra.mxu0 %v1548
        %1555 = vmatprep.subr.bf16.mxu0 0
        %1556 = vmatpush1.bf16.msra.mxu0 0
        %1557 = vmatprep.subr.bf16.mxu0 0
        %1558 = vmatpush1.bf16.msra.mxu0 0
        %1559 = vmatprep.subr.bf16.mxu0 0
        %1560 = vmatpush1.bf16.msra.mxu0 0
        %1561 = vmatprep.subr.bf16.mxu0 0
        %1562 = vmatpush1.bf16.msra.mxu0 0
        %1563 = vmatprep.subr.bf16.mxu0 0
        %1564 = vmatpush1.bf16.msra.mxu0 0
        %1565 = vmatprep.subr.bf16.mxu0 0
        %1566 = vmatpush1.bf16.msra.mxu0 0
        %1567 = vmatprep.subr.bf16.mxu0 0
        %1568 = vmatpush1.bf16.msra.mxu0 0
        %1569 = vmatprep.subr.bf16.mxu0 0
        %1570 = vmatpush1.bf16.msra.mxu0 0
        %1571 = vmatprep.subr.bf16.mxu0 0
        %1572 = vmatpush1.bf16.msra.mxu0 0
        %1573 = vmatprep.subr.bf16.mxu0 0
        %1574 = vmatpush1.bf16.msra.mxu0 0
        %1575 = vmatprep.subr.bf16.mxu0 0
        %1576 = vmatpush1.bf16.msra.mxu0 0
        %1577 = vmatprep.subr.bf16.mxu0 0
        %1578 = vmatpush1.bf16.msra.mxu0 0
        %1579 = vmatprep.subr.bf16.mxu0 0
        %1580 = vmatpush1.bf16.msra.mxu0 0
        %1581 = vmatprep.subr.bf16.mxu0 0
        %1582 = vmatpush1.bf16.msra.mxu0 0
        %1583 = vmatprep.mubr.bf16.mxu0 0
        %1584 = vmatmul.mubr.bf16.gmra.mrb[0].mxu0 %v426
        %v1585 = vpop.f32.mrb[0].mxu0
        %v1586 = vadd.f32 %v1537, %v1585
        %v1587 = vpop.f32.mrb[0].mxu0
        %v1588 = vpop.f32.mrb[0].mxu0
        %v1589 = vpop.f32.mrb[0].mxu0
        %1590 = vdwg.mxu0
        %s1591 = scalar_lea.vmem %s2, 176
        %v1592 = vld [vmem:[%s1591] sm:$0xf]
        %v1593 = vld [vmem:[%s1591 + $0x4] sm:$0xf]
        %v1594 = vld [vmem:[%s1591 + $0x8] sm:$0xf]
        %v1595 = vld [vmem:[%s1591 + $0xc] sm:$0xf]
        %s1596 = scalar_lea.vmem %s3, 11
        %v1597 = vld [vmem:[%s1596] sm:$0x1]
        %v1599 = vlaneseq
        %v1600 = vshrl.u32 %v1599, 7
        %v1601 = vsub.s32 0, %v1600
        %v1602 = vrot.slane %v1597, %v1601
        %v1608 = vunpack.c.l.b16 %v1592
        %v1609 = vunpack.c.l.b16 %v1593
        %v1610 = vunpack.c.l.b16 %v1594
        %v1611 = vunpack.c.l.b16 %v1595
        %v1612 = vpack.c.b16 %v1609, %v1608
        %v1613 = vpack.c.b16 %v1611, %v1610
        %1616 = vmatprep.subr.bf16.mxu0 0
        %1617 = vmatpush1.bf16.msra.mxu0 %v1612
        %1618 = vmatprep.subr.bf16.mxu0 0
        %1619 = vmatpush1.bf16.msra.mxu0 %v1613
        %1620 = vmatprep.subr.bf16.mxu0 0
        %1621 = vmatpush1.bf16.msra.mxu0 0
        %1622 = vmatprep.subr.bf16.mxu0 0
        %1623 = vmatpush1.bf16.msra.mxu0 0
        %1624 = vmatprep.subr.bf16.mxu0 0
        %1625 = vmatpush1.bf16.msra.mxu0 0
        %1626 = vmatprep.subr.bf16.mxu0 0
        %1627 = vmatpush1.bf16.msra.mxu0 0
        %1628 = vmatprep.subr.bf16.mxu0 0
        %1629 = vmatpush1.bf16.msra.mxu0 0
        %1630 = vmatprep.subr.bf16.mxu0 0
        %1631 = vmatpush1.bf16.msra.mxu0 0
        %1632 = vmatprep.subr.bf16.mxu0 0
        %1633 = vmatpush1.bf16.msra.mxu0 0
        %1634 = vmatprep.subr.bf16.mxu0 0
        %1635 = vmatpush1.bf16.msra.mxu0 0
        %1636 = vmatprep.subr.bf16.mxu0 0
        %1637 = vmatpush1.bf16.msra.mxu0 0
        %1638 = vmatprep.subr.bf16.mxu0 0
        %1639 = vmatpush1.bf16.msra.mxu0 0
        %1640 = vmatprep.subr.bf16.mxu0 0
        %1641 = vmatpush1.bf16.msra.mxu0 0
        %1642 = vmatprep.subr.bf16.mxu0 0
        %1643 = vmatpush1.bf16.msra.mxu0 0
        %1644 = vmatprep.subr.bf16.mxu0 0
        %1645 = vmatpush1.bf16.msra.mxu0 0
        %1646 = vmatprep.subr.bf16.mxu0 0
        %1647 = vmatpush1.bf16.msra.mxu0 0
        %1648 = vmatprep.mubr.bf16.mxu0 0
        %1649 = vmatmul.mubr.bf16.gmra.mrb[0].mxu0 %v426
        %v1650 = vpop.f32.mrb[0].mxu0
        %v1651 = vadd.f32 %v1602, %v1650
        %v1652 = vpop.f32.mrb[0].mxu0
        %v1653 = vpop.f32.mrb[0].mxu0
        %v1654 = vpop.f32.mrb[0].mxu0
        %1655 = vdwg.mxu0
        %v1656 = vmul.f32 %v1521, 0.35355338
        %v1657 = vpack.c.bf16 %v1656, %v1656
        %v1658 = vpack.c.bf16 %v1586, %v1586
        %v1660 = vsel %vm601, %v1657, 0
        %v1663 = vsel %vm601, %v1658, 0
        %1665 = vmatprep.subr.bf16.mxu0 0
        %1666 = vmatpush1.bf16.xpose.msra.mxu0 %v1663
        %1667 = vmatprep.subr.bf16.mxu0 0
        %1668 = vmatpush1.bf16.xpose.msra.mxu0 0
        %1669 = vmatprep.subr.bf16.mxu0 0
        %1670 = vmatpush1.bf16.xpose.msra.mxu0 0
        %1671 = vmatprep.subr.bf16.mxu0 0
        %1672 = vmatpush1.bf16.xpose.msra.mxu0 0
        %1673 = vmatprep.subr.bf16.mxu0 0
        %1674 = vmatpush1.bf16.xpose.msra.mxu0 0
        %1675 = vmatprep.subr.bf16.mxu0 0
        %1676 = vmatpush1.bf16.xpose.msra.mxu0 0
        %1677 = vmatprep.subr.bf16.mxu0 0
        %1678 = vmatpush1.bf16.xpose.msra.mxu0 0
        %1679 = vmatprep.subr.bf16.mxu0 0
        %1680 = vmatpush1.bf16.xpose.msra.mxu0 0
        %1681 = vmatprep.subr.bf16.mxu0 0
        %1682 = vmatpush1.bf16.xpose.msra.mxu0 0
        %1683 = vmatprep.subr.bf16.mxu0 0
        %1684 = vmatpush1.bf16.xpose.msra.mxu0 0
        %1685 = vmatprep.subr.bf16.mxu0 0
        %1686 = vmatpush1.bf16.xpose.msra.mxu0 0
        %1687 = vmatprep.subr.bf16.mxu0 0
        %1688 = vmatpush1.bf16.xpose.msra.mxu0 0
        %1689 = vmatprep.subr.bf16.mxu0 0
        %1690 = vmatpush1.bf16.xpose.msra.mxu0 0
        %1691 = vmatprep.subr.bf16.mxu0 0
        %1692 = vmatpush1.bf16.xpose.msra.mxu0 0
        %1693 = vmatprep.subr.bf16.mxu0 0
        %1694 = vmatpush1.bf16.xpose.msra.mxu0 0
        %1695 = vmatprep.subr.bf16.mxu0 0
        %1696 = vmatpush1.bf16.xpose.msra.mxu0 0
        %1697 = vmatprep.mubr.bf16.mxu0 0
        %1698 = vmatmul.mubr.bf16.gmra.mrb[0].mxu0 %v1660
        %v1699 = vpop.f32.mrb[0].mxu0
        %v1700 = vadd.f32 0.0, %v1699
        %v1701 = vpop.f32.mrb[0].mxu0
        %v1702 = vpop.f32.mrb[0].mxu0
        %v1703 = vpop.f32.mrb[0].mxu0
        %1704 = vdwg.mxu0
        %v1705 = vsel %vm601, %v1700, -inf
        %1706 = vmax.xlane.f32.xlu0 %v1705
        %v1707 = vpop.xlane.xlu0 %1706
        %v1708 = vsub.f32 %v1700, %v1707
        %v1709 = vmul.f32 %v1708, 1.442695
        %v1710 = vpow.pop %v1709
        %v1711 = vsel %vm601, %v1710, 0.0
        %1712 = vadd.xlane.f32.xlu0 %v1711
        %v1713 = vpop.xlane.xlu0 %1712
        %v1714 = vrcp.pop %v1713
        %v1715 = vmul.f32 %v1710, %v1714
        %v1716 = vpack.c.bf16 %v1715, %v1715
        %v1717 = vpack.c.bf16 %v1651, %v1651
        %v1719 = vsel %vm601, %v1716, 0
        %v1722 = vsel %vm664, %v1717, 0
        %1724 = vmatprep.subr.bf16.mxu0 0
        %1725 = vmatpush1.bf16.msra.mxu0 %v1722
        %1726 = vmatprep.subr.bf16.mxu0 0
        %1727 = vmatpush1.bf16.msra.mxu0 0
        %1728 = vmatprep.subr.bf16.mxu0 0
        %1729 = vmatpush1.bf16.msra.mxu0 0
        %1730 = vmatprep.subr.bf16.mxu0 0
        %1731 = vmatpush1.bf16.msra.mxu0 0
        %1732 = vmatprep.subr.bf16.mxu0 0
        %1733 = vmatpush1.bf16.msra.mxu0 0
        %1734 = vmatprep.subr.bf16.mxu0 0
        %1735 = vmatpush1.bf16.msra.mxu0 0
        %1736 = vmatprep.subr.bf16.mxu0 0
        %1737 = vmatpush1.bf16.msra.mxu0 0
        %1738 = vmatprep.subr.bf16.mxu0 0
        %1739 = vmatpush1.bf16.msra.mxu0 0
        %1740 = vmatprep.subr.bf16.mxu0 0
        %1741 = vmatpush1.bf16.msra.mxu0 0
        %1742 = vmatprep.subr.bf16.mxu0 0
        %1743 = vmatpush1.bf16.msra.mxu0 0
        %1744 = vmatprep.subr.bf16.mxu0 0
        %1745 = vmatpush1.bf16.msra.mxu0 0
        %1746 = vmatprep.subr.bf16.mxu0 0
        %1747 = vmatpush1.bf16.msra.mxu0 0
        %1748 = vmatprep.subr.bf16.mxu0 0
        %1749 = vmatpush1.bf16.msra.mxu0 0
        %1750 = vmatprep.subr.bf16.mxu0 0
        %1751 = vmatpush1.bf16.msra.mxu0 0
        %1752 = vmatprep.subr.bf16.mxu0 0
        %1753 = vmatpush1.bf16.msra.mxu0 0
        %1754 = vmatprep.subr.bf16.mxu0 0
        %1755 = vmatpush1.bf16.msra.mxu0 0
        %1756 = vmatprep.mubr.bf16.mxu0 0
        %1757 = vmatmul.mubr.bf16.gmra.mrb[0].mxu0 %v1719
        %v1758 = vpop.f32.mrb[0].mxu0
        %v1759 = vadd.f32 0.0, %v1758
        %v1760 = vpop.f32.mrb[0].mxu0
        %v1761 = vpop.f32.mrb[0].mxu0
        %v1762 = vpop.f32.mrb[0].mxu0
        %1763 = vdwg.mxu0
        %v1764 = vpack.c.bf16 %v1759, %v1759
        %s1765 = scalar_lea.vmem %s4, 12
        %v1766 = vld [vmem:[%s1765] sm:$0xf]
        %v1768 = vsel %vm601, %v1764, 0
        %v1771 = vsel %vm664, %v1766, 0
        %1773 = vmatprep.subr.bf16.mxu0 0
        %1774 = vmatpush1.bf16.msra.mxu0 %v1771
        %1775 = vmatprep.subr.bf16.mxu0 0
        %1776 = vmatpush1.bf16.msra.mxu0 0
        %1777 = vmatprep.subr.bf16.mxu0 0
        %1778 = vmatpush1.bf16.msra.mxu0 0
        %1779 = vmatprep.subr.bf16.mxu0 0
        %1780 = vmatpush1.bf16.msra.mxu0 0
        %1781 = vmatprep.subr.bf16.mxu0 0
        %1782 = vmatpush1.bf16.msra.mxu0 0
        %1783 = vmatprep.subr.bf16.mxu0 0
        %1784 = vmatpush1.bf16.msra.mxu0 0
        %1785 = vmatprep.subr.bf16.mxu0 0
        %1786 = vmatpush1.bf16.msra.mxu0 0
        %1787 = vmatprep.subr.bf16.mxu0 0
        %1788 = vmatpush1.bf16.msra.mxu0 0
        %1789 = vmatprep.subr.bf16.mxu0 0
        %1790 = vmatpush1.bf16.msra.mxu0 0
        %1791 = vmatprep.subr.bf16.mxu0 0
        %1792 = vmatpush1.bf16.msra.mxu0 0
        %1793 = vmatprep.subr.bf16.mxu0 0
        %1794 = vmatpush1.bf16.msra.mxu0 0
        %1795 = vmatprep.subr.bf16.mxu0 0
        %1796 = vmatpush1.bf16.msra.mxu0 0
        %1797 = vmatprep.subr.bf16.mxu0 0
        %1798 = vmatpush1.bf16.msra.mxu0 0
        %1799 = vmatprep.subr.bf16.mxu0 0
        %1800 = vmatpush1.bf16.msra.mxu0 0
        %1801 = vmatprep.subr.bf16.mxu0 0
        %1802 = vmatpush1.bf16.msra.mxu0 0
        %1803 = vmatprep.subr.bf16.mxu0 0
        %1804 = vmatpush1.bf16.msra.mxu0 0
        %1805 = vmatprep.mubr.bf16.mxu0 0
        %1806 = vmatmul.mubr.bf16.gmra.mrb[0].mxu0 %v1768
        %v1807 = vpop.f32.mrb[0].mxu0
        %v1808 = vadd.f32 0.0, %v1807
        %v1809 = vpop.f32.mrb[0].mxu0
        %v1810 = vpop.f32.mrb[0].mxu0
        %v1811 = vpop.f32.mrb[0].mxu0
        %1812 = vdwg.mxu0
        %v1813 = vadd.f32 %v1460, %v1808
        %v1814 = vld [vmem:[%s5] sm:$0x1]
        %v1816 = vlaneseq
        %v1817 = vshrl.u32 %v1816, 7
        %v1818 = vsub.s32 0, %v1817
        %v1819 = vrot.slane %v1814, %v1818
        %v1821 = vadd.f32 %v1813, %v1819
        %v1822 = vlaneseq
        %v1823 = vshrl.u32 %v1822, 7
        %v1824 = vsub.s32 2, %v1823
        %v1825 = vrot.slane %v374, %v1824
        %v1826 = vmul.f32 %v1825, %v1821
        %v1827 = vadd.f32 %v373, %v1826
        %v1828 = vsel %vm375, %v1827, 0.0
        %1829 = vadd.xlane.f32.xlu0 %v1828
        %v1830 = vpop.xlane.xlu0 %1829
        %v1831 = vmul.f32 %v1830, %v379
        %v1832 = vsub.f32 %v1827, %v1831
        %v1833 = vmul.f32 %v1832, %v1832
        %v1834 = vsel %vm375, %v1833, 0.0
        %1835 = vadd.xlane.f32.xlu0 %v1834
        %v1836 = vpop.xlane.xlu0 %1835
        %v1837 = vmul.f32 %v1836, %v379
        %v1838 = vadd.f32 %v1837, 1e-06
        %v1839 = vrsqrt.pop %v1838
        %v1840 = vmul.f32 %v1832, %v1839
        %v1841 = vlaneseq
        %v1842 = vshrl.u32 %v1841, 7
        %v1843 = vsub.s32 4, %v1842
        %v1844 = vrot.slane %v390, %v1843
        %v1845 = vmul.f32 %v1840, %v1844
        %v1846 = vlaneseq
        %v1847 = vshrl.u32 %v1846, 7
        %v1848 = vsub.s32 3, %v1847
        %v1849 = vrot.slane %v374, %v1848
        %v1850 = vadd.f32 %v1845, %v1849
        %v1851 = vpack.c.bf16 %v1850, %v1850
        %v1852 = vld [vmem:[%s6] sm:$0xf]
        %v1853 = vld [vmem:[%s6 + $0x4] sm:$0xf]
        %v1854 = vld [vmem:[%s6 + $0x8] sm:$0xf]
        %v1855 = vld [vmem:[%s6 + $0xc] sm:$0xf]
        %v1856 = vld [vmem:[%s7] sm:$0x1]
        %v1858 = vlaneseq
        %v1859 = vshrl.u32 %v1858, 7
        %v1860 = vsub.s32 0, %v1859
        %v1861 = vrot.slane %v1856, %v1860
        %v1867 = vunpack.c.l.b16 %v1852
        %v1868 = vunpack.c.l.b16 %v1853
        %v1869 = vunpack.c.l.b16 %v1854
        %v1870 = vunpack.c.l.b16 %v1855
        %v1871 = vpack.c.b16 %v1868, %v1867
        %v1872 = vpack.c.b16 %v1870, %v1869
        %v1876 = vsel %vm375, %v1851, 0
        %1878 = vmatprep.subr.bf16.mxu0 0
        %1879 = vmatpush1.bf16.msra.mxu0 %v1871
        %1880 = vmatprep.subr.bf16.mxu0 0
        %1881 = vmatpush1.bf16.msra.mxu0 %v1872
        %1882 = vmatprep.subr.bf16.mxu0 0
        %1883 = vmatpush1.bf16.msra.mxu0 0
        %1884 = vmatprep.subr.bf16.mxu0 0
        %1885 = vmatpush1.bf16.msra.mxu0 0
        %1886 = vmatprep.subr.bf16.mxu0 0
        %1887 = vmatpush1.bf16.msra.mxu0 0
        %1888 = vmatprep.subr.bf16.mxu0 0
        %1889 = vmatpush1.bf16.msra.mxu0 0
        %1890 = vmatprep.subr.bf16.mxu0 0
        %1891 = vmatpush1.bf16.msra.mxu0 0
        %1892 = vmatprep.subr.bf16.mxu0 0
        %1893 = vmatpush1.bf16.msra.mxu0 0
        %1894 = vmatprep.subr.bf16.mxu0 0
        %1895 = vmatpush1.bf16.msra.mxu0 0
        %1896 = vmatprep.subr.bf16.mxu0 0
        %1897 = vmatpush1.bf16.msra.mxu0 0
        %1898 = vmatprep.subr.bf16.mxu0 0
        %1899 = vmatpush1.bf16.msra.mxu0 0
        %1900 = vmatprep.subr.bf16.mxu0 0
        %1901 = vmatpush1.bf16.msra.mxu0 0
        %1902 = vmatprep.subr.bf16.mxu0 0
        %1903 = vmatpush1.bf16.msra.mxu0 0
        %1904 = vmatprep.subr.bf16.mxu0 0
        %1905 = vmatpush1.bf16.msra.mxu0 0
        %1906 = vmatprep.subr.bf16.mxu0 0
        %1907 = vmatpush1.bf16.msra.mxu0 0
        %1908 = vmatprep.subr.bf16.mxu0 0
        %1909 = vmatpush1.bf16.msra.mxu0 0
        %1910 = vmatprep.mubr.bf16.mxu0 0
        %1911 = vmatmul.mubr.bf16.gmra.mrb[0].mxu0 %v1876
        %v1912 = vpop.f32.mrb[0].mxu0
        %v1913 = vadd.f32 %v1861, %v1912
        %v1914 = vpop.f32.mrb[0].mxu0
        %v1915 = vpop.f32.mrb[0].mxu0
        %v1916 = vpop.f32.mrb[0].mxu0
        %1917 = vdwg.mxu0
        %v1918 = vmul.f32 %v1913, 0.5
        %v1919 = vmul.f32 %v1913, 0.044715
        %v1920 = vmul.f32 %v1919, %v1913
        %v1921 = vmul.f32 %v1920, %v1913
        %v1922 = vadd.f32 %v1913, %v1921
        %v1923 = vmul.f32 %v1922, 0.7978846
        %v1924 = vtanh.pop %v1923
        %v1925 = vadd.f32 %v1924, 1.0
        %v1926 = vmul.f32 %v1918, %v1925
        %v1927 = vpack.c.bf16 %v1926, %v1926
        %v1928 = vld [vmem:[%s8] sm:$0xf]
        %v1929 = vld [vmem:[%s8 + $0x4] sm:$0xf]
        %v1930 = vld [vmem:[%s8 + $0x8] sm:$0xf]
        %v1931 = vld [vmem:[%s8 + $0xc] sm:$0xf]
        %v1932 = vld [vmem:[%s8 + $0x10] sm:$0xf]
        %v1933 = vld [vmem:[%s8 + $0x14] sm:$0xf]
        %v1934 = vld [vmem:[%s8 + $0x18] sm:$0xf]
        %v1935 = vld [vmem:[%s8 + $0x1c] sm:$0xf]
        %v1936 = vld [vmem:[%s8 + $0x20] sm:$0xf]
        %v1937 = vld [vmem:[%s8 + $0x24] sm:$0xf]
        %v1938 = vld [vmem:[%s8 + $0x28] sm:$0xf]
        %v1939 = vld [vmem:[%s8 + $0x2c] sm:$0xf]
        %v1940 = vld [vmem:[%s8 + $0x30] sm:$0xf]
        %v1941 = vld [vmem:[%s8 + $0x34] sm:$0xf]
        %v1942 = vld [vmem:[%s8 + $0x38] sm:$0xf]
        %v1943 = vld [vmem:[%s8 + $0x3c] sm:$0xf]
        %v1944 = vld [vmem:[%s9] sm:$0x1]
        %v1946 = vlaneseq
        %v1947 = vshrl.u32 %v1946, 7
        %v1948 = vsub.s32 0, %v1947
        %v1949 = vrot.slane %v1944, %v1948
        %v1967 = vunpack.c.l.b16 %v1928
        %v1968 = vunpack.c.l.b16 %v1929
        %v1969 = vunpack.c.l.b16 %v1930
        %v1970 = vunpack.c.l.b16 %v1931
        %v1971 = vunpack.c.l.b16 %v1932
        %v1972 = vunpack.c.l.b16 %v1933
        %v1973 = vunpack.c.l.b16 %v1934
        %v1974 = vunpack.c.l.b16 %v1935
        %v1975 = vunpack.c.l.b16 %v1936
        %v1976 = vunpack.c.l.b16 %v1937
        %v1977 = vunpack.c.l.b16 %v1938
        %v1978 = vunpack.c.l.b16 %v1939
        %v1979 = vunpack.c.l.b16 %v1940
        %v1980 = vunpack.c.l.b16 %v1941
        %v1981 = vunpack.c.l.b16 %v1942
        %v1982 = vunpack.c.l.b16 %v1943
        %v1983 = vpack.c.b16 %v1968, %v1967
        %v1984 = vpack.c.b16 %v1970, %v1969
        %v1985 = vpack.c.b16 %v1972, %v1971
        %v1986 = vpack.c.b16 %v1974, %v1973
        %v1987 = vpack.c.b16 %v1976, %v1975
        %v1988 = vpack.c.b16 %v1978, %v1977
        %v1989 = vpack.c.b16 %v1980, %v1979
        %v1990 = vpack.c.b16 %v1982, %v1981
        %1999 = vmatprep.subr.bf16.mxu0 0
        %2000 = vmatpush1.bf16.msra.mxu0 %v1983
        %2001 = vmatprep.subr.bf16.mxu0 0
        %2002 = vmatpush1.bf16.msra.mxu0 %v1984
        %2003 = vmatprep.subr.bf16.mxu0 0
        %2004 = vmatpush1.bf16.msra.mxu0 %v1985
        %2005 = vmatprep.subr.bf16.mxu0 0
        %2006 = vmatpush1.bf16.msra.mxu0 %v1986
        %2007 = vmatprep.subr.bf16.mxu0 0
        %2008 = vmatpush1.bf16.msra.mxu0 %v1987
        %2009 = vmatprep.subr.bf16.mxu0 0
        %2010 = vmatpush1.bf16.msra.mxu0 %v1988
        %2011 = vmatprep.subr.bf16.mxu0 0
        %2012 = vmatpush1.bf16.msra.mxu0 %v1989
        %2013 = vmatprep.subr.bf16.mxu0 0
        %2014 = vmatpush1.bf16.msra.mxu0 %v1990
        %2015 = vmatprep.subr.bf16.mxu0 0
        %2016 = vmatpush1.bf16.msra.mxu0 0
        %2017 = vmatprep.subr.bf16.mxu0 0
        %2018 = vmatpush1.bf16.msra.mxu0 0
        %2019 = vmatprep.subr.bf16.mxu0 0
        %2020 = vmatpush1.bf16.msra.mxu0 0
        %2021 = vmatprep.subr.bf16.mxu0 0
        %2022 = vmatpush1.bf16.msra.mxu0 0
        %2023 = vmatprep.subr.bf16.mxu0 0
        %2024 = vmatpush1.bf16.msra.mxu0 0
        %2025 = vmatprep.subr.bf16.mxu0 0
        %2026 = vmatpush1.bf16.msra.mxu0 0
        %2027 = vmatprep.subr.bf16.mxu0 0
        %2028 = vmatpush1.bf16.msra.mxu0 0
        %2029 = vmatprep.subr.bf16.mxu0 0
        %2030 = vmatpush1.bf16.msra.mxu0 0
        %2031 = vmatprep.mubr.bf16.mxu0 0
        %2032 = vmatmul.mubr.bf16.gmra.mrb[0].mxu0 %v1927
        %v2033 = vpop.f32.mrb[0].mxu0
        %v2034 = vadd.f32 %v1949, %v2033
        %v2035 = vpop.f32.mrb[0].mxu0
        %v2036 = vpop.f32.mrb[0].mxu0
        %v2037 = vpop.f32.mrb[0].mxu0
        %2038 = vdwg.mxu0
        %v2039 = vlaneseq
        %v2040 = vshrl.u32 %v2039, 7
        %v2041 = vsub.s32 5, %v2040
        %v2042 = vrot.slane %v374, %v2041
        %v2043 = vmul.f32 %v2042, %v2034
        %v2044 = vadd.f32 %v1827, %v2043
        %2045 = vst.msk [vmem:[%s363] sm:$0xff] %vm375, %v2044
        %s2046 = sand.u32 %s252, 1
        %s2047 = scalar_lea.sflag [#allocation3], %s2046
        %s2048 = sand.u32 %s252, 1
        %s2049 = smul.addr %s2048, 8
        %s2050 = scalar_lea.vmem [#allocation2], %s2049
        // Predicated region
        $region61: #{_dit_block_impl.1} parent=59 // pred_check
          %p2051 = pneg %p262
        $region62: #{_dit_block_impl.1} parent=59 // pred_check_branch
          %2053 = sbr.rel (%p2051) target = $region64
        $region63: #{_dit_block_impl.1} parent=59 // pred_region
          %s2055 = ssub.s32 128, 128
          %2056 = vsyncadd %s2047, %s2055
          %s2057 = smul.addr %s24, 128
          %s2058 = scalar_lea.hbm %s10, %s2057
          %s2060 = sshll.u32 %s2050, 4
          %s2061 = int_to_ptr.vmem [resolvable:$true] %s2060
          %2063 = dma.vmem_to_hbm [thread:$0]  %s2061, 128, %s2058, %s2047
        $region64: #{_dit_block_impl.1} parent=59 // pred_fallthru
          _
      $region60: #{_dit_block_impl.1} parent=5 // pred_fallthru
        _
      %p2064 = scmp.le.s32.totalorder 2, %s19
      // Predicated region
      $region65: #{_dit_block_impl.1} parent=5 // pred_check
        %p2065 = pneg %p2064
      $region66: #{_dit_block_impl.1} parent=5 // pred_check_branch
        %2067 = sbr.rel (%p2065) target = $region68
      $region67: #{_dit_block_impl.1} parent=5 // pred_region
        %s2068 = ssub.s32 %s19, 2
        // Predicated region
        $region69: #{_dit_block_impl.1} parent=67 // pred_check
          %p2069 = pneg %p268
        $region70: #{_dit_block_impl.1} parent=67 // pred_check_branch
          %2071 = sbr.rel (%p2069) target = $region72
        $region71: #{_dit_block_impl.1} parent=67 // pred_region
          %s2072 = sand.u32 %s253, 1
          %s2073 = scalar_lea.sflag [#allocation3], %s2072
          %s2074 = sand.u32 %s253, 1
          %s2075 = smul.addr %s2074, 8
          %s2076 = scalar_lea.vmem [#allocation2], %s2075
          %2077 = dma.done %s2073, 128
        $region72: #{_dit_block_impl.1} parent=67 // pred_fallthru
          _
      $region68: #{_dit_block_impl.1} parent=5 // pred_fallthru
        _
    $region6: #{_dit_block_impl.1} parent=1 // loop_footer
      %s23 = sadd.s32 1, %s19
    $region7: #{_dit_block_impl.1} parent=1 // loop_footer_branch
      %18 = sbr.rel target = $region3
    $region8: #{_dit_block_impl.1} parent=1 // loop_exit
      _
    %2078 = vsyncpa [#allocation3], 1
    %s2079 = scalar_lea.sflag [#allocation3], 1
    %2080 = vsyncpa %s2079, 1

// kernel: _dit_block_impl.1
$region0: #{_dit_block_impl.1}
  #allocation0 [shape = 'u32[]', space=smem, size = 0x4, offset = 0x4, fixed_abs, tag = 'smem constant byte address 0x4 - core index']
  #allocation1 [shape = 'u32[144,128]{1,0:T(1,128)}', space=vmem, size = 0x12000, scoped, tag = 'internal scratch']
  %s0 = inlined_call_operand.vmem [shape: f32[2,8,32], index: 0, kind: input, shape index: {}]
  %s1 = inlined_call_operand.vmem [shape: f32[2,6,32], index: 1, kind: input, shape index: {}]
  %s2 = inlined_call_operand.vmem [shape: bf16[3,4,32,8], index: 2, kind: input, shape index: {}]
  %s3 = inlined_call_operand.vmem [shape: f32[3,4,1,8], index: 3, kind: input, shape index: {}]
  %s4 = inlined_call_operand.vmem [shape: bf16[4,8,32], index: 4, kind: input, shape index: {}]
  %s5 = inlined_call_operand.vmem [shape: f32[1,32], index: 5, kind: input, shape index: {}]
  %s6 = inlined_call_operand.vmem [shape: bf16[32,128], index: 6, kind: input, shape index: {}]
  %s7 = inlined_call_operand.vmem [shape: f32[1,128], index: 7, kind: input, shape index: {}]
  %s8 = inlined_call_operand.vmem [shape: bf16[128,32], index: 8, kind: input, shape index: {}]
  %s9 = inlined_call_operand.vmem [shape: f32[1,32], index: 9, kind: input, shape index: {}]
  %s10 = inlined_call_operand.hbm [shape: f32[2,8,32], index: 10, kind: output, shape index: {}]
  %s11 = sld [smem:[#allocation0]]
  $region73: #{_dit_block_impl.1} parent=0
    _
  %s13 = ssub.s32 1, %s11
  %s14 = scalar_select 0, %s13, %s11
  $region1: #{_dit_block_impl.1} parent=0
    #allocation2 [shape = 'u8[8192]{0}', space=vmem, size = 0x2000, scoped, tag = 'output window, operand 0']
    #allocation3 [shape = 's32[2]{0}', space=sflag, size = 0x8, scoped, tag = 'scoped memory for _dit_block_impl.1']
    %15 = vsyncpa [#allocation3], 0
    %s16 = scalar_lea.sflag [#allocation3], 1
    %17 = vsyncpa %s16, 0
    loop: start=0, step=1, limit=4
    $region2: #{_dit_block_impl.1} parent=1 // loop_pre_header
      _
    $region3: #{_dit_block_impl.1} parent=1 // loop_header
      %s19 = sphi 0, %s23
      %p20 = scmp.ge.s32.totalorder %s19, 4
      %s29 = sphi 0, %s31
      %s32 = sphi 0, %s29
      %s33 = sphi 0, %s32
      %s49 = sphi 0, %s33
      %s55 = sphi 0, %s57
      %s58 = sphi 0, %s55
      %s59 = sphi 0, %s58
      %s75 = sphi 0, %s59
      %s79 = sphi 0, %s79
      %s81 = sphi 0, %s79
      %s82 = sphi 0, %s81
      %s96 = sphi 0, %s82
      %s100 = sphi 0, %s100
      %s102 = sphi 0, %s100
      %s103 = sphi 0, %s102
      %s117 = sphi 0, %s103
      %s121 = sphi 0, %s121
      %s123 = sphi 0, %s121
      %s124 = sphi 0, %s123
      %s138 = sphi 0, %s124
      %s142 = sphi 0, %s142
      %s144 = sphi 0, %s142
      %s145 = sphi 0, %s144
      %s159 = sphi 0, %s145
      %s163 = sphi 0, %s163
      %s165 = sphi 0, %s163
      %s166 = sphi 0, %s165
      %s180 = sphi 0, %s166
      %s184 = sphi 0, %s184
      %s186 = sphi 0, %s184
      %s187 = sphi 0, %s186
      %s201 = sphi 0, %s187
      %s205 = sphi 0, %s205
      %s207 = sphi 0, %s205
      %s208 = sphi 0, %s207
      %s222 = sphi 0, %s208
      %s226 = sphi 0, %s226
      %s228 = sphi 0, %s226
      %s229 = sphi 0, %s228
      %s243 = sphi 0, %s229
      %s249 = sphi 0, %s251
      %s252 = sphi 0, %s249
      %s253 = sphi 0, %s252
      %s269 = sphi 0, %s253
    $region4: #{_dit_block_impl.1} parent=1 // loop_header_branch
      %22 = sbr.rel (%p20) target = $region8
    $region5: #{_dit_block_impl.1} parent=1 // loop_body
      %s24 = ssub.s32 %s19, 1
      %s25 = ssub.s32 %s19, 2
      %s26 = sadd.s32 %s19, 1
      %s27 = ssub.s32 %s19, %s26
      %p28 = scmp.eq.s32.totalorder %s27, 0
      %s30 = sadd.s32 %s29, 1
      %s31 = scalar_select %p28, %s29, %s30
      %p34 = pneg %p28
      %p35 = scmp.eq.s32.totalorder %s19, 1
      %p36 = por %p34, %p35
      %p37 = scmp.ne.s32.totalorder %s29, %s32
      %p38 = scmp.eq.s32.totalorder %s19, 0
      %p39 = por %p37, %p38
      %p40 = scmp.ne.s32.totalorder %s29, %s32
      %p41 = scmp.eq.s32.totalorder %s24, 1
      %p42 = por %p40, %p41
      %p43 = scmp.ne.s32.totalorder %s32, %s33
      %p44 = scmp.eq.s32.totalorder %s24, 0
      %p45 = por %p43, %p44
      %p46 = scmp.ne.s32.totalorder %s32, %s33
      %p47 = scmp.eq.s32.totalorder %s25, 1
      %p48 = por %p46, %p47
      %p50 = scmp.ne.s32.totalorder %s33, %s49
      %p51 = scmp.eq.s32.totalorder %s25, 0
      %p52 = por %p50, %p51
      %s53 = ssub.s32 %s19, %s26
      %p54 = scmp.eq.s32.totalorder %s53, 0
      %s56 = sadd.s32 %s55, 1
      %s57 = scalar_select %p54, %s55, %s56
      %p60 = pneg %p54
      %p61 = scmp.eq.s32.totalorder %s19, 1
      %p62 = por %p60, %p61
      %p63 = scmp.ne.s32.totalorder %s55, %s58
      %p64 = scmp.eq.s32.totalorder %s19, 0
      %p65 = por %p63, %p64
      %p66 = scmp.ne.s32.totalorder %s55, %s58
      %p67 = scmp.eq.s32.totalorder %s24, 1
      %p68 = por %p66, %p67
      %p69 = scmp.ne.s32.totalorder %s58, %s59
      %p70 = scmp.eq.s32.totalorder %s24, 0
      %p71 = por %p69, %p70
      %p72 = scmp.ne.s32.totalorder %s58, %s59
      %p73 = scmp.eq.s32.totalorder %s25, 1
      %p74 = por %p72, %p73
      %p76 = scmp.ne.s32.totalorder %s59, %s75
      %p77 = scmp.eq.s32.totalorder %s25, 0
      %p78 = por %p76, %p77
      %s80 = sadd.s32 %s79, 1
      %p83 = scmp.eq.s32.totalorder %s19, 1
      %p84 = scmp.ne.s32.totalorder %s79, %s81
      %p85 = scmp.eq.s32.totalorder %s19, 0
      %p86 = por %p84, %p85
      %p87 = scmp.ne.s32.totalorder %s79, %s81
      %p88 = scmp.eq.s32.totalorder %s24, 1
      %p89 = por %p87, %p88
      %p90 = scmp.ne.s32.totalorder %s81, %s82
      %p91 = scmp.eq.s32.totalorder %s24, 0
      %p92 = por %p90, %p91
      %p93 = scmp.ne.s32.totalorder %s81, %s82
      %p94 = scmp.eq.s32.totalorder %s25, 1
      %p95 = por %p93, %p94
      %p97 = scmp.ne.s32.totalorder %s82, %s96
      %p98 = scmp.eq.s32.totalorder %s25, 0
      %p99 = por %p97, %p98
      %s101 = sadd.s32 %s100, 1
      %p104 = scmp.eq.s32.totalorder %s19, 1
      %p105 = scmp.ne.s32.totalorder %s100, %s102
      %p106 = scmp.eq.s32.totalorder %s19, 0
      %p107 = por %p105, %p106
      %p108 = scmp.ne.s32.totalorder %s100, %s102
      %p109 = scmp.eq.s32.totalorder %s24, 1
      %p110 = por %p108, %p109
      %p111 = scmp.ne.s32.totalorder %s102, %s103
      %p112 = scmp.eq.s32.totalorder %s24, 0
      %p113 = por %p111, %p112
      %p114 = scmp.ne.s32.totalorder %s102, %s103
      %p115 = scmp.eq.s32.totalorder %s25, 1
      %p116 = por %p114, %p115
      %p118 = scmp.ne.s32.totalorder %s103, %s117
      %p119 = scmp.eq.s32.totalorder %s25, 0
      %p120 = por %p118, %p119
      %s122 = sadd.s32 %s121, 1
      %p125 = scmp.eq.s32.totalorder %s19, 1
      %p126 = scmp.ne.s32.totalorder %s121, %s123
      %p127 = scmp.eq.s32.totalorder %s19, 0
      %p128 = por %p126, %p127
      %p129 = scmp.ne.s32.totalorder %s121, %s123
      %p130 = scmp.eq.s32.totalorder %s24, 1
      %p131 = por %p129, %p130
      %p132 = scmp.ne.s32.totalorder %s123, %s124
      %p133 = scmp.eq.s32.totalorder %s24, 0
      %p134 = por %p132, %p133
      %p135 = scmp.ne.s32.totalorder %s123, %s124
      %p136 = scmp.eq.s32.totalorder %s25, 1
      %p137 = por %p135, %p136
      %p139 = scmp.ne.s32.totalorder %s124, %s138
      %p140 = scmp.eq.s32.totalorder %s25, 0
      %p141 = por %p139, %p140
      %s143 = sadd.s32 %s142, 1
      %p146 = scmp.eq.s32.totalorder %s19, 1
      %p147 = scmp.ne.s32.totalorder %s142, %s144
      %p148 = scmp.eq.s32.totalorder %s19, 0
      %p149 = por %p147, %p148
      %p150 = scmp.ne.s32.totalorder %s142, %s144
      %p151 = scmp.eq.s32.totalorder %s24, 1
      %p152 = por %p150, %p151
      %p153 = scmp.ne.s32.totalorder %s144, %s145
      %p154 = scmp.eq.s32.totalorder %s24, 0
      %p155 = por %p153, %p154
      %p156 = scmp.ne.s32.totalorder %s144, %s145
      %p157 = scmp.eq.s32.totalorder %s25, 1
      %p158 = por %p156, %p157
      %p160 = scmp.ne.s32.totalorder %s145, %s159
      %p161 = scmp.eq.s32.totalorder %s25, 0
      %p162 = por %p160, %p161
      %s164 = sadd.s32 %s163, 1
      %p167 = scmp.eq.s32.totalorder %s19, 1
      %p168 = scmp.ne.s32.totalorder %s163, %s165
      %p169 = scmp.eq.s32.totalorder %s19, 0
      %p170 = por %p168, %p169
      %p171 = scmp.ne.s32.totalorder %s163, %s165
      %p172 = scmp.eq.s32.totalorder %s24, 1
      %p173 = por %p171, %p172
      %p174 = scmp.ne.s32.totalorder %s165, %s166
      %p175 = scmp.eq.s32.totalorder %s24, 0
      %p176 = por %p174, %p175
      %p177 = scmp.ne.s32.totalorder %s165, %s166
      %p178 = scmp.eq.s32.totalorder %s25, 1
      %p179 = por %p177, %p178
      %p181 = scmp.ne.s32.totalorder %s166, %s180
      %p182 = scmp.eq.s32.totalorder %s25, 0
      %p183 = por %p181, %p182
      %s185 = sadd.s32 %s184, 1
      %p188 = scmp.eq.s32.totalorder %s19, 1
      %p189 = scmp.ne.s32.totalorder %s184, %s186
      %p190 = scmp.eq.s32.totalorder %s19, 0
      %p191 = por %p189, %p190
      %p192 = scmp.ne.s32.totalorder %s184, %s186
      %p193 = scmp.eq.s32.totalorder %s24, 1
      %p194 = por %p192, %p193
      %p195 = scmp.ne.s32.totalorder %s186, %s187
      %p196 = scmp.eq.s32.totalorder %s24, 0
      %p197 = por %p195, %p196
      %p198 = scmp.ne.s32.totalorder %s186, %s187
      %p199 = scmp.eq.s32.totalorder %s25, 1
      %p200 = por %p198, %p199
      %p202 = scmp.ne.s32.totalorder %s187, %s201
      %p203 = scmp.eq.s32.totalorder %s25, 0
      %p204 = por %p202, %p203
      %s206 = sadd.s32 %s205, 1
      %p209 = scmp.eq.s32.totalorder %s19, 1
      %p210 = scmp.ne.s32.totalorder %s205, %s207
      %p211 = scmp.eq.s32.totalorder %s19, 0
      %p212 = por %p210, %p211
      %p213 = scmp.ne.s32.totalorder %s205, %s207
      %p214 = scmp.eq.s32.totalorder %s24, 1
      %p215 = por %p213, %p214
      %p216 = scmp.ne.s32.totalorder %s207, %s208
      %p217 = scmp.eq.s32.totalorder %s24, 0
      %p218 = por %p216, %p217
      %p219 = scmp.ne.s32.totalorder %s207, %s208
      %p220 = scmp.eq.s32.totalorder %s25, 1
      %p221 = por %p219, %p220
      %p223 = scmp.ne.s32.totalorder %s208, %s222
      %p224 = scmp.eq.s32.totalorder %s25, 0
      %p225 = por %p223, %p224
      %s227 = sadd.s32 %s226, 1
      %p230 = scmp.eq.s32.totalorder %s19, 1
      %p231 = scmp.ne.s32.totalorder %s226, %s228
      %p232 = scmp.eq.s32.totalorder %s19, 0
      %p233 = por %p231, %p232
      %p234 = scmp.ne.s32.totalorder %s226, %s228
      %p235 = scmp.eq.s32.totalorder %s24, 1
      %p236 = por %p234, %p235
      %p237 = scmp.ne.s32.totalorder %s228, %s229
      %p238 = scmp.eq.s32.totalorder %s24, 0
      %p239 = por %p237, %p238
      %p240 = scmp.ne.s32.totalorder %s228, %s229
      %p241 = scmp.eq.s32.totalorder %s25, 1
      %p242 = por %p240, %p241
      %p244 = scmp.ne.s32.totalorder %s229, %s243
      %p245 = scmp.eq.s32.totalorder %s25, 0
      %p246 = por %p244, %p245
      %s247 = ssub.s32 %s19, %s26
      %p248 = scmp.eq.s32.totalorder %s247, 0
      %s250 = sadd.s32 %s249, 1
      %s251 = scalar_select %p248, %s249, %s250
      %p254 = pneg %p248
      %p255 = scmp.eq.s32.totalorder %s19, 1
      %p256 = por %p254, %p255
      %p257 = scmp.ne.s32.totalorder %s249, %s252
      %p258 = scmp.eq.s32.totalorder %s19, 0
      %p259 = por %p257, %p258
      %p260 = scmp.ne.s32.totalorder %s249, %s252
      %p261 = scmp.eq.s32.totalorder %s24, 1
      %p262 = por %p260, %p261
      %p263 = scmp.ne.s32.totalorder %s252, %s253
      %p264 = scmp.eq.s32.totalorder %s24, 0
      %p265 = por %p263, %p264
      %p266 = scmp.ne.s32.totalorder %s252, %s253
      %p267 = scmp.eq.s32.totalorder %s25, 1
      %p268 = por %p266, %p267
      %p270 = scmp.ne.s32.totalorder %s253, %s269
      %p271 = scmp.eq.s32.totalorder %s25, 0
      %p272 = por %p270, %p271
      %p273 = scmp.le.s32.totalorder 1, %s19
      %p274 = scmp.lt.s32.totalorder %s19, 3
      %p275 = pnand %p273, %p274
      %p276 = pneg %p275
      // Predicated region
      $region9: #{_dit_block_impl.1} parent=5 // pred_check
        _
      $region10: #{_dit_block_impl.1} parent=5 // pred_check_branch
        %278 = sbr.rel (%p275) target = $region12
      $region11: #{_dit_block_impl.1} parent=5 // pred_region
        %s279 = ssub.s32 %s19, 1
        // Predicated region
        $region13: #{_dit_block_impl.1} parent=11 // pred_check
          %p280 = pneg %p92
        $region14: #{_dit_block_impl.1} parent=11 // pred_check_branch
          %282 = sbr.rel (%p280) target = $region16
        $region15: #{_dit_block_impl.1} parent=11 // pred_region
          _
        $region16: #{_dit_block_impl.1} parent=11 // pred_fallthru
          _
        // Predicated region
        $region17: #{_dit_block_impl.1} parent=11 // pred_check
          %p283 = pneg %p113
        $region18: #{_dit_block_impl.1} parent=11 // pred_check_branch
          %285 = sbr.rel (%p283) target = $region20
        $region19: #{_dit_block_impl.1} parent=11 // pred_region
          _
        $region20: #{_dit_block_impl.1} parent=11 // pred_fallthru
          _
        // Predicated region
        $region21: #{_dit_block_impl.1} parent=11 // pred_check
          %p286 = pneg %p134
        $region22: #{_dit_block_impl.1} parent=11 // pred_check_branch
          %288 = sbr.rel (%p286) target = $region24
        $region23: #{_dit_block_impl.1} parent=11 // pred_region
          _
        $region24: #{_dit_block_impl.1} parent=11 // pred_fallthru
          _
        // Predicated region
        $region25: #{_dit_block_impl.1} parent=11 // pred_check
          %p289 = pneg %p155
        $region26: #{_dit_block_impl.1} parent=11 // pred_check_branch
          %291 = sbr.rel (%p289) target = $region28
        $region27: #{_dit_block_impl.1} parent=11 // pred_region
          _
        $region28: #{_dit_block_impl.1} parent=11 // pred_fallthru
          _
        // Predicated region
        $region29: #{_dit_block_impl.1} parent=11 // pred_check
          %p292 = pneg %p176
        $region30: #{_dit_block_impl.1} parent=11 // pred_check_branch
          %294 = sbr.rel (%p292) target = $region32
        $region31: #{_dit_block_impl.1} parent=11 // pred_region
          _
        $region32: #{_dit_block_impl.1} parent=11 // pred_fallthru
          _
        // Predicated region
        $region33: #{_dit_block_impl.1} parent=11 // pred_check
          %p295 = pneg %p197
        $region34: #{_dit_block_impl.1} parent=11 // pred_check_branch
          %297 = sbr.rel (%p295) target = $region36
        $region35: #{_dit_block_impl.1} parent=11 // pred_region
          _
        $region36: #{_dit_block_impl.1} parent=11 // pred_fallthru
          _
        // Predicated region
        $region37: #{_dit_block_impl.1} parent=11 // pred_check
          %p298 = pneg %p218
        $region38: #{_dit_block_impl.1} parent=11 // pred_check_branch
          %300 = sbr.rel (%p298) target = $region40
        $region39: #{_dit_block_impl.1} parent=11 // pred_region
          _
        $region40: #{_dit_block_impl.1} parent=11 // pred_fallthru
          _
        // Predicated region
        $region41: #{_dit_block_impl.1} parent=11 // pred_check
          %p301 = pneg %p239
        $region42: #{_dit_block_impl.1} parent=11 // pred_check_branch
          %303 = sbr.rel (%p301) target = $region44
        $region43: #{_dit_block_impl.1} parent=11 // pred_region
          _
        $region44: #{_dit_block_impl.1} parent=11 // pred_fallthru
          _
      $region12: #{_dit_block_impl.1} parent=5 // pred_fallthru
        _
      %p304 = scmp.lt.s32.totalorder %s19, 2
      // Predicated region
      $region45: #{_dit_block_impl.1} parent=5 // pred_check
        %p305 = pneg %p304
      $region46: #{_dit_block_impl.1} parent=5 // pred_check_branch
        %307 = sbr.rel (%p305) target = $region48
      $region47: #{_dit_block_impl.1} parent=5 // pred_region
        // Predicated region
        $region49: #{_dit_block_impl.1} parent=47 // pred_check
          %p308 = pneg %p39
        $region50: #{_dit_block_impl.1} parent=47 // pred_check_branch
          %310 = sbr.rel (%p308) target = $region52
        $region51: #{_dit_block_impl.1} parent=47 // pred_region
          %p311 = scmp.lt.s32.totalorder %s19, 1
          %s312 = scalar_select %p311, %s19, 1
          %s313 = smul.addr %s312, 8
          %s314 = scalar_lea.vmem %s0, %s313
        $region52: #{_dit_block_impl.1} parent=47 // pred_fallthru
          _
        // Predicated region
        $region53: #{_dit_block_impl.1} parent=47 // pred_check
          %p315 = pneg %p65
        $region54: #{_dit_block_impl.1} parent=47 // pred_check_branch
          %317 = sbr.rel (%p315) target = $region56
        $region55: #{_dit_block_impl.1} parent=47 // pred_region
          %p318 = scmp.lt.s32.totalorder %s19, 1
          %s319 = scalar_select %p318, %s19, 1
          %s320 = smul.addr %s319, 8
          %s321 = scalar_lea.vmem %s1, %s320
        $region56: #{_dit_block_impl.1} parent=47 // pred_fallthru
          _
      $region48: #{_dit_block_impl.1} parent=5 // pred_fallthru
        _
      %p322 = scmp.le.s32.totalorder 1, %s19
      %p323 = scmp.lt.s32.totalorder %s19, 3
      %p324 = pnand %p322, %p323
      %p325 = pneg %p324
      // Predicated region
      $region57: #{_dit_block_impl.1} parent=5 // pred_check
        _
      $region58: #{_dit_block_impl.1} parent=5 // pred_check_branch
        %327 = sbr.rel (%p324) target = $region60
      $region59: #{_dit_block_impl.1} parent=5 // pred_region
        %s328 = ssub.s32 %s19, 1
        %p329 = scmp.lt.s32.totalorder %s24, 1
        %s330 = scalar_select %p329, %s24, 1
        %s331 = smul.addr %s330, 8
        %s332 = scalar_lea.vmem %s0, %s331
        %p333 = pneg %p45
        %p334 = pneg %p42
        %p335 = scmp.lt.s32.totalorder %s24, 1
        %s336 = scalar_select %p335, %s24, 1
        %s337 = smul.addr %s336, 8
        %s338 = scalar_lea.vmem %s1, %s337
        %p339 = pneg %p71
        %p340 = pneg %p68
        %p341 = pneg %p92
        %p342 = pneg %p89
        %p343 = pneg %p113
        %p344 = pneg %p110
        %p345 = pneg %p134
        %p346 = pneg %p131
        %p347 = pneg %p155
        %p348 = pneg %p152
        %p349 = pneg %p176
        %p350 = pneg %p173
        %p351 = pneg %p197
        %p352 = pneg %p194
        %p353 = pneg %p218
        %p354 = pneg %p215
        %p355 = pneg %p239
        %p356 = pneg %p236
        %p357 = pneg %p265
        %p358 = pneg %p262
        %s359 = sand.u32 %s252, 1
        %s360 = scalar_lea.sflag [#allocation3], %s359
        %s361 = sand.u32 %s252, 1
        %s362 = smul.addr %s361, 8
        %s363 = scalar_lea.vmem [#allocation2], %s362
        %p364 = scmp.lt.s32.totalorder %s24, 1
        %s365 = scalar_select %p364, %s24, 1
        %s366 = smul.addr %s365, 8
        %s367 = scalar_lea.vmem %s0, %s366
        %p368 = scmp.lt.s32.totalorder %s24, 1
        %s369 = scalar_select %p368, %s24, 1
        %s370 = smul.addr %s369, 8
        %s371 = scalar_lea.vmem %s1, %s370
        %v373 = vld [vmem:[%s367] sm:$0xff]
        %v374 = vld [vmem:[%s371] sm:$0x3f]
        %vm375 = vcmask 261120
        %v376 = vsel %vm375, %v373, 0.0
        %377 = vadd.xlane.f32.xlu0 %v376
        %v378 = vpop.xlane.xlu0 %377
        %v379 = vrcp.pop 32.0
        %v380 = vmul.f32 %v378, %v379
        %v381 = vsub.f32 %v373, %v380
        %v382 = vmul.f32 %v381, %v381
        %v383 = vsel %vm375, %v382, 0.0
        %384 = vadd.xlane.f32.xlu0 %v383
        %v385 = vpop.xlane.xlu0 %384
        %v386 = vmul.f32 %v385, %v379
        %v387 = vadd.f32 %v386, 1e-06
        %v388 = vrsqrt.pop %v387
        %v389 = vmul.f32 %v381, %v388
        %v390 = vadd.f32 %v374, 1.0
        %v391 = vlaneseq
        %v392 = vshrl.u32 %v391, 7
        %v393 = vsub.s32 1, %v392
        %v394 = vrot.slane %v390, %v393
        %v395 = vmul.f32 %v389, %v394
        %v396 = vlaneseq
        %v397 = vshrl.u32 %v396, 7
        %v398 = vsub.s32 0, %v397
        %v399 = vrot.slane %v374, %v398
        %v400 = vadd.f32 %v395, %v399
        %v401 = vpack.c.bf16 %v400, %v400
        %v402 = vld [vmem:[%s2] sm:$0xf]
        %v403 = vld [vmem:[%s2 + $0x4] sm:$0xf]
        %v404 = vld [vmem:[%s2 + $0x8] sm:$0xf]
        %v405 = vld [vmem:[%s2 + $0xc] sm:$0xf]
        %v406 = vld [vmem:[%s3] sm:$0x1]
        %v408 = vlaneseq
        %v409 = vshrl.u32 %v408, 7
        %v410 = vsub.s32 0, %v409
        %v411 = vrot.slane %v406, %v410
        %v417 = vunpack.c.l.b16 %v402
        %v418 = vunpack.c.l.b16 %v403
        %v419 = vunpack.c.l.b16 %v404
        %v420 = vunpack.c.l.b16 %v405
        %v421 = vpack.c.b16 %v418, %v417
        %v422 = vpack.c.b16 %v420, %v419
        %v426 = vsel %vm375, %v401, 0
        %428 = vmatprep.subr.bf16.mxu0 0
        %429 = vmatpush1.bf16.msra.mxu0 %v421
        %430 = vmatprep.subr.bf16.mxu0 0
        %431 = vmatpush1.bf16.msra.mxu0 %v422
        %432 = vmatprep.subr.bf16.mxu0 0
        %433 = vmatpush1.bf16.msra.mxu0 0
        %434 = vmatprep.subr.bf16.mxu0 0
        %435 = vmatpush1.bf16.msra.mxu0 0
        %436 = vmatprep.subr.bf16.mxu0 0
        %437 = vmatpush1.bf16.msra.mxu0 0
        %438 = vmatprep.subr.bf16.mxu0 0
        %439 = vmatpush1.bf16.msra.mxu0 0
        %440 = vmatprep.subr.bf16.mxu0 0
        %441 = vmatpush1.bf16.msra.mxu0 0
        %442 = vmatprep.subr.bf16.mxu0 0
        %443 = vmatpush1.bf16.msra.mxu0 0
        %444 = vmatprep.subr.bf16.mxu0 0
        %445 = vmatpush1.bf16.msra.mxu0 0
        %446 = vmatprep.subr.bf16.mxu0 0
        %447 = vmatpush1.bf16.msra.mxu0 0
        %448 = vmatprep.subr.bf16.mxu0 0
        %449 = vmatpush1.bf16.msra.mxu0 0
        %450 = vmatprep.subr.bf16.mxu0 0
        %451 = vmatpush1.bf16.msra.mxu0 0
        %452 = vmatprep.subr.bf16.mxu0 0
        %453 = vmatpush1.bf16.msra.mxu0 0
        %454 = vmatprep.subr.bf16.mxu0 0
        %455 = vmatpush1.bf16.msra.mxu0 0
        %456 = vmatprep.subr.bf16.mxu0 0
        %457 = vmatpush1.bf16.msra.mxu0 0
        %458 = vmatprep.subr.bf16.mxu0 0
        %459 = vmatpush1.bf16.msra.mxu0 0
        %460 = vmatprep.mubr.bf16.mxu0 0
        %461 = vmatmul.mubr.bf16.gmra.mrb[0].mxu0 %v426
        %v462 = vpop.f32.mrb[0].mxu0
        %v463 = vadd.f32 %v411, %v462
        %v464 = vpop.f32.mrb[0].mxu0
        %v465 = vpop.f32.mrb[0].mxu0
        %v466 = vpop.f32.mrb[0].mxu0
        %467 = vdwg.mxu0
        %s468 = scalar_lea.vmem %s2, 64
        %v469 = vld [vmem:[%s468] sm:$0xf]
        %v470 = vld [vmem:[%s468 + $0x4] sm:$0xf]
        %v471 = vld [vmem:[%s468 + $0x8] sm:$0xf]
        %v472 = vld [vmem:[%s468 + $0xc] sm:$0xf]
        %s473 = scalar_lea.vmem %s3, 4
        %v474 = vld [vmem:[%s473] sm:$0x1]
        %v476 = vlaneseq
        %v477 = vshrl.u32 %v476, 7
        %v478 = vsub.s32 0, %v477
        %v479 = vrot.slane %v474, %v478
        %v485 = vunpack.c.l.b16 %v469
        %v486 = vunpack.c.l.b16 %v470
        %v487 = vunpack.c.l.b16 %v471
        %v488 = vunpack.c.l.b16 %v472
        %v489 = vpack.c.b16 %v486, %v485
        %v490 = vpack.c.b16 %v488, %v487
        %493 = vmatprep.subr.bf16.mxu0 0
        %494 = vmatpush1.bf16.msra.mxu0 %v489
        %495 = vmatprep.subr.bf16.mxu0 0
        %496 = vmatpush1.bf16.msra.mxu0 %v490
        %497 = vmatprep.subr.bf16.mxu0 0
        %498 = vmatpush1.bf16.msra.mxu0 0
        %499 = vmatprep.subr.bf16.mxu0 0
        %500 = vmatpush1.bf16.msra.mxu0 0
        %501 = vmatprep.subr.bf16.mxu0 0
        %502 = vmatpush1.bf16.msra.mxu0 0
        %503 = vmatprep.subr.bf16.mxu0 0
        %504 = vmatpush1.bf16.msra.mxu0 0
        %505 = vmatprep.subr.bf16.mxu0 0
        %506 = vmatpush1.bf16.msra.mxu0 0
        %507 = vmatprep.subr.bf16.mxu0 0
        %508 = vmatpush1.bf16.msra.mxu0 0
        %509 = vmatprep.subr.bf16.mxu0 0
        %510 = vmatpush1.bf16.msra.mxu0 0
        %511 = vmatprep.subr.bf16.mxu0 0
        %512 = vmatpush1.bf16.msra.mxu0 0
        %513 = vmatprep.subr.bf16.mxu0 0
        %514 = vmatpush1.bf16.msra.mxu0 0
        %515 = vmatprep.subr.bf16.mxu0 0
        %516 = vmatpush1.bf16.msra.mxu0 0
        %517 = vmatprep.subr.bf16.mxu0 0
        %518 = vmatpush1.bf16.msra.mxu0 0
        %519 = vmatprep.subr.bf16.mxu0 0
        %520 = vmatpush1.bf16.msra.mxu0 0
        %521 = vmatprep.subr.bf16.mxu0 0
        %522 = vmatpush1.bf16.msra.mxu0 0
        %523 = vmatprep.subr.bf16.mxu0 0
        %524 = vmatpush1.bf16.msra.mxu0 0
        %525 = vmatprep.mubr.bf16.mxu0 0
        %526 = vmatmul.mubr.bf16.gmra.mrb[0].mxu0 %v426
        %v527 = vpop.f32.mrb[0].mxu0
        %v528 = vadd.f32 %v479, %v527
        %v529 = vpop.f32.mrb[0].mxu0
        %v530 = vpop.f32.mrb[0].mxu0
        %v531 = vpop.f32.mrb[0].mxu0
        %532 = vdwg.mxu0
        %s533 = scalar_lea.vmem %s2, 128
        %v534 = vld [vmem:[%s533] sm:$0xf]
        %v535 = vld [vmem:[%s533 + $0x4] sm:$0xf]
        %v536 = vld [vmem:[%s533 + $0x8] sm:$0xf]
        %v537 = vld [vmem:[%s533 + $0xc] sm:$0xf]
        %s538 = scalar_lea.vmem %s3, 8
        %v539 = vld [vmem:[%s538] sm:$0x1]
        %v541 = vlaneseq
        %v542 = vshrl.u32 %v541, 7
        %v543 = vsub.s32 0, %v542
        %v544 = vrot.slane %v539, %v543
        %v550 = vunpack.c.l.b16 %v534
        %v551 = vunpack.c.l.b16 %v535
        %v552 = vunpack.c.l.b16 %v536
        %v553 = vunpack.c.l.b16 %v537
        %v554 = vpack.c.b16 %v551, %v550
        %v555 = vpack.c.b16 %v553, %v552
        %558 = vmatprep.subr.bf16.mxu0 0
        %559 = vmatpush1.bf16.msra.mxu0 %v554
        %560 = vmatprep.subr.bf16.mxu0 0
        %561 = vmatpush1.bf16.msra.mxu0 %v555
        %562 = vmatprep.subr.bf16.mxu0 0
        %563 = vmatpush1.bf16.msra.mxu0 0
        %564 = vmatprep.subr.bf16.mxu0 0
        %565 = vmatpush1.bf16.msra.mxu0 0
        %566 = vmatprep.subr.bf16.mxu0 0
        %567 = vmatpush1.bf16.msra.mxu0 0
        %568 = vmatprep.subr.bf16.mxu0 0
        %569 = vmatpush1.bf16.msra.mxu0 0
        %570 = vmatprep.subr.bf16.mxu0 0
        %571 = vmatpush1.bf16.msra.mxu0 0
        %572 = vmatprep.subr.bf16.mxu0 0
        %573 = vmatpush1.bf16.msra.mxu0 0
        %574 = vmatprep.subr.bf16.mxu0 0
        %575 = vmatpush1.bf16.msra.mxu0 0
        %576 = vmatprep.subr.bf16.mxu0 0
        %577 = vmatpush1.bf16.msra.mxu0 0
        %578 = vmatprep.subr.bf16.mxu0 0
        %579 = vmatpush1.bf16.msra.mxu0 0
        %580 = vmatprep.subr.bf16.mxu0 0
        %581 = vmatpush1.bf16.msra.mxu0 0
        %582 = vmatprep.subr.bf16.mxu0 0
        %583 = vmatpush1.bf16.msra.mxu0 0
        %584 = vmatprep.subr.bf16.mxu0 0
        %585 = vmatpush1.bf16.msra.mxu0 0
        %586 = vmatprep.subr.bf16.mxu0 0
        %587 = vmatpush1.bf16.msra.mxu0 0
        %588 = vmatprep.subr.bf16.mxu0 0
        %589 = vmatpush1.bf16.msra.mxu0 0
        %590 = vmatprep.mubr.bf16.mxu0 0
        %591 = vmatmul.mubr.bf16.gmra.mrb[0].mxu0 %v426
        %v592 = vpop.f32.mrb[0].mxu0
        %v593 = vadd.f32 %v544, %v592
        %v594 = vpop.f32.mrb[0].mxu0
        %v595 = vpop.f32.mrb[0].mxu0
        %v596 = vpop.f32.mrb[0].mxu0
        %597 = vdwg.mxu0
        %v598 = vmul.f32 %v463, 0.35355338
        %v599 = vpack.c.bf16 %v598, %v598
        %v600 = vpack.c.bf16 %v528, %v528
        %vm601 = vcmask 64512
        %v603 = vsel %vm601, %v599, 0
        %v606 = vsel %vm601, %v600, 0
        %608 = vmatprep.subr.bf16.mxu0 0
        %609 = vmatpush1.bf16.xpose.msra.mxu0 %v606
        %610 = vmatprep.subr.bf16.mxu0 0
        %611 = vmatpush1.bf16.xpose.msra.mxu0 0
        %612 = vmatprep.subr.bf16.mxu0 0
        %613 = vmatpush1.bf16.xpose.msra.mxu0 0
        %614 = vmatprep.subr.bf16.mxu0 0
        %615 = vmatpush1.bf16.xpose.msra.mxu0 0
        %616 = vmatprep.subr.bf16.mxu0 0
        %617 = vmatpush1.bf16.xpose.msra.mxu0 0
        %618 = vmatprep.subr.bf16.mxu0 0
        %619 = vmatpush1.bf16.xpose.msra.mxu0 0
        %620 = vmatprep.subr.bf16.mxu0 0
        %621 = vmatpush1.bf16.xpose.msra.mxu0 0
        %622 = vmatprep.subr.bf16.mxu0 0
        %623 = vmatpush1.bf16.xpose.msra.mxu0 0
        %624 = vmatprep.subr.bf16.mxu0 0
        %625 = vmatpush1.bf16.xpose.msra.mxu0 0
        %626 = vmatprep.subr.bf16.mxu0 0
        %627 = vmatpush1.bf16.xpose.msra.mxu0 0
        %628 = vmatprep.subr.bf16.mxu0 0
        %629 = vmatpush1.bf16.xpose.msra.mxu0 0
        %630 = vmatprep.subr.bf16.mxu0 0
        %631 = vmatpush1.bf16.xpose.msra.mxu0 0
        %632 = vmatprep.subr.bf16.mxu0 0
        %633 = vmatpush1.bf16.xpose.msra.mxu0 0
        %634 = vmatprep.subr.bf16.mxu0 0
        %635 = vmatpush1.bf16.xpose.msra.mxu0 0
        %636 = vmatprep.subr.bf16.mxu0 0
        %637 = vmatpush1.bf16.xpose.msra.mxu0 0
        %638 = vmatprep.subr.bf16.mxu0 0
        %639 = vmatpush1.bf16.xpose.msra.mxu0 0
        %640 = vmatprep.mubr.bf16.mxu0 0
        %641 = vmatmul.mubr.bf16.gmra.mrb[0].mxu0 %v603
        %v642 = vpop.f32.mrb[0].mxu0
        %v643 = vadd.f32 0.0, %v642
        %v644 = vpop.f32.mrb[0].mxu0
        %v645 = vpop.f32.mrb[0].mxu0
        %v646 = vpop.f32.mrb[0].mxu0
        %647 = vdwg.mxu0
        %v648 = vsel %vm601, %v643, -inf
        %649 = vmax.xlane.f32.xlu0 %v648
        %v650 = vpop.xlane.xlu0 %649
        %v651 = vsub.f32 %v643, %v650
        %v652 = vmul.f32 %v651, 1.442695
        %v653 = vpow.pop %v652
        %v654 = vsel %vm601, %v653, 0.0
        %655 = vadd.xlane.f32.xlu0 %v654
        %v656 = vpop.xlane.xlu0 %655
        %v657 = vrcp.pop %v656
        %v658 = vmul.f32 %v653, %v657
        %v659 = vpack.c.bf16 %v658, %v658
        %v660 = vpack.c.bf16 %v593, %v593
        %v662 = vsel %vm601, %v659, 0
        %vm664 = vcmask 1043456
        %v666 = vsel %vm664, %v660, 0
        %668 = vmatprep.subr.bf16.mxu0 0
        %669 = vmatpush1.bf16.msra.mxu0 %v666
        %670 = vmatprep.subr.bf16.mxu0 0
        %671 = vmatpush1.bf16.msra.mxu0 0
        %672 = vmatprep.subr.bf16.mxu0 0
        %673 = vmatpush1.bf16.msra.mxu0 0
        %674 = vmatprep.subr.bf16.mxu0 0
        %675 = vmatpush1.bf16.msra.mxu0 0
        %676 = vmatprep.subr.bf16.mxu0 0
        %677 = vmatpush1.bf16.msra.mxu0 0
        %678 = vmatprep.subr.bf16.mxu0 0
        %679 = vmatpush1.bf16.msra.mxu0 0
        %680 = vmatprep.subr.bf16.mxu0 0
        %681 = vmatpush1.bf16.msra.mxu0 0
        %682 = vmatprep.subr.bf16.mxu0 0
        %683 = vmatpush1.bf16.msra.mxu0 0
        %684 = vmatprep.subr.bf16.mxu0 0
        %685 = vmatpush1.bf16.msra.mxu0 0
        %686 = vmatprep.subr.bf16.mxu0 0
        %687 = vmatpush1.bf16.msra.mxu0 0
        %688 = vmatprep.subr.bf16.mxu0 0
        %689 = vmatpush1.bf16.msra.mxu0 0
        %690 = vmatprep.subr.bf16.mxu0 0
        %691 = vmatpush1.bf16.msra.mxu0 0
        %692 = vmatprep.subr.bf16.mxu0 0
        %693 = vmatpush1.bf16.msra.mxu0 0
        %694 = vmatprep.subr.bf16.mxu0 0
        %695 = vmatpush1.bf16.msra.mxu0 0
        %696 = vmatprep.subr.bf16.mxu0 0
        %697 = vmatpush1.bf16.msra.mxu0 0
        %698 = vmatprep.subr.bf16.mxu0 0
        %699 = vmatpush1.bf16.msra.mxu0 0
        %700 = vmatprep.mubr.bf16.mxu0 0
        %701 = vmatmul.mubr.bf16.gmra.mrb[0].mxu0 %v662
        %v702 = vpop.f32.mrb[0].mxu0
        %v703 = vadd.f32 0.0, %v702
        %v704 = vpop.f32.mrb[0].mxu0
        %v705 = vpop.f32.mrb[0].mxu0
        %v706 = vpop.f32.mrb[0].mxu0
        %707 = vdwg.mxu0
        %v708 = vpack.c.bf16 %v703, %v703
        %v709 = vld [vmem:[%s4] sm:$0xf]
        %s710 = scalar_lea.vmem %s2, 16
        %v711 = vld [vmem:[%s710] sm:$0xf]
        %v712 = vld [vmem:[%s710 + $0x4] sm:$0xf]
        %v713 = vld [vmem:[%s710 + $0x8] sm:$0xf]
        %v714 = vld [vmem:[%s710 + $0xc] sm:$0xf]
        %s715 = scalar_lea.vmem %s3, 1
        %v716 = vld [vmem:[%s715] sm:$0x1]
        %v718 = vlaneseq
        %v719 = vshrl.u32 %v718, 7
        %v720 = vsub.s32 0, %v719
        %v721 = vrot.slane %v716, %v720
        %v727 = vunpack.c.l.b16 %v711
        %v728 = vunpack.c.l.b16 %v712
        %v729 = vunpack.c.l.b16 %v713
        %v730 = vunpack.c.l.b16 %v714
        %v731 = vpack.c.b16 %v728, %v727
        %v732 = vpack.c.b16 %v730, %v729
        %735 = vmatprep.subr.bf16.mxu0 0
        %736 = vmatpush1.bf16.msra.mxu0 %v731
        %737 = vmatprep.subr.bf16.mxu0 0
        %738 = vmatpush1.bf16.msra.mxu0 %v732
        %739 = vmatprep.subr.bf16.mxu0 0
        %740 = vmatpush1.bf16.msra.mxu0 0
        %741 = vmatprep.subr.bf16.mxu0 0
        %742 = vmatpush1.bf16.msra.mxu0 0
        %743 = vmatprep.subr.bf16.mxu0 0
        %744 = vmatpush1.bf16.msra.mxu0 0
        %745 = vmatprep.subr.bf16.mxu0 0
        %746 = vmatpush1.bf16.msra.mxu0 0
        %747 = vmatprep.subr.bf16.mxu0 0
        %748 = vmatpush1.bf16.msra.mxu0 0
        %749 = vmatprep.subr.bf16.mxu0 0
        %750 = vmatpush1.bf16.msra.mxu0 0
        %751 = vmatprep.subr.bf16.mxu0 0
        %752 = vmatpush1.bf16.msra.mxu0 0
        %753 = vmatprep.subr.bf16.mxu0 0
        %754 = vmatpush1.bf16.msra.mxu0 0
        %755 = vmatprep.subr.bf16.mxu0 0
        %756 = vmatpush1.bf16.msra.mxu0 0
        %757 = vmatprep.subr.bf16.mxu0 0
        %758 = vmatpush1.bf16.msra.mxu0 0
        %759 = vmatprep.subr.bf16.mxu0 0
        %760 = vmatpush1.bf16.msra.mxu0 0
        %761 = vmatprep.subr.bf16.mxu0 0
        %762 = vmatpush1.bf16.msra.mxu0 0
        %763 = vmatprep.subr.bf16.mxu0 0
        %764 = vmatpush1.bf16.msra.mxu0 0
        %765 = vmatprep.subr.bf16.mxu0 0
        %766 = vmatpush1.bf16.msra.mxu0 0
        %767 = vmatprep.mubr.bf16.mxu0 0
        %768 = vmatmul.mubr.bf16.gmra.mrb[0].mxu0 %v426
        %v769 = vpop.f32.mrb[0].mxu0
        %v770 = vadd.f32 %v721, %v769
        %v771 = vpop.f32.mrb[0].mxu0
        %v772 = vpop.f32.mrb[0].mxu0
        %v773 = vpop.f32.mrb[0].mxu0
        %774 = vdwg.mxu0
        %s775 = scalar_lea.vmem %s2, 80
        %v776 = vld [vmem:[%s775] sm:$0xf]
        %v777 = vld [vmem:[%s775 + $0x4] sm:$0xf]
        %v778 = vld [vmem:[%s775 + $0x8] sm:$0xf]
        %v779 = vld [vmem:[%s775 + $0xc] sm:$0xf]
        %s780 = scalar_lea.vmem %s3, 5
        %v781 = vld [vmem:[%s780] sm:$0x1]
        %v783 = vlaneseq
        %v784 = vshrl.u32 %v783, 7
        %v785 = vsub.s32 0, %v784
        %v786 = vrot.slane %v781, %v785
        %v792 = vunpack.c.l.b16 %v776
        %v793 = vunpack.c.l.b16 %v777
        %v794 = vunpack.c.l.b16 %v778
        %v795 = vunpack.c.l.b16 %v779
        %v796 = vpack.c.b16 %v793, %v792
        %v797 = vpack.c.b16 %v795, %v794
        %800 = vmatprep.subr.bf16.mxu0 0
        %801 = vmatpush1.bf16.msra.mxu0 %v796
        %802 = vmatprep.subr.bf16.mxu0 0
        %803 = vmatpush1.bf16.msra.mxu0 %v797
        %804 = vmatprep.subr.bf16.mxu0 0
        %805 = vmatpush1.bf16.msra.mxu0 0
        %806 = vmatprep.subr.bf16.mxu0 0
        %807 = vmatpush1.bf16.msra.mxu0 0
        %808 = vmatprep.subr.bf16.mxu0 0
        %809 = vmatpush1.bf16.msra.mxu0 0
        %810 = vmatprep.subr.bf16.mxu0 0
        %811 = vmatpush1.bf16.msra.mxu0 0
        %812 = vmatprep.subr.bf16.mxu0 0
        %813 = vmatpush1.bf16.msra.mxu0 0
        %814 = vmatprep.subr.bf16.mxu0 0
        %815 = vmatpush1.bf16.msra.mxu0 0
        %816 = vmatprep.subr.bf16.mxu0 0
        %817 = vmatpush1.bf16.msra.mxu0 0
        %818 = vmatprep.subr.bf16.mxu0 0
        %819 = vmatpush1.bf16.msra.mxu0 0
        %820 = vmatprep.subr.bf16.mxu0 0
        %821 = vmatpush1.bf16.msra.mxu0 0
        %822 = vmatprep.subr.bf16.mxu0 0
        %823 = vmatpush1.bf16.msra.mxu0 0
        %824 = vmatprep.subr.bf16.mxu0 0
        %825 = vmatpush1.bf16.msra.mxu0 0
        %826 = vmatprep.subr.bf16.mxu0 0
        %827 = vmatpush1.bf16.msra.mxu0 0
        %828 = vmatprep.subr.bf16.mxu0 0
        %829 = vmatpush1.bf16.msra.mxu0 0
        %830 = vmatprep.subr.bf16.mxu0 0
        %831 = vmatpush1.bf16.msra.mxu0 0
        %832 = vmatprep.mubr.bf16.mxu0 0
        %833 = vmatmul.mubr.bf16.gmra.mrb[0].mxu0 %v426
        %v834 = vpop.f32.mrb[0].mxu0
        %v835 = vadd.f32 %v786, %v834
        %v836 = vpop.f32.mrb[0].mxu0
        %v837 = vpop.f32.mrb[0].mxu0
        %v838 = vpop.f32.mrb[0].mxu0
        %839 = vdwg.mxu0
        %s840 = scalar_lea.vmem %s2, 144
        %v841 = vld [vmem:[%s840] sm:$0xf]
        %v842 = vld [vmem:[%s840 + $0x4] sm:$0xf]
        %v843 = vld [vmem:[%s840 + $0x8] sm:$0xf]
        %v844 = vld [vmem:[%s840 + $0xc] sm:$0xf]
        %s845 = scalar_lea.vmem %s3, 9
        %v846 = vld [vmem:[%s845] sm:$0x1]
        %v848 = vlaneseq
        %v849 = vshrl.u32 %v848, 7
        %v850 = vsub.s32 0, %v849
        %v851 = vrot.slane %v846, %v850
        %v857 = vunpack.c.l.b16 %v841
        %v858 = vunpack.c.l.b16 %v842
        %v859 = vunpack.c.l.b16 %v843
        %v860 = vunpack.c.l.b16 %v844
        %v861 = vpack.c.b16 %v858, %v857
        %v862 = vpack.c.b16 %v860, %v859
        %865 = vmatprep.subr.bf16.mxu0 0
        %866 = vmatpush1.bf16.msra.mxu0 %v861
        %867 = vmatprep.subr.bf16.mxu0 0
        %868 = vmatpush1.bf16.msra.mxu0 %v862
        %869 = vmatprep.subr.bf16.mxu0 0
        %870 = vmatpush1.bf16.msra.mxu0 0
        %871 = vmatprep.subr.bf16.mxu0 0
        %872 = vmatpush1.bf16.msra.mxu0 0
        %873 = vmatprep.subr.bf16.mxu0 0
        %874 = vmatpush1.bf16.msra.mxu0 0
        %875 = vmatprep.subr.bf16.mxu0 0
        %876 = vmatpush1.bf16.msra.mxu0 0
        %877 = vmatprep.subr.bf16.mxu0 0
        %878 = vmatpush1.bf16.msra.mxu0 0
        %879 = vmatprep.subr.bf16.mxu0 0
        %880 = vmatpush1.bf16.msra.mxu0 0
        %881 = vmatprep.subr.bf16.mxu0 0
        %882 = vmatpush1.bf16.msra.mxu0 0
        %883 = vmatprep.subr.bf16.mxu0 0
        %884 = vmatpush1.bf16.msra.mxu0 0
        %885 = vmatprep.subr.bf16.mxu0 0
        %886 = vmatpush1.bf16.msra.mxu0 0
        %887 = vmatprep.subr.bf16.mxu0 0
        %888 = vmatpush1.bf16.msra.mxu0 0
        %889 = vmatprep.subr.bf16.mxu0 0
        %890 = vmatpush1.bf16.msra.mxu0 0
        %891 = vmatprep.subr.bf16.mxu0 0
        %892 = vmatpush1.bf16.msra.mxu0 0
        %893 = vmatprep.subr.bf16.mxu0 0
        %894 = vmatpush1.bf16.msra.mxu0 0
        %895 = vmatprep.subr.bf16.mxu0 0
        %896 = vmatpush1.bf16.msra.mxu0 0
        %897 = vmatprep.mubr.bf16.mxu0 0
        %898 = vmatmul.mubr.bf16.gmra.mrb[0].mxu0 %v426
        %v899 = vpop.f32.mrb[0].mxu0
        %v900 = vadd.f32 %v851, %v899
        %v901 = vpop.f32.mrb[0].mxu0
        %v902 = vpop.f32.mrb[0].mxu0
        %v903 = vpop.f32.mrb[0].mxu0
        %904 = vdwg.mxu0
        %v905 = vmul.f32 %v770, 0.35355338
        %v906 = vpack.c.bf16 %v905, %v905
        %v907 = vpack.c.bf16 %v835, %v835
        %v909 = vsel %vm601, %v906, 0
        %v912 = vsel %vm601, %v907, 0
        %914 = vmatprep.subr.bf16.mxu0 0
        %915 = vmatpush1.bf16.xpose.msra.mxu0 %v912
        %916 = vmatprep.subr.bf16.mxu0 0
        %917 = vmatpush1.bf16.xpose.msra.mxu0 0
        %918 = vmatprep.subr.bf16.mxu0 0
        %919 = vmatpush1.bf16.xpose.msra.mxu0 0
        %920 = vmatprep.subr.bf16.mxu0 0
        %921 = vmatpush1.bf16.xpose.msra.mxu0 0
        %922 = vmatprep.subr.bf16.mxu0 0
        %923 = vmatpush1.bf16.xpose.msra.mxu0 0
        %924 = vmatprep.subr.bf16.mxu0 0
        %925 = vmatpush1.bf16.xpose.msra.mxu0 0
        %926 = vmatprep.subr.bf16.mxu0 0
        %927 = vmatpush1.bf16.xpose.msra.mxu0 0
        %928 = vmatprep.subr.bf16.mxu0 0
        %929 = vmatpush1.bf16.xpose.msra.mxu0 0
        %930 = vmatprep.subr.bf16.mxu0 0
        %931 = vmatpush1.bf16.xpose.msra.mxu0 0
        %932 = vmatprep.subr.bf16.mxu0 0
        %933 = vmatpush1.bf16.xpose.msra.mxu0 0
        %934 = vmatprep.subr.bf16.mxu0 0
        %935 = vmatpush1.bf16.xpose.msra.mxu0 0
        %936 = vmatprep.subr.bf16.mxu0 0
        %937 = vmatpush1.bf16.xpose.msra.mxu0 0
        %938 = vmatprep.subr.bf16.mxu0 0
        %939 = vmatpush1.bf16.xpose.msra.mxu0 0
        %940 = vmatprep.subr.bf16.mxu0 0
        %941 = vmatpush1.bf16.xpose.msra.mxu0 0
        %942 = vmatprep.subr.bf16.mxu0 0
        %943 = vmatpush1.bf16.xpose.msra.mxu0 0
        %944 = vmatprep.subr.bf16.mxu0 0
        %945 = vmatpush1.bf16.xpose.msra.mxu0 0
        %946 = vmatprep.mubr.bf16.mxu0 0
        %947 = vmatmul.mubr.bf16.gmra.mrb[0].mxu0 %v909
        %v948 = vpop.f32.mrb[0].mxu0
        %v949 = vadd.f32 0.0, %v948
        %v950 = vpop.f32.mrb[0].mxu0
        %v951 = vpop.f32.mrb[0].mxu0
        %v952 = vpop.f32.mrb[0].mxu0
        %953 = vdwg.mxu0
        %v954 = vsel %vm601, %v949, -inf
        %955 = vmax.xlane.f32.xlu0 %v954
        %v956 = vpop.xlane.xlu0 %955
        %v957 = vsub.f32 %v949, %v956
        %v958 = vmul.f32 %v957, 1.442695
        %v959 = vpow.pop %v958
        %v960 = vsel %vm601, %v959, 0.0
        %961 = vadd.xlane.f32.xlu0 %v960
        %v962 = vpop.xlane.xlu0 %961
        %v963 = vrcp.pop %v962
        %v964 = vmul.f32 %v959, %v963
        %v965 = vpack.c.bf16 %v964, %v964
        %v966 = vpack.c.bf16 %v900, %v900
        %v968 = vsel %vm601, %v965, 0
        %v971 = vsel %vm664, %v966, 0
        %973 = vmatprep.subr.bf16.mxu0 0
        %974 = vmatpush1.bf16.msra.mxu0 %v971
        %975 = vmatprep.subr.bf16.mxu0 0
        %976 = vmatpush1.bf16.msra.mxu0 0
        %977 = vmatprep.subr.bf16.mxu0 0
        %978 = vmatpush1.bf16.msra.mxu0 0
        %979 = vmatprep.subr.bf16.mxu0 0
        %980 = vmatpush1.bf16.msra.mxu0 0
        %981 = vmatprep.subr.bf16.mxu0 0
        %982 = vmatpush1.bf16.msra.mxu0 0
        %983 = vmatprep.subr.bf16.mxu0 0
        %984 = vmatpush1.bf16.msra.mxu0 0
        %985 = vmatprep.subr.bf16.mxu0 0
        %986 = vmatpush1.bf16.msra.mxu0 0
        %987 = vmatprep.subr.bf16.mxu0 0
        %988 = vmatpush1.bf16.msra.mxu0 0
        %989 = vmatprep.subr.bf16.mxu0 0
        %990 = vmatpush1.bf16.msra.mxu0 0
        %991 = vmatprep.subr.bf16.mxu0 0
        %992 = vmatpush1.bf16.msra.mxu0 0
        %993 = vmatprep.subr.bf16.mxu0 0
        %994 = vmatpush1.bf16.msra.mxu0 0
        %995 = vmatprep.subr.bf16.mxu0 0
        %996 = vmatpush1.bf16.msra.mxu0 0
        %997 = vmatprep.subr.bf16.mxu0 0
        %998 = vmatpush1.bf16.msra.mxu0 0
        %999 = vmatprep.subr.bf16.mxu0 0
        %1000 = vmatpush1.bf16.msra.mxu0 0
        %1001 = vmatprep.subr.bf16.mxu0 0
        %1002 = vmatpush1.bf16.msra.mxu0 0
        %1003 = vmatprep.subr.bf16.mxu0 0
        %1004 = vmatpush1.bf16.msra.mxu0 0
        %1005 = vmatprep.mubr.bf16.mxu0 0
        %1006 = vmatmul.mubr.bf16.gmra.mrb[0].mxu0 %v968
        %v1007 = vpop.f32.mrb[0].mxu0
        %v1008 = vadd.f32 0.0, %v1007
        %v1009 = vpop.f32.mrb[0].mxu0
        %v1010 = vpop.f32.mrb[0].mxu0
        %v1011 = vpop.f32.mrb[0].mxu0
        %1012 = vdwg.mxu0
        %v1013 = vpack.c.bf16 %v1008, %v1008
        %s1014 = scalar_lea.vmem %s4, 4
        %v1015 = vld [vmem:[%s1014] sm:$0xf]
        %v1017 = vsel %vm601, %v1013, 0
        %v1020 = vsel %vm664, %v1015, 0
        %1022 = vmatprep.subr.bf16.mxu0 0
        %1023 = vmatpush1.bf16.msra.mxu0 %v1020
        %1024 = vmatprep.subr.bf16.mxu0 0
        %1025 = vmatpush1.bf16.msra.mxu0 0
        %1026 = vmatprep.subr.bf16.mxu0 0
        %1027 = vmatpush1.bf16.msra.mxu0 0
        %1028 = vmatprep.subr.bf16.mxu0 0
        %1029 = vmatpush1.bf16.msra.mxu0 0
        %1030 = vmatprep.subr.bf16.mxu0 0
        %1031 = vmatpush1.bf16.msra.mxu0 0
        %1032 = vmatprep.subr.bf16.mxu0 0
        %1033 = vmatpush1.bf16.msra.mxu0 0
        %1034 = vmatprep.subr.bf16.mxu0 0
        %1035 = vmatpush1.bf16.msra.mxu0 0
        %1036 = vmatprep.subr.bf16.mxu0 0
        %1037 = vmatpush1.bf16.msra.mxu0 0
        %1038 = vmatprep.subr.bf16.mxu0 0
        %1039 = vmatpush1.bf16.msra.mxu0 0
        %1040 = vmatprep.subr.bf16.mxu0 0
        %1041 = vmatpush1.bf16.msra.mxu0 0
        %1042 = vmatprep.subr.bf16.mxu0 0
        %1043 = vmatpush1.bf16.msra.mxu0 0
        %1044 = vmatprep.subr.bf16.mxu0 0
        %1045 = vmatpush1.bf16.msra.mxu0 0
        %1046 = vmatprep.subr.bf16.mxu0 0
        %1047 = vmatpush1.bf16.msra.mxu0 0
        %1048 = vmatprep.subr.bf16.mxu0 0
        %1049 = vmatpush1.bf16.msra.mxu0 0
        %1050 = vmatprep.subr.bf16.mxu0 0
        %1051 = vmatpush1.bf16.msra.mxu0 0
        %1052 = vmatprep.subr.bf16.mxu0 0
        %1053 = vmatpush1.bf16.msra.mxu0 0
        %1054 = vmatprep.mubr.bf16.mxu0 0
        %1055 = vmatmul.mubr.bf16.gmra.mrb[0].mxu0 %v1017
        %v1056 = vpop.f32.mrb[0].mxu0
        %v1057 = vadd.f32 0.0, %v1056
        %v1058 = vpop.f32.mrb[0].mxu0
        %v1059 = vpop.f32.mrb[0].mxu0
        %v1060 = vpop.f32.mrb[0].mxu0
        %1061 = vdwg.mxu0
        %v1063 = vsel %vm601, %v708, 0
        %v1066 = vsel %vm664, %v709, 0
        %1068 = vmatprep.subr.bf16.mxu0 0
        %1069 = vmatpush1.bf16.msra.mxu0 %v1066
        %1070 = vmatprep.subr.bf16.mxu0 0
        %1071 = vmatpush1.bf16.msra.mxu0 0
        %1072 = vmatprep.subr.bf16.mxu0 0
        %1073 = vmatpush1.bf16.msra.mxu0 0
        %1074 = vmatprep.subr.bf16.mxu0 0
        %1075 = vmatpush1.bf16.msra.mxu0 0
        %1076 = vmatprep.subr.bf16.mxu0 0
        %1077 = vmatpush1.bf16.msra.mxu0 0
        %1078 = vmatprep.subr.bf16.mxu0 0
        %1079 = vmatpush1.bf16.msra.mxu0 0
        %1080 = vmatprep.subr.bf16.mxu0 0
        %1081 = vmatpush1.bf16.msra.mxu0 0
        %1082 = vmatprep.subr.bf16.mxu0 0
        %1083 = vmatpush1.bf16.msra.mxu0 0
        %1084 = vmatprep.subr.bf16.mxu0 0
        %1085 = vmatpush1.bf16.msra.mxu0 0
        %1086 = vmatprep.subr.bf16.mxu0 0
        %1087 = vmatpush1.bf16.msra.mxu0 0
        %1088 = vmatprep.subr.bf16.mxu0 0
        %1089 = vmatpush1.bf16.msra.mxu0 0
        %1090 = vmatprep.subr.bf16.mxu0 0
        %1091 = vmatpush1.bf16.msra.mxu0 0
        %1092 = vmatprep.subr.bf16.mxu0 0
        %1093 = vmatpush1.bf16.msra.mxu0 0
        %1094 = vmatprep.subr.bf16.mxu0 0
        %1095 = vmatpush1.bf16.msra.mxu0 0
        %1096 = vmatprep.subr.bf16.mxu0 0
        %1097 = vmatpush1.bf16.msra.mxu0 0
        %1098 = vmatprep.subr.bf16.mxu0 0
        %1099 = vmatpush1.bf16.msra.mxu0 0
        %1100 = vmatprep.mubr.bf16.mxu0 0
        %1101 = vmatmul.mubr.bf16.gmra.mrb[0].mxu0 %v1063
        %v1102 = vpop.f32.mrb[0].mxu0
        %v1103 = vadd.f32 %v1057, %v1102
        %v1104 = vpop.f32.mrb[0].mxu0
        %v1105 = vpop.f32.mrb[0].mxu0
        %v1106 = vpop.f32.mrb[0].mxu0
        %1107 = vdwg.mxu0
        %s1108 = scalar_lea.vmem %s2, 32
        %v1109 = vld [vmem:[%s1108] sm:$0xf]
        %v1110 = vld [vmem:[%s1108 + $0x4] sm:$0xf]
        %v1111 = vld [vmem:[%s1108 + $0x8] sm:$0xf]
        %v1112 = vld [vmem:[%s1108 + $0xc] sm:$0xf]
        %s1113 = scalar_lea.vmem %s3, 2
        %v1114 = vld [vmem:[%s1113] sm:$0x1]
        %v1116 = vlaneseq
        %v1117 = vshrl.u32 %v1116, 7
        %v1118 = vsub.s32 0, %v1117
        %v1119 = vrot.slane %v1114, %v1118
        %v1125 = vunpack.c.l.b16 %v1109
        %v1126 = vunpack.c.l.b16 %v1110
        %v1127 = vunpack.c.l.b16 %v1111
        %v1128 = vunpack.c.l.b16 %v1112
        %v1129 = vpack.c.b16 %v1126, %v1125
        %v1130 = vpack.c.b16 %v1128, %v1127
        %1133 = vmatprep.subr.bf16.mxu0 0
        %1134 = vmatpush1.bf16.msra.mxu0 %v1129
        %1135 = vmatprep.subr.bf16.mxu0 0
        %1136 = vmatpush1.bf16.msra.mxu0 %v1130
        %1137 = vmatprep.subr.bf16.mxu0 0
        %1138 = vmatpush1.bf16.msra.mxu0 0
        %1139 = vmatprep.subr.bf16.mxu0 0
        %1140 = vmatpush1.bf16.msra.mxu0 0
        %1141 = vmatprep.subr.bf16.mxu0 0
        %1142 = vmatpush1.bf16.msra.mxu0 0
        %1143 = vmatprep.subr.bf16.mxu0 0
        %1144 = vmatpush1.bf16.msra.mxu0 0
        %1145 = vmatprep.subr.bf16.mxu0 0
        %1146 = vmatpush1.bf16.msra.mxu0 0
        %1147 = vmatprep.subr.bf16.mxu0 0
        %1148 = vmatpush1.bf16.msra.mxu0 0
        %1149 = vmatprep.subr.bf16.mxu0 0
        %1150 = vmatpush1.bf16.msra.mxu0 0
        %1151 = vmatprep.subr.bf16.mxu0 0
        %1152 = vmatpush1.bf16.msra.mxu0 0
        %1153 = vmatprep.subr.bf16.mxu0 0
        %1154 = vmatpush1.bf16.msra.mxu0 0
        %1155 = vmatprep.subr.bf16.mxu0 0
        %1156 = vmatpush1.bf16.msra.mxu0 0
        %1157 = vmatprep.subr.bf16.mxu0 0
        %1158 = vmatpush1.bf16.msra.mxu0 0
        %1159 = vmatprep.subr.bf16.mxu0 0
        %1160 = vmatpush1.bf16.msra.mxu0 0
        %1161 = vmatprep.subr.bf16.mxu0 0
        %1162 = vmatpush1.bf16.msra.mxu0 0
        %1163 = vmatprep.subr.bf16.mxu0 0
        %1164 = vmatpush1.bf16.msra.mxu0 0
        %1165 = vmatprep.mubr.bf16.mxu0 0
        %1166 = vmatmul.mubr.bf16.gmra.mrb[0].mxu0 %v426
        %v1167 = vpop.f32.mrb[0].mxu0
        %v1168 = vadd.f32 %v1119, %v1167
        %v1169 = vpop.f32.mrb[0].mxu0
        %v1170 = vpop.f32.mrb[0].mxu0
        %v1171 = vpop.f32.mrb[0].mxu0
        %1172 = vdwg.mxu0
        %s1173 = scalar_lea.vmem %s2, 96
        %v1174 = vld [vmem:[%s1173] sm:$0xf]
        %v1175 = vld [vmem:[%s1173 + $0x4] sm:$0xf]
        %v1176 = vld [vmem:[%s1173 + $0x8] sm:$0xf]
        %v1177 = vld [vmem:[%s1173 + $0xc] sm:$0xf]
        %s1178 = scalar_lea.vmem %s3, 6
        %v1179 = vld [vmem:[%s1178] sm:$0x1]
        %v1181 = vlaneseq
        %v1182 = vshrl.u32 %v1181, 7
        %v1183 = vsub.s32 0, %v1182
        %v1184 = vrot.slane %v1179, %v1183
        %v1190 = vunpack.c.l.b16 %v1174
        %v1191 = vunpack.c.l.b16 %v1175
        %v1192 = vunpack.c.l.b16 %v1176
        %v1193 = vunpack.c.l.b16 %v1177
        %v1194 = vpack.c.b16 %v1191, %v1190
        %v1195 = vpack.c.b16 %v1193, %v1192
        %1198 = vmatprep.subr.bf16.mxu0 0
        %1199 = vmatpush1.bf16.msra.mxu0 %v1194
        %1200 = vmatprep.subr.bf16.mxu0 0
        %1201 = vmatpush1.bf16.msra.mxu0 %v1195
        %1202 = vmatprep.subr.bf16.mxu0 0
        %1203 = vmatpush1.bf16.msra.mxu0 0
        %1204 = vmatprep.subr.bf16.mxu0 0
        %1205 = vmatpush1.bf16.msra.mxu0 0
        %1206 = vmatprep.subr.bf16.mxu0 0
        %1207 = vmatpush1.bf16.msra.mxu0 0
        %1208 = vmatprep.subr.bf16.mxu0 0
        %1209 = vmatpush1.bf16.msra.mxu0 0
        %1210 = vmatprep.subr.bf16.mxu0 0
        %1211 = vmatpush1.bf16.msra.mxu0 0
        %1212 = vmatprep.subr.bf16.mxu0 0
        %1213 = vmatpush1.bf16.msra.mxu0 0
        %1214 = vmatprep.subr.bf16.mxu0 0
        %1215 = vmatpush1.bf16.msra.mxu0 0
        %1216 = vmatprep.subr.bf16.mxu0 0
        %1217 = vmatpush1.bf16.msra.mxu0 0
        %1218 = vmatprep.subr.bf16.mxu0 0
        %1219 = vmatpush1.bf16.msra.mxu0 0
        %1220 = vmatprep.subr.bf16.mxu0 0
        %1221 = vmatpush1.bf16.msra.mxu0 0
        %1222 = vmatprep.subr.bf16.mxu0 0
        %1223 = vmatpush1.bf16.msra.mxu0 0
        %1224 = vmatprep.subr.bf16.mxu0 0
        %1225 = vmatpush1.bf16.msra.mxu0 0
        %1226 = vmatprep.subr.bf16.mxu0 0
        %1227 = vmatpush1.bf16.msra.mxu0 0
        %1228 = vmatprep.subr.bf16.mxu0 0
        %1229 = vmatpush1.bf16.msra.mxu0 0
        %1230 = vmatprep.mubr.bf16.mxu0 0
        %1231 = vmatmul.mubr.bf16.gmra.mrb[0].mxu0 %v426
        %v1232 = vpop.f32.mrb[0].mxu0
        %v1233 = vadd.f32 %v1184, %v1232
        %v1234 = vpop.f32.mrb[0].mxu0
        %v1235 = vpop.f32.mrb[0].mxu0
        %v1236 = vpop.f32.mrb[0].mxu0
        %1237 = vdwg.mxu0
        %s1238 = scalar_lea.vmem %s2, 160
        %v1239 = vld [vmem:[%s1238] sm:$0xf]
        %v1240 = vld [vmem:[%s1238 + $0x4] sm:$0xf]
        %v1241 = vld [vmem:[%s1238 + $0x8] sm:$0xf]
        %v1242 = vld [vmem:[%s1238 + $0xc] sm:$0xf]
        %s1243 = scalar_lea.vmem %s3, 10
        %v1244 = vld [vmem:[%s1243] sm:$0x1]
        %v1246 = vlaneseq
        %v1247 = vshrl.u32 %v1246, 7
        %v1248 = vsub.s32 0, %v1247
        %v1249 = vrot.slane %v1244, %v1248
        %v1255 = vunpack.c.l.b16 %v1239
        %v1256 = vunpack.c.l.b16 %v1240
        %v1257 = vunpack.c.l.b16 %v1241
        %v1258 = vunpack.c.l.b16 %v1242
        %v1259 = vpack.c.b16 %v1256, %v1255
        %v1260 = vpack.c.b16 %v1258, %v1257
        %1263 = vmatprep.subr.bf16.mxu0 0
        %1264 = vmatpush1.bf16.msra.mxu0 %v1259
        %1265 = vmatprep.subr.bf16.mxu0 0
        %1266 = vmatpush1.bf16.msra.mxu0 %v1260
        %1267 = vmatprep.subr.bf16.mxu0 0
        %1268 = vmatpush1.bf16.msra.mxu0 0
        %1269 = vmatprep.subr.bf16.mxu0 0
        %1270 = vmatpush1.bf16.msra.mxu0 0
        %1271 = vmatprep.subr.bf16.mxu0 0
        %1272 = vmatpush1.bf16.msra.mxu0 0
        %1273 = vmatprep.subr.bf16.mxu0 0
        %1274 = vmatpush1.bf16.msra.mxu0 0
        %1275 = vmatprep.subr.bf16.mxu0 0
        %1276 = vmatpush1.bf16.msra.mxu0 0
        %1277 = vmatprep.subr.bf16.mxu0 0
        %1278 = vmatpush1.bf16.msra.mxu0 0
        %1279 = vmatprep.subr.bf16.mxu0 0
        %1280 = vmatpush1.bf16.msra.mxu0 0
        %1281 = vmatprep.subr.bf16.mxu0 0
        %1282 = vmatpush1.bf16.msra.mxu0 0
        %1283 = vmatprep.subr.bf16.mxu0 0
        %1284 = vmatpush1.bf16.msra.mxu0 0
        %1285 = vmatprep.subr.bf16.mxu0 0
        %1286 = vmatpush1.bf16.msra.mxu0 0
        %1287 = vmatprep.subr.bf16.mxu0 0
        %1288 = vmatpush1.bf16.msra.mxu0 0
        %1289 = vmatprep.subr.bf16.mxu0 0
        %1290 = vmatpush1.bf16.msra.mxu0 0
        %1291 = vmatprep.subr.bf16.mxu0 0
        %1292 = vmatpush1.bf16.msra.mxu0 0
        %1293 = vmatprep.subr.bf16.mxu0 0
        %1294 = vmatpush1.bf16.msra.mxu0 0
        %1295 = vmatprep.mubr.bf16.mxu0 0
        %1296 = vmatmul.mubr.bf16.gmra.mrb[0].mxu0 %v426
        %v1297 = vpop.f32.mrb[0].mxu0
        %v1298 = vadd.f32 %v1249, %v1297
        %v1299 = vpop.f32.mrb[0].mxu0
        %v1300 = vpop.f32.mrb[0].mxu0
        %v1301 = vpop.f32.mrb[0].mxu0
        %1302 = vdwg.mxu0
        %v1303 = vmul.f32 %v1168, 0.35355338
        %v1304 = vpack.c.bf16 %v1303, %v1303
        %v1305 = vpack.c.bf16 %v1233, %v1233
        %v1307 = vsel %vm601, %v1304, 0
        %v1310 = vsel %vm601, %v1305, 0
        %1312 = vmatprep.subr.bf16.mxu0 0
        %1313 = vmatpush1.bf16.xpose.msra.mxu0 %v1310
        %1314 = vmatprep.subr.bf16.mxu0 0
        %1315 = vmatpush1.bf16.xpose.msra.mxu0 0
        %1316 = vmatprep.subr.bf16.mxu0 0
        %1317 = vmatpush1.bf16.xpose.msra.mxu0 0
        %1318 = vmatprep.subr.bf16.mxu0 0
        %1319 = vmatpush1.bf16.xpose.msra.mxu0 0
        %1320 = vmatprep.subr.bf16.mxu0 0
        %1321 = vmatpush1.bf16.xpose.msra.mxu0 0
        %1322 = vmatprep.subr.bf16.mxu0 0
        %1323 = vmatpush1.bf16.xpose.msra.mxu0 0
        %1324 = vmatprep.subr.bf16.mxu0 0
        %1325 = vmatpush1.bf16.xpose.msra.mxu0 0
        %1326 = vmatprep.subr.bf16.mxu0 0
        %1327 = vmatpush1.bf16.xpose.msra.mxu0 0
        %1328 = vmatprep.subr.bf16.mxu0 0
        %1329 = vmatpush1.bf16.xpose.msra.mxu0 0
        %1330 = vmatprep.subr.bf16.mxu0 0
        %1331 = vmatpush1.bf16.xpose.msra.mxu0 0
        %1332 = vmatprep.subr.bf16.mxu0 0
        %1333 = vmatpush1.bf16.xpose.msra.mxu0 0
        %1334 = vmatprep.subr.bf16.mxu0 0
        %1335 = vmatpush1.bf16.xpose.msra.mxu0 0
        %1336 = vmatprep.subr.bf16.mxu0 0
        %1337 = vmatpush1.bf16.xpose.msra.mxu0 0
        %1338 = vmatprep.subr.bf16.mxu0 0
        %1339 = vmatpush1.bf16.xpose.msra.mxu0 0
        %1340 = vmatprep.subr.bf16.mxu0 0
        %1341 = vmatpush1.bf16.xpose.msra.mxu0 0
        %1342 = vmatprep.subr.bf16.mxu0 0
        %1343 = vmatpush1.bf16.xpose.msra.mxu0 0
        %1344 = vmatprep.mubr.bf16.mxu0 0
        %1345 = vmatmul.mubr.bf16.gmra.mrb[0].mxu0 %v1307
        %v1346 = vpop.f32.mrb[0].mxu0
        %v1347 = vadd.f32 0.0, %v1346
        %v1348 = vpop.f32.mrb[0].mxu0
        %v1349 = vpop.f32.mrb[0].mxu0
        %v1350 = vpop.f32.mrb[0].mxu0
        %1351 = vdwg.mxu0
        %v1352 = vsel %vm601, %v1347, -inf
        %1353 = vmax.xlane.f32.xlu0 %v1352
        %v1354 = vpop.xlane.xlu0 %1353
        %v1355 = vsub.f32 %v1347, %v1354
        %v1356 = vmul.f32 %v1355, 1.442695
        %v1357 = vpow.pop %v1356
        %v1358 = vsel %vm601, %v1357, 0.0
        %1359 = vadd.xlane.f32.xlu0 %v1358
        %v1360 = vpop.xlane.xlu0 %1359
        %v1361 = vrcp.pop %v1360
        %v1362 = vmul.f32 %v1357, %v1361
        %v1363 = vpack.c.bf16 %v1362, %v1362
        %v1364 = vpack.c.bf16 %v1298, %v1298
        %v1366 = vsel %vm601, %v1363, 0
        %v1369 = vsel %vm664, %v1364, 0
        %1371 = vmatprep.subr.bf16.mxu0 0
        %1372 = vmatpush1.bf16.msra.mxu0 %v1369
        %1373 = vmatprep.subr.bf16.mxu0 0
        %1374 = vmatpush1.bf16.msra.mxu0 0
        %1375 = vmatprep.subr.bf16.mxu0 0
        %1376 = vmatpush1.bf16.msra.mxu0 0
        %1377 = vmatprep.subr.bf16.mxu0 0
        %1378 = vmatpush1.bf16.msra.mxu0 0
        %1379 = vmatprep.subr.bf16.mxu0 0
        %1380 = vmatpush1.bf16.msra.mxu0 0
        %1381 = vmatprep.subr.bf16.mxu0 0
        %1382 = vmatpush1.bf16.msra.mxu0 0
        %1383 = vmatprep.subr.bf16.mxu0 0
        %1384 = vmatpush1.bf16.msra.mxu0 0
        %1385 = vmatprep.subr.bf16.mxu0 0
        %1386 = vmatpush1.bf16.msra.mxu0 0
        %1387 = vmatprep.subr.bf16.mxu0 0
        %1388 = vmatpush1.bf16.msra.mxu0 0
        %1389 = vmatprep.subr.bf16.mxu0 0
        %1390 = vmatpush1.bf16.msra.mxu0 0
        %1391 = vmatprep.subr.bf16.mxu0 0
        %1392 = vmatpush1.bf16.msra.mxu0 0
        %1393 = vmatprep.subr.bf16.mxu0 0
        %1394 = vmatpush1.bf16.msra.mxu0 0
        %1395 = vmatprep.subr.bf16.mxu0 0
        %1396 = vmatpush1.bf16.msra.mxu0 0
        %1397 = vmatprep.subr.bf16.mxu0 0
        %1398 = vmatpush1.bf16.msra.mxu0 0
        %1399 = vmatprep.subr.bf16.mxu0 0
        %1400 = vmatpush1.bf16.msra.mxu0 0
        %1401 = vmatprep.subr.bf16.mxu0 0
        %1402 = vmatpush1.bf16.msra.mxu0 0
        %1403 = vmatprep.mubr.bf16.mxu0 0
        %1404 = vmatmul.mubr.bf16.gmra.mrb[0].mxu0 %v1366
        %v1405 = vpop.f32.mrb[0].mxu0
        %v1406 = vadd.f32 0.0, %v1405
        %v1407 = vpop.f32.mrb[0].mxu0
        %v1408 = vpop.f32.mrb[0].mxu0
        %v1409 = vpop.f32.mrb[0].mxu0
        %1410 = vdwg.mxu0
        %v1411 = vpack.c.bf16 %v1406, %v1406
        %s1412 = scalar_lea.vmem %s4, 8
        %v1413 = vld [vmem:[%s1412] sm:$0xf]
        %v1415 = vsel %vm601, %v1411, 0
        %v1418 = vsel %vm664, %v1413, 0
        %1420 = vmatprep.subr.bf16.mxu0 0
        %1421 = vmatpush1.bf16.msra.mxu0 %v1418
        %1422 = vmatprep.subr.bf16.mxu0 0
        %1423 = vmatpush1.bf16.msra.mxu0 0
        %1424 = vmatprep.subr.bf16.mxu0 0
        %1425 = vmatpush1.bf16.msra.mxu0 0
        %1426 = vmatprep.subr.bf16.mxu0 0
        %1427 = vmatpush1.bf16.msra.mxu0 0
        %1428 = vmatprep.subr.bf16.mxu0 0
        %1429 = vmatpush1.bf16.msra.mxu0 0
        %1430 = vmatprep.subr.bf16.mxu0 0
        %1431 = vmatpush1.bf16.msra.mxu0 0
        %1432 = vmatprep.subr.bf16.mxu0 0
        %1433 = vmatpush1.bf16.msra.mxu0 0
        %1434 = vmatprep.subr.bf16.mxu0 0
        %1435 = vmatpush1.bf16.msra.mxu0 0
        %1436 = vmatprep.subr.bf16.mxu0 0
        %1437 = vmatpush1.bf16.msra.mxu0 0
        %1438 = vmatprep.subr.bf16.mxu0 0
        %1439 = vmatpush1.bf16.msra.mxu0 0
        %1440 = vmatprep.subr.bf16.mxu0 0
        %1441 = vmatpush1.bf16.msra.mxu0 0
        %1442 = vmatprep.subr.bf16.mxu0 0
        %1443 = vmatpush1.bf16.msra.mxu0 0
        %1444 = vmatprep.subr.bf16.mxu0 0
        %1445 = vmatpush1.bf16.msra.mxu0 0
        %1446 = vmatprep.subr.bf16.mxu0 0
        %1447 = vmatpush1.bf16.msra.mxu0 0
        %1448 = vmatprep.subr.bf16.mxu0 0
        %1449 = vmatpush1.bf16.msra.mxu0 0
        %1450 = vmatprep.subr.bf16.mxu0 0
        %1451 = vmatpush1.bf16.msra.mxu0 0
        %1452 = vmatprep.mubr.bf16.mxu0 0
        %1453 = vmatmul.mubr.bf16.gmra.mrb[0].mxu0 %v1415
        %v1454 = vpop.f32.mrb[0].mxu0
        %v1455 = vadd.f32 0.0, %v1454
        %v1456 = vpop.f32.mrb[0].mxu0
        %v1457 = vpop.f32.mrb[0].mxu0
        %v1458 = vpop.f32.mrb[0].mxu0
        %1459 = vdwg.mxu0
        %v1460 = vadd.f32 %v1103, %v1455
        %s1461 = scalar_lea.vmem %s2, 48
        %v1462 = vld [vmem:[%s1461] sm:$0xf]
        %v1463 = vld [vmem:[%s1461 + $0x4] sm:$0xf]
        %v1464 = vld [vmem:[%s1461 + $0x8] sm:$0xf]
        %v1465 = vld [vmem:[%s1461 + $0xc] sm:$0xf]
        %s1466 = scalar_lea.vmem %s3, 3
        %v1467 = vld [vmem:[%s1466] sm:$0x1]
        %v1469 = vlaneseq
        %v1470 = vshrl.u32 %v1469, 7
        %v1471 = vsub.s32 0, %v1470
        %v1472 = vrot.slane %v1467, %v1471
        %v1478 = vunpack.c.l.b16 %v1462
        %v1479 = vunpack.c.l.b16 %v1463
        %v1480 = vunpack.c.l.b16 %v1464
        %v1481 = vunpack.c.l.b16 %v1465
        %v1482 = vpack.c.b16 %v1479, %v1478
        %v1483 = vpack.c.b16 %v1481, %v1480
        %1486 = vmatprep.subr.bf16.mxu0 0
        %1487 = vmatpush1.bf16.msra.mxu0 %v1482
        %1488 = vmatprep.subr.bf16.mxu0 0
        %1489 = vmatpush1.bf16.msra.mxu0 %v1483
        %1490 = vmatprep.subr.bf16.mxu0 0
        %1491 = vmatpush1.bf16.msra.mxu0 0
        %1492 = vmatprep.subr.bf16.mxu0 0
        %1493 = vmatpush1.bf16.msra.mxu0 0
        %1494 = vmatprep.subr.bf16.mxu0 0
        %1495 = vmatpush1.bf16.msra.mxu0 0
        %1496 = vmatprep.subr.bf16.mxu0 0
        %1497 = vmatpush1.bf16.msra.mxu0 0
        %1498 = vmatprep.subr.bf16.mxu0 0
        %1499 = vmatpush1.bf16.msra.mxu0 0
        %1500 = vmatprep.subr.bf16.mxu0 0
        %1501 = vmatpush1.bf16.msra.mxu0 0
        %1502 = vmatprep.subr.bf16.mxu0 0
        %1503 = vmatpush1.bf16.msra.mxu0 0
        %1504 = vmatprep.subr.bf16.mxu0 0
        %1505 = vmatpush1.bf16.msra.mxu0 0
        %1506 = vmatprep.subr.bf16.mxu0 0
        %1507 = vmatpush1.bf16.msra.mxu0 0
        %1508 = vmatprep.subr.bf16.mxu0 0
        %1509 = vmatpush1.bf16.msra.mxu0 0
        %1510 = vmatprep.subr.bf16.mxu0 0
        %1511 = vmatpush1.bf16.msra.mxu0 0
        %1512 = vmatprep.subr.bf16.mxu0 0
        %1513 = vmatpush1.bf16.msra.mxu0 0
        %1514 = vmatprep.subr.bf16.mxu0 0
        %1515 = vmatpush1.bf16.msra.mxu0 0
        %1516 = vmatprep.subr.bf16.mxu0 0
        %1517 = vmatpush1.bf16.msra.mxu0 0
        %1518 = vmatprep.mubr.bf16.mxu0 0
        %1519 = vmatmul.mubr.bf16.gmra.mrb[0].mxu0 %v426
        %v1520 = vpop.f32.mrb[0].mxu0
        %v1521 = vadd.f32 %v1472, %v1520
        %v1522 = vpop.f32.mrb[0].mxu0
        %v1523 = vpop.f32.mrb[0].mxu0
        %v1524 = vpop.f32.mrb[0].mxu0
        %1525 = vdwg.mxu0
        %s1526 = scalar_lea.vmem %s2, 112
        %v1527 = vld [vmem:[%s1526] sm:$0xf]
        %v1528 = vld [vmem:[%s1526 + $0x4] sm:$0xf]
        %v1529 = vld [vmem:[%s1526 + $0x8] sm:$0xf]
        %v1530 = vld [vmem:[%s1526 + $0xc] sm:$0xf]
        %s1531 = scalar_lea.vmem %s3, 7
        %v1532 = vld [vmem:[%s1531] sm:$0x1]
        %v1534 = vlaneseq
        %v1535 = vshrl.u32 %v1534, 7
        %v1536 = vsub.s32 0, %v1535
        %v1537 = vrot.slane %v1532, %v1536
        %v1543 = vunpack.c.l.b16 %v1527
        %v1544 = vunpack.c.l.b16 %v1528
        %v1545 = vunpack.c.l.b16 %v1529
        %v1546 = vunpack.c.l.b16 %v1530
        %v1547 = vpack.c.b16 %v1544, %v1543
        %v1548 = vpack.c.b16 %v1546, %v1545
        %1551 = vmatprep.subr.bf16.mxu0 0
        %1552 = vmatpush1.bf16.msra.mxu0 %v1547
        %1553 = vmatprep.subr.bf16.mxu0 0
        %1554 = vmatpush1.bf16.msra.mxu0 %v1548
        %1555 = vmatprep.subr.bf16.mxu0 0
        %1556 = vmatpush1.bf16.msra.mxu0 0
        %1557 = vmatprep.subr.bf16.mxu0 0
        %1558 = vmatpush1.bf16.msra.mxu0 0
        %1559 = vmatprep.subr.bf16.mxu0 0
        %1560 = vmatpush1.bf16.msra.mxu0 0
        %1561 = vmatprep.subr.bf16.mxu0 0
        %1562 = vmatpush1.bf16.msra.mxu0 0
        %1563 = vmatprep.subr.bf16.mxu0 0
        %1564 = vmatpush1.bf16.msra.mxu0 0
        %1565 = vmatprep.subr.bf16.mxu0 0
        %1566 = vmatpush1.bf16.msra.mxu0 0
        %1567 = vmatprep.subr.bf16.mxu0 0
        %1568 = vmatpush1.bf16.msra.mxu0 0
        %1569 = vmatprep.subr.bf16.mxu0 0
        %1570 = vmatpush1.bf16.msra.mxu0 0
        %1571 = vmatprep.subr.bf16.mxu0 0
        %1572 = vmatpush1.bf16.msra.mxu0 0
        %1573 = vmatprep.subr.bf16.mxu0 0
        %1574 = vmatpush1.bf16.msra.mxu0 0
        %1575 = vmatprep.subr.bf16.mxu0 0
        %1576 = vmatpush1.bf16.msra.mxu0 0
        %1577 = vmatprep.subr.bf16.mxu0 0
        %1578 = vmatpush1.bf16.msra.mxu0 0
        %1579 = vmatprep.subr.bf16.mxu0 0
        %1580 = vmatpush1.bf16.msra.mxu0 0
        %1581 = vmatprep.subr.bf16.mxu0 0
        %1582 = vmatpush1.bf16.msra.mxu0 0
        %1583 = vmatprep.mubr.bf16.mxu0 0
        %1584 = vmatmul.mubr.bf16.gmra.mrb[0].mxu0 %v426
        %v1585 = vpop.f32.mrb[0].mxu0
        %v1586 = vadd.f32 %v1537, %v1585
        %v1587 = vpop.f32.mrb[0].mxu0
        %v1588 = vpop.f32.mrb[0].mxu0
        %v1589 = vpop.f32.mrb[0].mxu0
        %1590 = vdwg.mxu0
        %s1591 = scalar_lea.vmem %s2, 176
        %v1592 = vld [vmem:[%s1591] sm:$0xf]
        %v1593 = vld [vmem:[%s1591 + $0x4] sm:$0xf]
        %v1594 = vld [vmem:[%s1591 + $0x8] sm:$0xf]
        %v1595 = vld [vmem:[%s1591 + $0xc] sm:$0xf]
        %s1596 = scalar_lea.vmem %s3, 11
        %v1597 = vld [vmem:[%s1596] sm:$0x1]
        %v1599 = vlaneseq
        %v1600 = vshrl.u32 %v1599, 7
        %v1601 = vsub.s32 0, %v1600
        %v1602 = vrot.slane %v1597, %v1601
        %v1608 = vunpack.c.l.b16 %v1592
        %v1609 = vunpack.c.l.b16 %v1593
        %v1610 = vunpack.c.l.b16 %v1594
        %v1611 = vunpack.c.l.b16 %v1595
        %v1612 = vpack.c.b16 %v1609, %v1608
        %v1613 = vpack.c.b16 %v1611, %v1610
        %1616 = vmatprep.subr.bf16.mxu0 0
        %1617 = vmatpush1.bf16.msra.mxu0 %v1612
        %1618 = vmatprep.subr.bf16.mxu0 0
        %1619 = vmatpush1.bf16.msra.mxu0 %v1613
        %1620 = vmatprep.subr.bf16.mxu0 0
        %1621 = vmatpush1.bf16.msra.mxu0 0
        %1622 = vmatprep.subr.bf16.mxu0 0
        %1623 = vmatpush1.bf16.msra.mxu0 0
        %1624 = vmatprep.subr.bf16.mxu0 0
        %1625 = vmatpush1.bf16.msra.mxu0 0
        %1626 = vmatprep.subr.bf16.mxu0 0
        %1627 = vmatpush1.bf16.msra.mxu0 0
        %1628 = vmatprep.subr.bf16.mxu0 0
        %1629 = vmatpush1.bf16.msra.mxu0 0
        %1630 = vmatprep.subr.bf16.mxu0 0
        %1631 = vmatpush1.bf16.msra.mxu0 0
        %1632 = vmatprep.subr.bf16.mxu0 0
        %1633 = vmatpush1.bf16.msra.mxu0 0
        %1634 = vmatprep.subr.bf16.mxu0 0
        %1635 = vmatpush1.bf16.msra.mxu0 0
        %1636 = vmatprep.subr.bf16.mxu0 0
        %1637 = vmatpush1.bf16.msra.mxu0 0
        %1638 = vmatprep.subr.bf16.mxu0 0
        %1639 = vmatpush1.bf16.msra.mxu0 0
        %1640 = vmatprep.subr.bf16.mxu0 0
        %1641 = vmatpush1.bf16.msra.mxu0 0
        %1642 = vmatprep.subr.bf16.mxu0 0
        %1643 = vmatpush1.bf16.msra.mxu0 0
        %1644 = vmatprep.subr.bf16.mxu0 0
        %1645 = vmatpush1.bf16.msra.mxu0 0
        %1646 = vmatprep.subr.bf16.mxu0 0
        %1647 = vmatpush1.bf16.msra.mxu0 0
        %1648 = vmatprep.mubr.bf16.mxu0 0
        %1649 = vmatmul.mubr.bf16.gmra.mrb[0].mxu0 %v426
        %v1650 = vpop.f32.mrb[0].mxu0
        %v1651 = vadd.f32 %v1602, %v1650
        %v1652 = vpop.f32.mrb[0].mxu0
        %v1653 = vpop.f32.mrb[0].mxu0
        %v1654 = vpop.f32.mrb[0].mxu0
        %1655 = vdwg.mxu0
        %v1656 = vmul.f32 %v1521, 0.35355338
        %v1657 = vpack.c.bf16 %v1656, %v1656
        %v1658 = vpack.c.bf16 %v1586, %v1586
        %v1660 = vsel %vm601, %v1657, 0
        %v1663 = vsel %vm601, %v1658, 0
        %1665 = vmatprep.subr.bf16.mxu0 0
        %1666 = vmatpush1.bf16.xpose.msra.mxu0 %v1663
        %1667 = vmatprep.subr.bf16.mxu0 0
        %1668 = vmatpush1.bf16.xpose.msra.mxu0 0
        %1669 = vmatprep.subr.bf16.mxu0 0
        %1670 = vmatpush1.bf16.xpose.msra.mxu0 0
        %1671 = vmatprep.subr.bf16.mxu0 0
        %1672 = vmatpush1.bf16.xpose.msra.mxu0 0
        %1673 = vmatprep.subr.bf16.mxu0 0
        %1674 = vmatpush1.bf16.xpose.msra.mxu0 0
        %1675 = vmatprep.subr.bf16.mxu0 0
        %1676 = vmatpush1.bf16.xpose.msra.mxu0 0
        %1677 = vmatprep.subr.bf16.mxu0 0
        %1678 = vmatpush1.bf16.xpose.msra.mxu0 0
        %1679 = vmatprep.subr.bf16.mxu0 0
        %1680 = vmatpush1.bf16.xpose.msra.mxu0 0
        %1681 = vmatprep.subr.bf16.mxu0 0
        %1682 = vmatpush1.bf16.xpose.msra.mxu0 0
        %1683 = vmatprep.subr.bf16.mxu0 0
        %1684 = vmatpush1.bf16.xpose.msra.mxu0 0
        %1685 = vmatprep.subr.bf16.mxu0 0
        %1686 = vmatpush1.bf16.xpose.msra.mxu0 0
        %1687 = vmatprep.subr.bf16.mxu0 0
        %1688 = vmatpush1.bf16.xpose.msra.mxu0 0
        %1689 = vmatprep.subr.bf16.mxu0 0
        %1690 = vmatpush1.bf16.xpose.msra.mxu0 0
        %1691 = vmatprep.subr.bf16.mxu0 0
        %1692 = vmatpush1.bf16.xpose.msra.mxu0 0
        %1693 = vmatprep.subr.bf16.mxu0 0
        %1694 = vmatpush1.bf16.xpose.msra.mxu0 0
        %1695 = vmatprep.subr.bf16.mxu0 0
        %1696 = vmatpush1.bf16.xpose.msra.mxu0 0
        %1697 = vmatprep.mubr.bf16.mxu0 0
        %1698 = vmatmul.mubr.bf16.gmra.mrb[0].mxu0 %v1660
        %v1699 = vpop.f32.mrb[0].mxu0
        %v1700 = vadd.f32 0.0, %v1699
        %v1701 = vpop.f32.mrb[0].mxu0
        %v1702 = vpop.f32.mrb[0].mxu0
        %v1703 = vpop.f32.mrb[0].mxu0
        %1704 = vdwg.mxu0
        %v1705 = vsel %vm601, %v1700, -inf
        %1706 = vmax.xlane.f32.xlu0 %v1705
        %v1707 = vpop.xlane.xlu0 %1706
        %v1708 = vsub.f32 %v1700, %v1707
        %v1709 = vmul.f32 %v1708, 1.442695
        %v1710 = vpow.pop %v1709
        %v1711 = vsel %vm601, %v1710, 0.0
        %1712 = vadd.xlane.f32.xlu0 %v1711
        %v1713 = vpop.xlane.xlu0 %1712
        %v1714 = vrcp.pop %v1713
        %v1715 = vmul.f32 %v1710, %v1714
        %v1716 = vpack.c.bf16 %v1715, %v1715
        %v1717 = vpack.c.bf16 %v1651, %v1651
        %v1719 = vsel %vm601, %v1716, 0
        %v1722 = vsel %vm664, %v1717, 0
        %1724 = vmatprep.subr.bf16.mxu0 0
        %1725 = vmatpush1.bf16.msra.mxu0 %v1722
        %1726 = vmatprep.subr.bf16.mxu0 0
        %1727 = vmatpush1.bf16.msra.mxu0 0
        %1728 = vmatprep.subr.bf16.mxu0 0
        %1729 = vmatpush1.bf16.msra.mxu0 0
        %1730 = vmatprep.subr.bf16.mxu0 0
        %1731 = vmatpush1.bf16.msra.mxu0 0
        %1732 = vmatprep.subr.bf16.mxu0 0
        %1733 = vmatpush1.bf16.msra.mxu0 0
        %1734 = vmatprep.subr.bf16.mxu0 0
        %1735 = vmatpush1.bf16.msra.mxu0 0
        %1736 = vmatprep.subr.bf16.mxu0 0
        %1737 = vmatpush1.bf16.msra.mxu0 0
        %1738 = vmatprep.subr.bf16.mxu0 0
        %1739 = vmatpush1.bf16.msra.mxu0 0
        %1740 = vmatprep.subr.bf16.mxu0 0
        %1741 = vmatpush1.bf16.msra.mxu0 0
        %1742 = vmatprep.subr.bf16.mxu0 0
        %1743 = vmatpush1.bf16.msra.mxu0 0
        %1744 = vmatprep.subr.bf16.mxu0 0
        %1745 = vmatpush1.bf16.msra.mxu0 0
        %1746 = vmatprep.subr.bf16.mxu0 0
        %1747 = vmatpush1.bf16.msra.mxu0 0
        %1748 = vmatprep.subr.bf16.mxu0 0
        %1749 = vmatpush1.bf16.msra.mxu0 0
        %1750 = vmatprep.subr.bf16.mxu0 0
        %1751 = vmatpush1.bf16.msra.mxu0 0
        %1752 = vmatprep.subr.bf16.mxu0 0
        %1753 = vmatpush1.bf16.msra.mxu0 0
        %1754 = vmatprep.subr.bf16.mxu0 0
        %1755 = vmatpush1.bf16.msra.mxu0 0
        %1756 = vmatprep.mubr.bf16.mxu0 0
        %1757 = vmatmul.mubr.bf16.gmra.mrb[0].mxu0 %v1719
        %v1758 = vpop.f32.mrb[0].mxu0
        %v1759 = vadd.f32 0.0, %v1758
        %v1760 = vpop.f32.mrb[0].mxu0
        %v1761 = vpop.f32.mrb[0].mxu0
        %v1762 = vpop.f32.mrb[0].mxu0
        %1763 = vdwg.mxu0
        %v1764 = vpack.c.bf16 %v1759, %v1759
        %s1765 = scalar_lea.vmem %s4, 12
        %v1766 = vld [vmem:[%s1765] sm:$0xf]
        %v1768 = vsel %vm601, %v1764, 0
        %v1771 = vsel %vm664, %v1766, 0
        %1773 = vmatprep.subr.bf16.mxu0 0
        %1774 = vmatpush1.bf16.msra.mxu0 %v1771
        %1775 = vmatprep.subr.bf16.mxu0 0
        %1776 = vmatpush1.bf16.msra.mxu0 0
        %1777 = vmatprep.subr.bf16.mxu0 0
        %1778 = vmatpush1.bf16.msra.mxu0 0
        %1779 = vmatprep.subr.bf16.mxu0 0
        %1780 = vmatpush1.bf16.msra.mxu0 0
        %1781 = vmatprep.subr.bf16.mxu0 0
        %1782 = vmatpush1.bf16.msra.mxu0 0
        %1783 = vmatprep.subr.bf16.mxu0 0
        %1784 = vmatpush1.bf16.msra.mxu0 0
        %1785 = vmatprep.subr.bf16.mxu0 0
        %1786 = vmatpush1.bf16.msra.mxu0 0
        %1787 = vmatprep.subr.bf16.mxu0 0
        %1788 = vmatpush1.bf16.msra.mxu0 0
        %1789 = vmatprep.subr.bf16.mxu0 0
        %1790 = vmatpush1.bf16.msra.mxu0 0
        %1791 = vmatprep.subr.bf16.mxu0 0
        %1792 = vmatpush1.bf16.msra.mxu0 0
        %1793 = vmatprep.subr.bf16.mxu0 0
        %1794 = vmatpush1.bf16.msra.mxu0 0
        %1795 = vmatprep.subr.bf16.mxu0 0
        %1796 = vmatpush1.bf16.msra.mxu0 0
        %1797 = vmatprep.subr.bf16.mxu0 0
        %1798 = vmatpush1.bf16.msra.mxu0 0
        %1799 = vmatprep.subr.bf16.mxu0 0
        %1800 = vmatpush1.bf16.msra.mxu0 0
        %1801 = vmatprep.subr.bf16.mxu0 0
        %1802 = vmatpush1.bf16.msra.mxu0 0
        %1803 = vmatprep.subr.bf16.mxu0 0
        %1804 = vmatpush1.bf16.msra.mxu0 0
        %1805 = vmatprep.mubr.bf16.mxu0 0
        %1806 = vmatmul.mubr.bf16.gmra.mrb[0].mxu0 %v1768
        %v1807 = vpop.f32.mrb[0].mxu0
        %v1808 = vadd.f32 0.0, %v1807
        %v1809 = vpop.f32.mrb[0].mxu0
        %v1810 = vpop.f32.mrb[0].mxu0
        %v1811 = vpop.f32.mrb[0].mxu0
        %1812 = vdwg.mxu0
        %v1813 = vadd.f32 %v1460, %v1808
        %v1814 = vld [vmem:[%s5] sm:$0x1]
        %v1816 = vlaneseq
        %v1817 = vshrl.u32 %v1816, 7
        %v1818 = vsub.s32 0, %v1817
        %v1819 = vrot.slane %v1814, %v1818
        %v1821 = vadd.f32 %v1813, %v1819
        %v1822 = vlaneseq
        %v1823 = vshrl.u32 %v1822, 7
        %v1824 = vsub.s32 2, %v1823
        %v1825 = vrot.slane %v374, %v1824
        %v1826 = vmul.f32 %v1825, %v1821
        %v1827 = vadd.f32 %v373, %v1826
        %v1828 = vsel %vm375, %v1827, 0.0
        %1829 = vadd.xlane.f32.xlu0 %v1828
        %v1830 = vpop.xlane.xlu0 %1829
        %v1831 = vmul.f32 %v1830, %v379
        %v1832 = vsub.f32 %v1827, %v1831
        %v1833 = vmul.f32 %v1832, %v1832
        %v1834 = vsel %vm375, %v1833, 0.0
        %1835 = vadd.xlane.f32.xlu0 %v1834
        %v1836 = vpop.xlane.xlu0 %1835
        %v1837 = vmul.f32 %v1836, %v379
        %v1838 = vadd.f32 %v1837, 1e-06
        %v1839 = vrsqrt.pop %v1838
        %v1840 = vmul.f32 %v1832, %v1839
        %v1841 = vlaneseq
        %v1842 = vshrl.u32 %v1841, 7
        %v1843 = vsub.s32 4, %v1842
        %v1844 = vrot.slane %v390, %v1843
        %v1845 = vmul.f32 %v1840, %v1844
        %v1846 = vlaneseq
        %v1847 = vshrl.u32 %v1846, 7
        %v1848 = vsub.s32 3, %v1847
        %v1849 = vrot.slane %v374, %v1848
        %v1850 = vadd.f32 %v1845, %v1849
        %v1851 = vpack.c.bf16 %v1850, %v1850
        %v1852 = vld [vmem:[%s6] sm:$0xf]
        %v1853 = vld [vmem:[%s6 + $0x4] sm:$0xf]
        %v1854 = vld [vmem:[%s6 + $0x8] sm:$0xf]
        %v1855 = vld [vmem:[%s6 + $0xc] sm:$0xf]
        %v1856 = vld [vmem:[%s7] sm:$0x1]
        %v1858 = vlaneseq
        %v1859 = vshrl.u32 %v1858, 7
        %v1860 = vsub.s32 0, %v1859
        %v1861 = vrot.slane %v1856, %v1860
        %v1867 = vunpack.c.l.b16 %v1852
        %v1868 = vunpack.c.l.b16 %v1853
        %v1869 = vunpack.c.l.b16 %v1854
        %v1870 = vunpack.c.l.b16 %v1855
        %v1871 = vpack.c.b16 %v1868, %v1867
        %v1872 = vpack.c.b16 %v1870, %v1869
        %v1876 = vsel %vm375, %v1851, 0
        %1878 = vmatprep.subr.bf16.mxu0 0
        %1879 = vmatpush1.bf16.msra.mxu0 %v1871
        %1880 = vmatprep.subr.bf16.mxu0 0
        %1881 = vmatpush1.bf16.msra.mxu0 %v1872
        %1882 = vmatprep.subr.bf16.mxu0 0
        %1883 = vmatpush1.bf16.msra.mxu0 0
        %1884 = vmatprep.subr.bf16.mxu0 0
        %1885 = vmatpush1.bf16.msra.mxu0 0
        %1886 = vmatprep.subr.bf16.mxu0 0
        %1887 = vmatpush1.bf16.msra.mxu0 0
        %1888 = vmatprep.subr.bf16.mxu0 0
        %1889 = vmatpush1.bf16.msra.mxu0 0
        %1890 = vmatprep.subr.bf16.mxu0 0
        %1891 = vmatpush1.bf16.msra.mxu0 0
        %1892 = vmatprep.subr.bf16.mxu0 0
        %1893 = vmatpush1.bf16.msra.mxu0 0
        %1894 = vmatprep.subr.bf16.mxu0 0
        %1895 = vmatpush1.bf16.msra.mxu0 0
        %1896 = vmatprep.subr.bf16.mxu0 0
        %1897 = vmatpush1.bf16.msra.mxu0 0
        %1898 = vmatprep.subr.bf16.mxu0 0
        %1899 = vmatpush1.bf16.msra.mxu0 0
        %1900 = vmatprep.subr.bf16.mxu0 0
        %1901 = vmatpush1.bf16.msra.mxu0 0
        %1902 = vmatprep.subr.bf16.mxu0 0
        %1903 = vmatpush1.bf16.msra.mxu0 0
        %1904 = vmatprep.subr.bf16.mxu0 0
        %1905 = vmatpush1.bf16.msra.mxu0 0
        %1906 = vmatprep.subr.bf16.mxu0 0
        %1907 = vmatpush1.bf16.msra.mxu0 0
        %1908 = vmatprep.subr.bf16.mxu0 0
        %1909 = vmatpush1.bf16.msra.mxu0 0
        %1910 = vmatprep.mubr.bf16.mxu0 0
        %1911 = vmatmul.mubr.bf16.gmra.mrb[0].mxu0 %v1876
        %v1912 = vpop.f32.mrb[0].mxu0
        %v1913 = vadd.f32 %v1861, %v1912
        %v1914 = vpop.f32.mrb[0].mxu0
        %v1915 = vpop.f32.mrb[0].mxu0
        %v1916 = vpop.f32.mrb[0].mxu0
        %1917 = vdwg.mxu0
        %v1918 = vmul.f32 %v1913, 0.5
        %v1919 = vmul.f32 %v1913, 0.044715
        %v1920 = vmul.f32 %v1919, %v1913
        %v1921 = vmul.f32 %v1920, %v1913
        %v1922 = vadd.f32 %v1913, %v1921
        %v1923 = vmul.f32 %v1922, 0.7978846
        %v1924 = vtanh.pop %v1923
        %v1925 = vadd.f32 %v1924, 1.0
        %v1926 = vmul.f32 %v1918, %v1925
        %v1927 = vpack.c.bf16 %v1926, %v1926
        %v1928 = vld [vmem:[%s8] sm:$0xf]
        %v1929 = vld [vmem:[%s8 + $0x4] sm:$0xf]
        %v1930 = vld [vmem:[%s8 + $0x8] sm:$0xf]
        %v1931 = vld [vmem:[%s8 + $0xc] sm:$0xf]
        %v1932 = vld [vmem:[%s8 + $0x10] sm:$0xf]
        %v1933 = vld [vmem:[%s8 + $0x14] sm:$0xf]
        %v1934 = vld [vmem:[%s8 + $0x18] sm:$0xf]
        %v1935 = vld [vmem:[%s8 + $0x1c] sm:$0xf]
        %v1936 = vld [vmem:[%s8 + $0x20] sm:$0xf]
        %v1937 = vld [vmem:[%s8 + $0x24] sm:$0xf]
        %v1938 = vld [vmem:[%s8 + $0x28] sm:$0xf]
        %v1939 = vld [vmem:[%s8 + $0x2c] sm:$0xf]
        %v1940 = vld [vmem:[%s8 + $0x30] sm:$0xf]
        %v1941 = vld [vmem:[%s8 + $0x34] sm:$0xf]
        %v1942 = vld [vmem:[%s8 + $0x38] sm:$0xf]
        %v1943 = vld [vmem:[%s8 + $0x3c] sm:$0xf]
        %v1944 = vld [vmem:[%s9] sm:$0x1]
        %v1946 = vlaneseq
        %v1947 = vshrl.u32 %v1946, 7
        %v1948 = vsub.s32 0, %v1947
        %v1949 = vrot.slane %v1944, %v1948
        %v1967 = vunpack.c.l.b16 %v1928
        %v1968 = vunpack.c.l.b16 %v1929
        %v1969 = vunpack.c.l.b16 %v1930
        %v1970 = vunpack.c.l.b16 %v1931
        %v1971 = vunpack.c.l.b16 %v1932
        %v1972 = vunpack.c.l.b16 %v1933
        %v1973 = vunpack.c.l.b16 %v1934
        %v1974 = vunpack.c.l.b16 %v1935
        %v1975 = vunpack.c.l.b16 %v1936
        %v1976 = vunpack.c.l.b16 %v1937
        %v1977 = vunpack.c.l.b16 %v1938
        %v1978 = vunpack.c.l.b16 %v1939
        %v1979 = vunpack.c.l.b16 %v1940
        %v1980 = vunpack.c.l.b16 %v1941
        %v1981 = vunpack.c.l.b16 %v1942
        %v1982 = vunpack.c.l.b16 %v1943
        %v1983 = vpack.c.b16 %v1968, %v1967
        %v1984 = vpack.c.b16 %v1970, %v1969
        %v1985 = vpack.c.b16 %v1972, %v1971
        %v1986 = vpack.c.b16 %v1974, %v1973
        %v1987 = vpack.c.b16 %v1976, %v1975
        %v1988 = vpack.c.b16 %v1978, %v1977
        %v1989 = vpack.c.b16 %v1980, %v1979
        %v1990 = vpack.c.b16 %v1982, %v1981
        %1999 = vmatprep.subr.bf16.mxu0 0
        %2000 = vmatpush1.bf16.msra.mxu0 %v1983
        %2001 = vmatprep.subr.bf16.mxu0 0
        %2002 = vmatpush1.bf16.msra.mxu0 %v1984
        %2003 = vmatprep.subr.bf16.mxu0 0
        %2004 = vmatpush1.bf16.msra.mxu0 %v1985
        %2005 = vmatprep.subr.bf16.mxu0 0
        %2006 = vmatpush1.bf16.msra.mxu0 %v1986
        %2007 = vmatprep.subr.bf16.mxu0 0
        %2008 = vmatpush1.bf16.msra.mxu0 %v1987
        %2009 = vmatprep.subr.bf16.mxu0 0
        %2010 = vmatpush1.bf16.msra.mxu0 %v1988
        %2011 = vmatprep.subr.bf16.mxu0 0
        %2012 = vmatpush1.bf16.msra.mxu0 %v1989
        %2013 = vmatprep.subr.bf16.mxu0 0
        %2014 = vmatpush1.bf16.msra.mxu0 %v1990
        %2015 = vmatprep.subr.bf16.mxu0 0
        %2016 = vmatpush1.bf16.msra.mxu0 0
        %2017 = vmatprep.subr.bf16.mxu0 0
        %2018 = vmatpush1.bf16.msra.mxu0 0
        %2019 = vmatprep.subr.bf16.mxu0 0
        %2020 = vmatpush1.bf16.msra.mxu0 0
        %2021 = vmatprep.subr.bf16.mxu0 0
        %2022 = vmatpush1.bf16.msra.mxu0 0
        %2023 = vmatprep.subr.bf16.mxu0 0
        %2024 = vmatpush1.bf16.msra.mxu0 0
        %2025 = vmatprep.subr.bf16.mxu0 0
        %2026 = vmatpush1.bf16.msra.mxu0 0
        %2027 = vmatprep.subr.bf16.mxu0 0
        %2028 = vmatpush1.bf16.msra.mxu0 0
        %2029 = vmatprep.subr.bf16.mxu0 0
        %2030 = vmatpush1.bf16.msra.mxu0 0
        %2031 = vmatprep.mubr.bf16.mxu0 0
        %2032 = vmatmul.mubr.bf16.gmra.mrb[0].mxu0 %v1927
        %v2033 = vpop.f32.mrb[0].mxu0
        %v2034 = vadd.f32 %v1949, %v2033
        %v2035 = vpop.f32.mrb[0].mxu0
        %v2036 = vpop.f32.mrb[0].mxu0
        %v2037 = vpop.f32.mrb[0].mxu0
        %2038 = vdwg.mxu0
        %v2039 = vlaneseq
        %v2040 = vshrl.u32 %v2039, 7
        %v2041 = vsub.s32 5, %v2040
        %v2042 = vrot.slane %v374, %v2041
        %v2043 = vmul.f32 %v2042, %v2034
        %v2044 = vadd.f32 %v1827, %v2043
        %2045 = vst.msk [vmem:[%s363] sm:$0xff] %vm375, %v2044
        %s2046 = sand.u32 %s252, 1
        %s2047 = scalar_lea.sflag [#allocation3], %s2046
        %s2048 = sand.u32 %s252, 1
        %s2049 = smul.addr %s2048, 8
        %s2050 = scalar_lea.vmem [#allocation2], %s2049
        // Predicated region
        $region61: #{_dit_block_impl.1} parent=59 // pred_check
          %p2051 = pneg %p262
        $region62: #{_dit_block_impl.1} parent=59 // pred_check_branch
          %2053 = sbr.rel (%p2051) target = $region64
        $region63: #{_dit_block_impl.1} parent=59 // pred_region
          %s2055 = ssub.s32 128, 128
          %2056 = vsyncadd %s2047, %s2055
          %s2057 = smul.addr %s24, 128
          %s2058 = scalar_lea.hbm %s10, %s2057
          %s2060 = sshll.u32 %s2050, 4
          %s2061 = int_to_ptr.vmem [resolvable:$true] %s2060
          %2063 = dma.vmem_to_hbm [thread:$0]  %s2061, 128, %s2058, %s2047
        $region64: #{_dit_block_impl.1} parent=59 // pred_fallthru
          _
      $region60: #{_dit_block_impl.1} parent=5 // pred_fallthru
        _
      %p2064 = scmp.le.s32.totalorder 2, %s19
      // Predicated region
      $region65: #{_dit_block_impl.1} parent=5 // pred_check
        %p2065 = pneg %p2064
      $region66: #{_dit_block_impl.1} parent=5 // pred_check_branch
        %2067 = sbr.rel (%p2065) target = $region68
      $region67: #{_dit_block_impl.1} parent=5 // pred_region
        %s2068 = ssub.s32 %s19, 2
        // Predicated region
        $region69: #{_dit_block_impl.1} parent=67 // pred_check
          %p2069 = pneg %p268
        $region70: #{_dit_block_impl.1} parent=67 // pred_check_branch
          %2071 = sbr.rel (%p2069) target = $region72
        $region71: #{_dit_block_impl.1} parent=67 // pred_region
          %s2072 = sand.u32 %s253, 1
          %s2073 = scalar_lea.sflag [#allocation3], %s2072
          %s2074 = sand.u32 %s253, 1
          %s2075 = smul.addr %s2074, 8
          %s2076 = scalar_lea.vmem [#allocation2], %s2075
          %2077 = dma.done %s2073, 128
        $region72: #{_dit_block_impl.1} parent=67 // pred_fallthru
          _
      $region68: #{_dit_block_impl.1} parent=5 // pred_fallthru
        _
    $region6: #{_dit_block_impl.1} parent=1 // loop_footer
      %s23 = sadd.s32 1, %s19
    $region7: #{_dit_block_impl.1} parent=1 // loop_footer_branch
      %18 = sbr.rel target = $region3
    $region8: #{_dit_block_impl.1} parent=1 // loop_exit
      _
    %2078 = vsyncpa [#allocation3], 1
    %s2079 = scalar_lea.sflag [#allocation3], 1
    %2080 = vsyncpa %s2079, 1

</llo_original>
